<compile_context>
chip_gen: v6e
topology: v6e:2x2x1
jax: 0.10.0
libtpu: 0.0.40
codegen_flags: <defaults>
</compile_context>

<pallas_src>
import numpy as np

import jax
import jax.numpy as jnp
from jax import lax
from jax.experimental import pallas as pl
from jax.experimental.pallas import tpu as pltpu

EPS = 1e-5       # PyTorch BatchNorm2d default eps
LANE = 128


# ----------------------------------------------------------------------------
# small helpers
# ----------------------------------------------------------------------------
def _round_up(x, m):
    return ((x + m - 1) // m) * m


def _bn_affine(params, name):
    """Fold eval-mode BatchNorm into y * s + b (1-D vectors)."""
    g = params[name + "_g"]
    b = params[name + "_b"]
    m = params[name + "_m"]
    v = params[name + "_v"]
    s = g / jnp.sqrt(v + EPS)
    return s, b - m * s


def _vmem_capacity_bytes():
    try:
        info = pltpu.get_tpu_info()
        cap = getattr(info, "vmem_capacity_bytes", None)
        if cap:
            return int(cap)
    except Exception:
        pass
    return 64 * 1024 * 1024        # conservative fallback (v7x per-TensorCore VMEM)


def _vmem_estimate_bytes(Ht, W, Wp, dmax, Cin_p, Cout_p, ndil, itemsize,
                         out_itemsize=4):
    """Honest-ish per-step VMEM model: double-buffered input slab, resident
    weights, pipelined output block, and the f32 intermediates (depthwise acc,
    branch conv acc, head acc) plus window temporaries."""
    Hblk = Ht + 2 * dmax
    tile_p = Ht * W
    xbuf = 2 * Hblk * Wp * Cin_p * itemsize                       # input double-buffer
    weights = ((1 + ndil) * Cin_p * Cout_p * itemsize             # w0 + pointwise weights
               + ndil * 9 * Cin_p * 4                             # depthwise taps (f32)
               + (1 + ndil) * Cout_p * Cout_p * itemsize          # BN-scaled head slices
               + 8 * Cout_p * 4)                                  # small vectors
    out = 2 * tile_p * Cout_p * out_itemsize                      # pipelined output block
    live = (tile_p * (Cin_p * (4 + itemsize) + Cout_p * (2 * 4 + itemsize))
            + 2 * tile_p * Cin_p * itemsize)                      # accumulators + temps
    return xbuf + weights + out + live


def _choose_rows_per_tile(H, W, Wp, dmax, Cin_p, Cout_p, ndil, itemsize, budget,
                          pref_mult=256):
    """Pick a divisor of H: prefer TILE_P multiple of `pref_mult` (feeds the MXU
    M dim), then Ht >= 4*dmax (halo amortization), then the largest Ht that
    fits the (generation-aware) VMEM budget."""
    cands = [h for h in range(1, H + 1) if H % h == 0 and (h * W) % 8 == 0]
    if not cands:
        cands = [h for h in range(1, H + 1) if H % h == 0]
    fits = [h for h in cands
            if _vmem_estimate_bytes(h, W, Wp, dmax, Cin_p, Cout_p, ndil,
                                    itemsize) <= budget]
    if not fits:
        fits = [min(cands)]

    def score(h):
        tp = h * W
        return ((tp % pref_mult) == 0, h >= 4 * dmax, h)

    return max(fits, key=score)


# ----------------------------------------------------------------------------
# Pallas kernel
# ----------------------------------------------------------------------------
def _make_kernel(dilations, Ht, W, dmax, Cin_p, Cout_p, cdt):
    ndil = len(dilations)
    Hblk = Ht + 2 * dmax
    TILE_P = Ht * W

    def kernel(xpad_hbm, w0_ref, dw_ref, pw_ref, whb_ref, bias_ref,
               sh_ref, bh_ref, o_ref, xbuf, sem):
        n = pl.program_id(0)       # image            (parallel)
        p = pl.program_id(1)       # row-tile half    (parallel -> 2nd TC on v7x)
        ti = pl.program_id(2)      # row tile in half (arbitrary, sequential)
        TIN = pl.num_programs(2)
        t = p * TIN + ti           # global row-tile index within image n
        slot = ti % 2

        def tile_copy(row_tile, sl):
            # haloed row slab (Hblk rows) of padded image n
            return pltpu.make_async_copy(
                xpad_hbm.at[n, pl.ds(row_tile * Ht, Hblk)],
                xbuf.at[sl],
                sem.at[sl],
            )

        # Prime the double buffer at the start of each per-core chain.
        @pl.when(ti == 0)
        def _():
            tile_copy(t, slot).start()

        # Wait for this slab, then immediately prefetch the next one so its
        # HBM->VMEM transfer overlaps this slab's compute.
        tile_copy(t, slot).wait()

        @pl.when(ti + 1 < TIN)
        def _():
            tile_copy(t + 1, 1 - slot).start()

        def win(r0, c0):
            # (Ht, W, Cin_p) shifted window, loaded straight from the scratch
            return xbuf[slot, r0:r0 + Ht, c0:c0 + W, :]

        # --- branch 0: 1x1 conv -> ReLU; BN scale folded into whb_ref[0]
        xc = win(dmax, dmax).reshape(TILE_P, Cin_p)
        y0 = jnp.dot(xc, w0_ref[...], preferred_element_type=jnp.float32)
        hacc = jnp.dot(jnp.maximum(y0, 0.0).astype(cdt), whb_ref[0],
                       preferred_element_type=jnp.float32)

        # --- separable dilated branches: VPU depthwise (f32 accumulation,
        #     channels on lanes) + ONE pointwise MXU matmul per branch.
        for bi, d in enumerate(dilations):
            dwacc = jnp.zeros((Ht, W, Cin_p), jnp.float32)
            for tap in range(9):
                di, dj = divmod(tap, 3)
                r0 = dmax + (di - 1) * d
                c0 = dmax + (dj - 1) * d
                dwacc = dwacc + win(r0, c0).astype(jnp.float32) * dw_ref[bi, tap]
            yb = jnp.dot(dwacc.reshape(TILE_P, Cin_p).astype(cdt), pw_ref[bi],
                         preferred_element_type=jnp.float32)
            hacc = hacc + jnp.dot(jnp.maximum(yb, 0.0).astype(cdt),
                                  whb_ref[1 + bi],
                                  preferred_element_type=jnp.float32)

        # --- head: pooled branch + folded BN-shift constants arrive as a
        #     per-image bias on the PRE-activation, then ReLU -> head BN.
        #     Dropout is identity in eval mode.
        pre = hacc + bias_ref[0]
        out = jnp.maximum(pre, 0.0) * sh_ref[...] + bh_ref[...]
        o_ref[...] = out.astype(o_ref.dtype)

    return kernel


# ----------------------------------------------------------------------------
# Wrapper: layout, padding, BN folding, weight prep, grid/BlockSpecs
# ----------------------------------------------------------------------------
def aspp_forward(x_nchw, params, dilations, *, compute_dtype=jnp.bfloat16,
                 rows_per_tile=None, out_dtype=jnp.float32, split_rowtiles=None):
    dilations = tuple(int(d) for d in dilations)
    N, Cin, H, W = x_nchw.shape
    Cout = params["w0"].shape[1]
    ndil = len(dilations)
    nb = ndil + 2
    dmax = max(dilations)
    Cin_p = _round_up(Cin, LANE)
    Cout_p = _round_up(Cout, LANE)
    cdt = compute_dtype

    x = jnp.transpose(x_nchw, (0, 2, 3, 1)).astype(jnp.float32)        # NHWC, f32

    # ---- pooled branch (tiny N x Cin work) as a JAX pre-pass; together with
    #      the per-branch BN shift constants it becomes a per-image head bias.
    sp, bp = _bn_affine(params, "bn_pool")
    xm = jnp.mean(x, axis=(1, 2))                                      # (N, Cin)
    yp = jnp.maximum(xm @ params["wp"], 0.0) * sp + bp                 # (N, Cout)
    wh = params["wh"]                                                  # (nb*Cout, Cout)
    bias = yp @ wh[(nb - 1) * Cout:, :]                                # (N, Cout)

    def padw(w, r, c):
        return jnp.pad(w, ((0, r - w.shape[0]), (0, c - w.shape[1])))

    # ---- fold branch BN affines into the head weight slices + constant bias
    whb_list = []
    for b, name in enumerate(["bn0"] + [f"bn_sep{i}" for i in range(ndil)]):
        s_b, b_b = _bn_affine(params, name)
        wh_b = wh[b * Cout:(b + 1) * Cout, :]
        whb_list.append(padw(s_b[:, None] * wh_b, Cout_p, Cout_p))
        bias = bias + b_b @ wh_b
    whb = jnp.stack(whb_list, axis=0).astype(cdt)                      # (1+ndil, Cout_p, Cout_p)
    bias = jnp.pad(bias, ((0, 0), (0, Cout_p - Cout)))
    bias = bias.reshape(N, 1, Cout_p).astype(jnp.float32)

    # ---- weights: 1x1, depthwise taps (f32, unfolded), pointwise (cdt)
    w0 = padw(params["w0"], Cin_p, Cout_p).astype(cdt)                 # (Cin_p, Cout_p)
    dws, pws = [], []
    for i in range(ndil):
        dws.append(jnp.pad(params[f"dw{i}"], ((0, 0), (0, Cin_p - Cin))))
        pws.append(padw(params[f"pw{i}"], Cin_p, Cout_p))
    dwall = jnp.stack(dws, axis=0)[:, :, None, :].astype(jnp.float32)  # (ndil, 9, 1, Cin_p)
    pwall = jnp.stack(pws, axis=0).astype(cdt)                         # (ndil, Cin_p, Cout_p)

    shd, bhd = _bn_affine(params, "bn_head")
    sh = jnp.pad(shd, (0, Cout_p - Cout)).reshape(1, Cout_p).astype(jnp.float32)
    bh = jnp.pad(bhd, (0, Cout_p - Cout)).reshape(1, Cout_p).astype(jnp.float32)

    # ---- the ONLY image-sized kernel input: spatially padded NHWC, width
    #      rounded up to a sublane-friendly multiple of 16, channels lane-padded.
    Wp = _round_up(W + 2 * dmax, 16)
    xpad = jnp.pad(x, ((0, 0), (dmax, dmax), (dmax, Wp - W - dmax),
                       (0, Cin_p - Cin))).astype(cdt)

    # ---- generation-aware row-tile choice + explicit VMEM limit
    itemsize = jnp.dtype(cdt).itemsize
    cap = _vmem_capacity_bytes()
    if rows_per_tile is None:
        rows_per_tile = _choose_rows_per_tile(H, W, Wp, dmax, Cin_p, Cout_p,
                                              ndil, itemsize,
                                              budget=int(cap * 0.375))
    Ht = int(rows_per_tile)
    TILE_P = Ht * W
    if H % Ht or TILE_P % 8:
        raise ValueError(f"rows_per_tile={Ht} must divide H={H} and give a "
                         f"sublane-aligned tile (Ht*W % 8 == 0)")
    est = _vmem_estimate_bytes(Ht, W, Wp, dmax, Cin_p, Cout_p, ndil, itemsize)
    if est > int(cap * 0.75):
        raise ValueError(f"rows_per_tile={Ht} needs ~{est} B VMEM; exceeds the "
                         f"budget for this chip generation (cap={cap} B)")
    vmem_limit = int(min(cap * 0.75, max(2 * est, 32 * 1024 * 1024)))

    T = H // Ht
    # Split the row-tile axis so v7x's second TensorCore has work at small N.
    if split_rowtiles is None:
        split_rowtiles = (T % 2 == 0 and T >= 4)
    P = 2 if (split_rowtiles and T % 2 == 0) else 1
    TIN = T // P
    Hblk = Ht + 2 * dmax

    kernel = _make_kernel(dilations, Ht, W, dmax, Cin_p, Cout_p, cdt)

    out2d = pl.pallas_call(
        kernel,
        out_shape=jax.ShapeDtypeStruct((N * H * W, Cout_p), out_dtype),
        grid_spec=pltpu.PrefetchScalarGridSpec(
            num_scalar_prefetch=0,
            grid=(N, P, TIN),
            in_specs=[
                pl.BlockSpec(memory_space=pl.ANY),                      # xpad: HBM, manual DMA
                pl.BlockSpec(w0.shape, lambda n, p, t: (0, 0)),         # resident weights
                pl.BlockSpec(dwall.shape, lambda n, p, t: (0, 0, 0, 0)),
                pl.BlockSpec(pwall.shape, lambda n, p, t: (0, 0, 0)),
                pl.BlockSpec(whb.shape, lambda n, p, t: (0, 0, 0)),
                pl.BlockSpec((1, 1, Cout_p), lambda n, p, t: (n, 0, 0)),  # per-image head bias
                pl.BlockSpec(sh.shape, lambda n, p, t: (0, 0)),
                pl.BlockSpec(bh.shape, lambda n, p, t: (0, 0)),
            ],
            out_specs=pl.BlockSpec(
                (TILE_P, Cout_p),
                lambda n, p, t, T=T, TIN=TIN: (n * T + p * TIN + t, 0)),
            scratch_shapes=[
                pltpu.VMEM((2, Hblk, Wp, Cin_p), cdt),                  # double-buffered input slab
                pltpu.SemaphoreType.DMA((2,)),
            ],
        ),
        compiler_params=pltpu.CompilerParams(
            dimension_semantics=("parallel", "parallel", "arbitrary"),
            vmem_limit_bytes=vmem_limit,
        ),
    )(xpad, w0, dwall, pwall, whb, bias, sh, bh)

    out = out2d[:, :Cout].reshape(N, H, W, Cout)
    return jnp.transpose(out, (0, 3, 1, 2))                             # NCHW


# ----------------------------------------------------------------------------
# Deterministic parameter initialization (module __init__ shapes, eval-mode BN)
# ----------------------------------------------------------------------------
def init_params(key, Cin, Cout, dilations):
    nb = len(dilations) + 2
    keys = iter(jax.random.split(key, 64))
    p = {}

    def bn(name, c):
        p[name + "_g"] = jax.random.uniform(next(keys), (c,), minval=0.5, maxval=1.5)
        p[name + "_b"] = 0.1 * jax.random.normal(next(keys), (c,))
        p[name + "_m"] = 0.1 * jax.random.normal(next(keys), (c,))
        p[name + "_v"] = jax.random.uniform(next(keys), (c,), minval=0.5, maxval=1.5)

    p["w0"] = 0.3 * jax.random.normal(next(keys), (Cin, Cout))
    bn("bn0", Cout)
    for i, _d in enumerate(dilations):
        p[f"dw{i}"] = 0.3 * jax.random.normal(next(keys), (9, Cin))      # 3x3 depthwise
        p[f"pw{i}"] = 0.3 * jax.random.normal(next(keys), (Cin, Cout))   # 1x1 pointwise
        bn(f"bn_sep{i}", Cout)
    p["wp"] = 0.3 * jax.random.normal(next(keys), (Cin, Cout))
    bn("bn_pool", Cout)
    p["wh"] = 0.3 * jax.random.normal(next(keys), (nb * Cout, Cout))
    bn("bn_head", Cout)
    return {k: v.astype(jnp.float32) for k, v in p.items()}


# ----------------------------------------------------------------------------
# Pure-JAX reference (NCHW, lax convs) for correctness checks
# ----------------------------------------------------------------------------
def aspp_reference(x_nchw, params, dilations):
    N, Cin, H, W = x_nchw.shape
    Cout = params["w0"].shape[1]

    def bn(y, name):
        g, b, m, v = (params[name + "_g"], params[name + "_b"],
                      params[name + "_m"], params[name + "_v"])
        s = g / jnp.sqrt(v + EPS)
        return y * s[None, :, None, None] + (b - m * s)[None, :, None, None]

    def conv1x1(y, w):                      # w: (Cin_, Cout_)
        k = jnp.transpose(w, (1, 0))[:, :, None, None]
        return lax.conv_general_dilated(y, k, (1, 1), 'VALID',
                                        dimension_numbers=('NCHW', 'OIHW', 'NCHW'))

    branches = []
    branches.append(bn(jax.nn.relu(conv1x1(x_nchw, params["w0"])), "bn0"))
    for i, d in enumerate(dilations):
        dw = params[f"dw{i}"].reshape(3, 3, Cin)
        kdw = jnp.transpose(dw, (2, 0, 1))[:, None]          # (Cin,1,3,3)
        yd = lax.conv_general_dilated(x_nchw, kdw, (1, 1),
                                      padding=((d, d), (d, d)),
                                      rhs_dilation=(d, d),
                                      dimension_numbers=('NCHW', 'OIHW', 'NCHW'),
                                      feature_group_count=Cin)
        branches.append(bn(jax.nn.relu(conv1x1(yd, params[f"pw{i}"])), f"bn_sep{i}"))
    xm = jnp.mean(x_nchw, axis=(2, 3), keepdims=True)
    yp = bn(jax.nn.relu(conv1x1(xm, params["wp"])), "bn_pool")
    branches.append(jnp.broadcast_to(yp, (N, Cout, H, W)))
    cat = jnp.concatenate(branches, axis=1)
    return bn(jax.nn.relu(conv1x1(cat, params["wh"])), "bn_head")


if __name__ == "__main__":
    key = jax.random.PRNGKey(0)
    k_x, k_p = jax.random.split(key)

    N, Cin, H, W, Cout = 2, 4, 16, 16, 4
    dilations = [1, 2, 3]

    x = jax.random.normal(k_x, (N, Cin, H, W), dtype=jnp.float32)
    params = init_params(k_p, Cin, Cout, dilations)

    ref = jax.block_until_ready(aspp_reference(x, params, dilations))

    # 1) f32 compute path, 4 rows/tile (T=4 -> split grid (2,2,2)): exact check
    #    of the tiling, halo DMA chain, VPU depthwise + pointwise decomposition,
    #    folded BN-into-head-weights and the per-image head bias.
    out_f32 = jax.block_until_ready(
        aspp_forward(x, params, dilations, compute_dtype=jnp.float32, rows_per_tile=4))
    assert out_f32.shape == (N, Cout, H, W)
    np.testing.assert_allclose(np.asarray(out_f32), np.asarray(ref), atol=2e-3, rtol=2e-3)

    # 2) default bf16 MXU path, 8 rows/tile (T=2, no split -> exercises the
    #    prefetch chain on a single sequential axis).  Tolerance loosened for
    #    bf16 operand rounding (algorithm exactness established above).
    out_bf16 = jax.block_until_ready(
        aspp_forward(x, params, dilations, compute_dtype=jnp.bfloat16, rows_per_tile=8))
    np.testing.assert_allclose(np.asarray(out_bf16), np.asarray(ref), atol=1e-1, rtol=5e-2)

    # 3) automatic (VMEM-budget driven) tile choice.
    out_auto = jax.block_until_ready(aspp_forward(x, params, dilations))
    np.testing.assert_allclose(np.asarray(out_auto), np.asarray(ref), atol=1e-1, rtol=5e-2)

    print("KERNEL_OK")
</pallas_src>

<mosaic_0001>
module attributes {stable_mosaic.version = 11 : i64} {
  func.func @kernel(%arg0: i32, %arg1: i32, %arg2: i32, %arg3: memref<2x22x32x128xf32, #tpu.memory_space<any>>, %arg4: memref<128x128xf32, #tpu.memory_space<vmem>>, %arg5: memref<3x9x1x128xf32, #tpu.memory_space<vmem>>, %arg6: memref<3x128x128xf32, #tpu.memory_space<vmem>>, %arg7: memref<4x128x128xf32, #tpu.memory_space<vmem>>, %arg8: memref<1x1x128xf32, #tpu.memory_space<vmem>>, %arg9: memref<1x128xf32, #tpu.memory_space<vmem>>, %arg10: memref<1x128xf32, #tpu.memory_space<vmem>>, %arg11: memref<64x128xf32, #tpu.memory_space<vmem>>, %arg12: memref<2x10x32x128xf32, #tpu.memory_space<vmem>>, %arg13: memref<2x!tpu.dma_semaphore, #tpu.memory_space<semaphore_mem>>) attributes {dimension_semantics = [#tpu.dimension_semantics<parallel>, #tpu.dimension_semantics<parallel>, #tpu.dimension_semantics<arbitrary>], iteration_bounds = array<i64: 2, 2, 2>, scalar_prefetch = 0 : i64, scratch_operands = 2 : i64, tpu.core_type = #tpu.core_type<tc>, window_params = [{}, {pipeline_mode = #tpu.pipeline_mode<synchronous>, transform_indices = @transform_1, window_bounds = array<i64: 128, 128>}, {pipeline_mode = #tpu.pipeline_mode<synchronous>, transform_indices = @transform_2, window_bounds = array<i64: 3, 9, 1, 128>}, {pipeline_mode = #tpu.pipeline_mode<synchronous>, transform_indices = @transform_3, window_bounds = array<i64: 3, 128, 128>}, {pipeline_mode = #tpu.pipeline_mode<synchronous>, transform_indices = @transform_4, window_bounds = array<i64: 4, 128, 128>}, {transform_indices = @transform_5, window_bounds = array<i64: 1, 1, 128>}, {pipeline_mode = #tpu.pipeline_mode<synchronous>, transform_indices = @transform_6, window_bounds = array<i64: 1, 128>}, {pipeline_mode = #tpu.pipeline_mode<synchronous>, transform_indices = @transform_7, window_bounds = array<i64: 1, 128>}, {transform_indices = @transform_8, window_bounds = array<i64: 64, 128>}]} {
    %c2_i32 = arith.constant 2 : i32
    %0 = arith.muli %arg1, %c2_i32 : i32
    %1 = arith.addi %0, %arg2 : i32
    %c2_i32_0 = arith.constant 2 : i32
    %c0_i32 = arith.constant 0 : i32
    %2 = arith.cmpi eq, %c2_i32_0, %c0_i32 : i32
    %c1_i32 = arith.constant 1 : i32
    %3 = arith.select %2, %c1_i32, %c2_i32_0 : i32
    %4 = arith.remsi %arg2, %3 : i32
    %c0_i32_1 = arith.constant 0 : i32
    %5 = arith.cmpi ne, %4, %c0_i32_1 : i32
    %c0_i32_2 = arith.constant 0 : i32
    %6 = arith.cmpi slt, %4, %c0_i32_2 : i32
    %c0_i32_3 = arith.constant 0 : i32
    %7 = arith.cmpi slt, %3, %c0_i32_3 : i32
    %8 = arith.xori %6, %7 : i1
    %9 = arith.andi %8, %5 : i1
    %10 = arith.addi %4, %3 : i32
    %11 = arith.select %9, %10, %4 : i32
    %c0_i32_4 = arith.constant 0 : i32
    %12 = arith.cmpi eq, %arg2, %c0_i32_4 : i32
    %13 = arith.extui %12 : i1 to i32
    %c0_i32_5 = arith.constant 0 : i32
    %14 = arith.cmpi ne, %13, %c0_i32_5 : i32
    scf.if %14 {
      %c4_i32_244 = arith.constant 4 : i32
      %326 = arith.muli %1, %c4_i32_244 : i32
      %c0_i32_245 = arith.constant 0 : i32
      %c0_i32_246 = arith.constant 0 : i32
      %327 = tpu.memref_slice %arg3[%arg0, %326, %c0_i32_245, %c0_i32_246] : memref<2x22x32x128xf32, #tpu.memory_space<any>> -> memref<1x10x32x128xf32, #tpu.memory_space<any>>
      %328 = tpu.memref_squeeze %327 : memref<1x10x32x128xf32, #tpu.memory_space<any>> -> memref<10x32x128xf32, #tpu.memory_space<any>>
      %c0_i32_247 = arith.constant 0 : i32
      %c0_i32_248 = arith.constant 0 : i32
      %c0_i32_249 = arith.constant 0 : i32
      %329 = tpu.memref_slice %arg12[%11, %c0_i32_247, %c0_i32_248, %c0_i32_249] : memref<2x10x32x128xf32, #tpu.memory_space<vmem>> -> memref<1x10x32x128xf32, #tpu.memory_space<vmem>>
      %330 = tpu.memref_squeeze %329 : memref<1x10x32x128xf32, #tpu.memory_space<vmem>> -> memref<10x32x128xf32, #tpu.memory_space<vmem>>
      %331 = tpu.memref_slice %arg13[%11] : memref<2x!tpu.dma_semaphore, #tpu.memory_space<semaphore_mem>> -> memref<1x!tpu.dma_semaphore, #tpu.memory_space<semaphore_mem>>
      %332 = tpu.memref_squeeze %331 : memref<1x!tpu.dma_semaphore, #tpu.memory_space<semaphore_mem>> -> memref<!tpu.dma_semaphore, #tpu.memory_space<semaphore_mem>>
      tpu.enqueue_dma source(%328 : memref<10x32x128xf32, #tpu.memory_space<any>>) target(%330 : memref<10x32x128xf32, #tpu.memory_space<vmem>>) target_semaphore(%332 : memref<!tpu.dma_semaphore, #tpu.memory_space<semaphore_mem>>)
    } else {
    }
    %c4_i32 = arith.constant 4 : i32
    %15 = arith.muli %1, %c4_i32 : i32
    %c0_i32_6 = arith.constant 0 : i32
    %c0_i32_7 = arith.constant 0 : i32
    %16 = tpu.memref_slice %arg3[%arg0, %15, %c0_i32_6, %c0_i32_7] : memref<2x22x32x128xf32, #tpu.memory_space<any>> -> memref<1x10x32x128xf32, #tpu.memory_space<any>>
    %17 = tpu.memref_squeeze %16 : memref<1x10x32x128xf32, #tpu.memory_space<any>> -> memref<10x32x128xf32, #tpu.memory_space<any>>
    %c0_i32_8 = arith.constant 0 : i32
    %c0_i32_9 = arith.constant 0 : i32
    %c0_i32_10 = arith.constant 0 : i32
    %18 = tpu.memref_slice %arg12[%11, %c0_i32_8, %c0_i32_9, %c0_i32_10] : memref<2x10x32x128xf32, #tpu.memory_space<vmem>> -> memref<1x10x32x128xf32, #tpu.memory_space<vmem>>
    %19 = tpu.memref_squeeze %18 : memref<1x10x32x128xf32, #tpu.memory_space<vmem>> -> memref<10x32x128xf32, #tpu.memory_space<vmem>>
    %20 = tpu.memref_slice %arg13[%11] : memref<2x!tpu.dma_semaphore, #tpu.memory_space<semaphore_mem>> -> memref<1x!tpu.dma_semaphore, #tpu.memory_space<semaphore_mem>>
    %21 = tpu.memref_squeeze %20 : memref<1x!tpu.dma_semaphore, #tpu.memory_space<semaphore_mem>> -> memref<!tpu.dma_semaphore, #tpu.memory_space<semaphore_mem>>
    tpu.wait_dma2 semaphore(%21 : memref<!tpu.dma_semaphore, #tpu.memory_space<semaphore_mem>>) src(%17 : memref<10x32x128xf32, #tpu.memory_space<any>>) dst(%19 : memref<10x32x128xf32, #tpu.memory_space<vmem>>)
    %c1_i32_11 = arith.constant 1 : i32
    %22 = arith.addi %arg2, %c1_i32_11 : i32
    %c2_i32_12 = arith.constant 2 : i32
    %23 = arith.cmpi slt, %22, %c2_i32_12 : i32
    %24 = arith.extui %23 : i1 to i32
    %c0_i32_13 = arith.constant 0 : i32
    %25 = arith.cmpi ne, %24, %c0_i32_13 : i32
    scf.if %25 {
      %c1_i32_244 = arith.constant 1 : i32
      %326 = arith.addi %1, %c1_i32_244 : i32
      %c1_i32_245 = arith.constant 1 : i32
      %327 = arith.subi %c1_i32_245, %11 : i32
      %c4_i32_246 = arith.constant 4 : i32
      %328 = arith.muli %326, %c4_i32_246 : i32
      %c0_i32_247 = arith.constant 0 : i32
      %c0_i32_248 = arith.constant 0 : i32
      %329 = tpu.memref_slice %arg3[%arg0, %328, %c0_i32_247, %c0_i32_248] : memref<2x22x32x128xf32, #tpu.memory_space<any>> -> memref<1x10x32x128xf32, #tpu.memory_space<any>>
      %330 = tpu.memref_squeeze %329 : memref<1x10x32x128xf32, #tpu.memory_space<any>> -> memref<10x32x128xf32, #tpu.memory_space<any>>
      %c0_i32_249 = arith.constant 0 : i32
      %c0_i32_250 = arith.constant 0 : i32
      %c0_i32_251 = arith.constant 0 : i32
      %331 = tpu.memref_slice %arg12[%327, %c0_i32_249, %c0_i32_250, %c0_i32_251] : memref<2x10x32x128xf32, #tpu.memory_space<vmem>> -> memref<1x10x32x128xf32, #tpu.memory_space<vmem>>
      %332 = tpu.memref_squeeze %331 : memref<1x10x32x128xf32, #tpu.memory_space<vmem>> -> memref<10x32x128xf32, #tpu.memory_space<vmem>>
      %333 = tpu.memref_slice %arg13[%327] : memref<2x!tpu.dma_semaphore, #tpu.memory_space<semaphore_mem>> -> memref<1x!tpu.dma_semaphore, #tpu.memory_space<semaphore_mem>>
      %334 = tpu.memref_squeeze %333 : memref<1x!tpu.dma_semaphore, #tpu.memory_space<semaphore_mem>> -> memref<!tpu.dma_semaphore, #tpu.memory_space<semaphore_mem>>
      tpu.enqueue_dma source(%330 : memref<10x32x128xf32, #tpu.memory_space<any>>) target(%332 : memref<10x32x128xf32, #tpu.memory_space<vmem>>) target_semaphore(%334 : memref<!tpu.dma_semaphore, #tpu.memory_space<semaphore_mem>>)
    } else {
    }
    %26 = arith.index_cast %11 : i32 to index
    %c3 = arith.constant 3 : index
    %c3_14 = arith.constant 3 : index
    %c0 = arith.constant 0 : index
    %27 = vector.load %arg12[%26, %c3, %c3_14, %c0] : memref<2x10x32x128xf32, #tpu.memory_space<vmem>>, vector<1x4x16x128xf32>
    %28 = vector.shape_cast %27 : vector<1x4x16x128xf32> to vector<4x16x128xf32>
    %29 = vector.shape_cast %28 : vector<4x16x128xf32> to vector<64x128xf32>
    %c0_15 = arith.constant 0 : index
    %c0_16 = arith.constant 0 : index
    %30 = vector.load %arg4[%c0_15, %c0_16] : memref<128x128xf32, #tpu.memory_space<vmem>>, vector<128x128xf32>
    %cst = arith.constant dense<0.000000e+00> : vector<64x128xf32>
    %31 = tpu.matmul %29, %30, %cst {dimension_numbers = #tpu.dot_dimension_numbers<[1], [0], [0], [1], [0, 0, 1, 1], [], []>} : vector<64x128xf32>, vector<128x128xf32>, vector<64x128xf32> -> vector<64x128xf32>
    %cst_17 = arith.constant 0.000000e+00 : f32
    %32 = vector.broadcast %cst_17 : f32 to vector<64x128xf32>
    %33 = arith.maximumf %31, %32 : vector<64x128xf32>
    %c0_18 = arith.constant 0 : index
    %c0_19 = arith.constant 0 : index
    %c0_20 = arith.constant 0 : index
    %34 = vector.load %arg7[%c0_18, %c0_19, %c0_20] : memref<4x128x128xf32, #tpu.memory_space<vmem>>, vector<1x128x128xf32>
    %35 = vector.shape_cast %34 : vector<1x128x128xf32> to vector<128x128xf32>
    %cst_21 = arith.constant dense<0.000000e+00> : vector<64x128xf32>
    %36 = tpu.matmul %33, %35, %cst_21 {dimension_numbers = #tpu.dot_dimension_numbers<[1], [0], [0], [1], [0, 0, 1, 1], [], []>} : vector<64x128xf32>, vector<128x128xf32>, vector<64x128xf32> -> vector<64x128xf32>
    %cst_22 = arith.constant 0.000000e+00 : f32
    %37 = vector.broadcast %cst_22 : f32 to vector<4x16x128xf32>
    %38 = arith.index_cast %11 : i32 to index
    %c2 = arith.constant 2 : index
    %c2_23 = arith.constant 2 : index
    %c0_24 = arith.constant 0 : index
    %39 = vector.load %arg12[%38, %c2, %c2_23, %c0_24] : memref<2x10x32x128xf32, #tpu.memory_space<vmem>>, vector<1x4x16x128xf32>
    %40 = vector.shape_cast %39 : vector<1x4x16x128xf32> to vector<4x16x128xf32>
    %c0_25 = arith.constant 0 : index
    %c0_26 = arith.constant 0 : index
    %c0_27 = arith.constant 0 : index
    %c0_28 = arith.constant 0 : index
    %41 = vector.load %arg5[%c0_25, %c0_26, %c0_27, %c0_28] : memref<3x9x1x128xf32, #tpu.memory_space<vmem>>, vector<1x1x1x128xf32>
    %42 = vector.shape_cast %41 : vector<1x1x1x128xf32> to vector<1x128xf32>
    %43 = vector.shape_cast %42 : vector<1x128xf32> to vector<1x1x128xf32>
    %44 = vector.broadcast %43 : vector<1x1x128xf32> to vector<4x16x128xf32>
    %45 = arith.mulf %40, %44 : vector<4x16x128xf32>
    %46 = arith.addf %37, %45 : vector<4x16x128xf32>
    %47 = arith.index_cast %11 : i32 to index
    %c2_29 = arith.constant 2 : index
    %c3_30 = arith.constant 3 : index
    %c0_31 = arith.constant 0 : index
    %48 = vector.load %arg12[%47, %c2_29, %c3_30, %c0_31] : memref<2x10x32x128xf32, #tpu.memory_space<vmem>>, vector<1x4x16x128xf32>
    %49 = vector.shape_cast %48 : vector<1x4x16x128xf32> to vector<4x16x128xf32>
    %c0_32 = arith.constant 0 : index
    %c1 = arith.constant 1 : index
    %c0_33 = arith.constant 0 : index
    %c0_34 = arith.constant 0 : index
    %50 = vector.load %arg5[%c0_32, %c1, %c0_33, %c0_34] : memref<3x9x1x128xf32, #tpu.memory_space<vmem>>, vector<1x1x1x128xf32>
    %51 = vector.shape_cast %50 : vector<1x1x1x128xf32> to vector<1x128xf32>
    %52 = vector.shape_cast %51 : vector<1x128xf32> to vector<1x1x128xf32>
    %53 = vector.broadcast %52 : vector<1x1x128xf32> to vector<4x16x128xf32>
    %54 = arith.mulf %49, %53 : vector<4x16x128xf32>
    %55 = arith.addf %46, %54 : vector<4x16x128xf32>
    %56 = arith.index_cast %11 : i32 to index
    %c2_35 = arith.constant 2 : index
    %c4 = arith.constant 4 : index
    %c0_36 = arith.constant 0 : index
    %57 = vector.load %arg12[%56, %c2_35, %c4, %c0_36] : memref<2x10x32x128xf32, #tpu.memory_space<vmem>>, vector<1x4x16x128xf32>
    %58 = vector.shape_cast %57 : vector<1x4x16x128xf32> to vector<4x16x128xf32>
    %c0_37 = arith.constant 0 : index
    %c2_38 = arith.constant 2 : index
    %c0_39 = arith.constant 0 : index
    %c0_40 = arith.constant 0 : index
    %59 = vector.load %arg5[%c0_37, %c2_38, %c0_39, %c0_40] : memref<3x9x1x128xf32, #tpu.memory_space<vmem>>, vector<1x1x1x128xf32>
    %60 = vector.shape_cast %59 : vector<1x1x1x128xf32> to vector<1x128xf32>
    %61 = vector.shape_cast %60 : vector<1x128xf32> to vector<1x1x128xf32>
    %62 = vector.broadcast %61 : vector<1x1x128xf32> to vector<4x16x128xf32>
    %63 = arith.mulf %58, %62 : vector<4x16x128xf32>
    %64 = arith.addf %55, %63 : vector<4x16x128xf32>
    %65 = arith.index_cast %11 : i32 to index
    %c3_41 = arith.constant 3 : index
    %c2_42 = arith.constant 2 : index
    %c0_43 = arith.constant 0 : index
    %66 = vector.load %arg12[%65, %c3_41, %c2_42, %c0_43] : memref<2x10x32x128xf32, #tpu.memory_space<vmem>>, vector<1x4x16x128xf32>
    %67 = vector.shape_cast %66 : vector<1x4x16x128xf32> to vector<4x16x128xf32>
    %c0_44 = arith.constant 0 : index
    %c3_45 = arith.constant 3 : index
    %c0_46 = arith.constant 0 : index
    %c0_47 = arith.constant 0 : index
    %68 = vector.load %arg5[%c0_44, %c3_45, %c0_46, %c0_47] : memref<3x9x1x128xf32, #tpu.memory_space<vmem>>, vector<1x1x1x128xf32>
    %69 = vector.shape_cast %68 : vector<1x1x1x128xf32> to vector<1x128xf32>
    %70 = vector.shape_cast %69 : vector<1x128xf32> to vector<1x1x128xf32>
    %71 = vector.broadcast %70 : vector<1x1x128xf32> to vector<4x16x128xf32>
    %72 = arith.mulf %67, %71 : vector<4x16x128xf32>
    %73 = arith.addf %64, %72 : vector<4x16x128xf32>
    %74 = arith.index_cast %11 : i32 to index
    %c3_48 = arith.constant 3 : index
    %c3_49 = arith.constant 3 : index
    %c0_50 = arith.constant 0 : index
    %75 = vector.load %arg12[%74, %c3_48, %c3_49, %c0_50] : memref<2x10x32x128xf32, #tpu.memory_space<vmem>>, vector<1x4x16x128xf32>
    %76 = vector.shape_cast %75 : vector<1x4x16x128xf32> to vector<4x16x128xf32>
    %c0_51 = arith.constant 0 : index
    %c4_52 = arith.constant 4 : index
    %c0_53 = arith.constant 0 : index
    %c0_54 = arith.constant 0 : index
    %77 = vector.load %arg5[%c0_51, %c4_52, %c0_53, %c0_54] : memref<3x9x1x128xf32, #tpu.memory_space<vmem>>, vector<1x1x1x128xf32>
    %78 = vector.shape_cast %77 : vector<1x1x1x128xf32> to vector<1x128xf32>
    %79 = vector.shape_cast %78 : vector<1x128xf32> to vector<1x1x128xf32>
    %80 = vector.broadcast %79 : vector<1x1x128xf32> to vector<4x16x128xf32>
    %81 = arith.mulf %76, %80 : vector<4x16x128xf32>
    %82 = arith.addf %73, %81 : vector<4x16x128xf32>
    %83 = arith.index_cast %11 : i32 to index
    %c3_55 = arith.constant 3 : index
    %c4_56 = arith.constant 4 : index
    %c0_57 = arith.constant 0 : index
    %84 = vector.load %arg12[%83, %c3_55, %c4_56, %c0_57] : memref<2x10x32x128xf32, #tpu.memory_space<vmem>>, vector<1x4x16x128xf32>
    %85 = vector.shape_cast %84 : vector<1x4x16x128xf32> to vector<4x16x128xf32>
    %c0_58 = arith.constant 0 : index
    %c5 = arith.constant 5 : index
    %c0_59 = arith.constant 0 : index
    %c0_60 = arith.constant 0 : index
    %86 = vector.load %arg5[%c0_58, %c5, %c0_59, %c0_60] : memref<3x9x1x128xf32, #tpu.memory_space<vmem>>, vector<1x1x1x128xf32>
    %87 = vector.shape_cast %86 : vector<1x1x1x128xf32> to vector<1x128xf32>
    %88 = vector.shape_cast %87 : vector<1x128xf32> to vector<1x1x128xf32>
    %89 = vector.broadcast %88 : vector<1x1x128xf32> to vector<4x16x128xf32>
    %90 = arith.mulf %85, %89 : vector<4x16x128xf32>
    %91 = arith.addf %82, %90 : vector<4x16x128xf32>
    %92 = arith.index_cast %11 : i32 to index
    %c4_61 = arith.constant 4 : index
    %c2_62 = arith.constant 2 : index
    %c0_63 = arith.constant 0 : index
    %93 = vector.load %arg12[%92, %c4_61, %c2_62, %c0_63] : memref<2x10x32x128xf32, #tpu.memory_space<vmem>>, vector<1x4x16x128xf32>
    %94 = vector.shape_cast %93 : vector<1x4x16x128xf32> to vector<4x16x128xf32>
    %c0_64 = arith.constant 0 : index
    %c6 = arith.constant 6 : index
    %c0_65 = arith.constant 0 : index
    %c0_66 = arith.constant 0 : index
    %95 = vector.load %arg5[%c0_64, %c6, %c0_65, %c0_66] : memref<3x9x1x128xf32, #tpu.memory_space<vmem>>, vector<1x1x1x128xf32>
    %96 = vector.shape_cast %95 : vector<1x1x1x128xf32> to vector<1x128xf32>
    %97 = vector.shape_cast %96 : vector<1x128xf32> to vector<1x1x128xf32>
    %98 = vector.broadcast %97 : vector<1x1x128xf32> to vector<4x16x128xf32>
    %99 = arith.mulf %94, %98 : vector<4x16x128xf32>
    %100 = arith.addf %91, %99 : vector<4x16x128xf32>
    %101 = arith.index_cast %11 : i32 to index
    %c4_67 = arith.constant 4 : index
    %c3_68 = arith.constant 3 : index
    %c0_69 = arith.constant 0 : index
    %102 = vector.load %arg12[%101, %c4_67, %c3_68, %c0_69] : memref<2x10x32x128xf32, #tpu.memory_space<vmem>>, vector<1x4x16x128xf32>
    %103 = vector.shape_cast %102 : vector<1x4x16x128xf32> to vector<4x16x128xf32>
    %c0_70 = arith.constant 0 : index
    %c7 = arith.constant 7 : index
    %c0_71 = arith.constant 0 : index
    %c0_72 = arith.constant 0 : index
    %104 = vector.load %arg5[%c0_70, %c7, %c0_71, %c0_72] : memref<3x9x1x128xf32, #tpu.memory_space<vmem>>, vector<1x1x1x128xf32>
    %105 = vector.shape_cast %104 : vector<1x1x1x128xf32> to vector<1x128xf32>
    %106 = vector.shape_cast %105 : vector<1x128xf32> to vector<1x1x128xf32>
    %107 = vector.broadcast %106 : vector<1x1x128xf32> to vector<4x16x128xf32>
    %108 = arith.mulf %103, %107 : vector<4x16x128xf32>
    %109 = arith.addf %100, %108 : vector<4x16x128xf32>
    %110 = arith.index_cast %11 : i32 to index
    %c4_73 = arith.constant 4 : index
    %c4_74 = arith.constant 4 : index
    %c0_75 = arith.constant 0 : index
    %111 = vector.load %arg12[%110, %c4_73, %c4_74, %c0_75] : memref<2x10x32x128xf32, #tpu.memory_space<vmem>>, vector<1x4x16x128xf32>
    %112 = vector.shape_cast %111 : vector<1x4x16x128xf32> to vector<4x16x128xf32>
    %c0_76 = arith.constant 0 : index
    %c8 = arith.constant 8 : index
    %c0_77 = arith.constant 0 : index
    %c0_78 = arith.constant 0 : index
    %113 = vector.load %arg5[%c0_76, %c8, %c0_77, %c0_78] : memref<3x9x1x128xf32, #tpu.memory_space<vmem>>, vector<1x1x1x128xf32>
    %114 = vector.shape_cast %113 : vector<1x1x1x128xf32> to vector<1x128xf32>
    %115 = vector.shape_cast %114 : vector<1x128xf32> to vector<1x1x128xf32>
    %116 = vector.broadcast %115 : vector<1x1x128xf32> to vector<4x16x128xf32>
    %117 = arith.mulf %112, %116 : vector<4x16x128xf32>
    %118 = arith.addf %109, %117 : vector<4x16x128xf32>
    %119 = vector.shape_cast %118 : vector<4x16x128xf32> to vector<64x128xf32>
    %c0_79 = arith.constant 0 : index
    %c0_80 = arith.constant 0 : index
    %c0_81 = arith.constant 0 : index
    %120 = vector.load %arg6[%c0_79, %c0_80, %c0_81] : memref<3x128x128xf32, #tpu.memory_space<vmem>>, vector<1x128x128xf32>
    %121 = vector.shape_cast %120 : vector<1x128x128xf32> to vector<128x128xf32>
    %cst_82 = arith.constant dense<0.000000e+00> : vector<64x128xf32>
    %122 = tpu.matmul %119, %121, %cst_82 {dimension_numbers = #tpu.dot_dimension_numbers<[1], [0], [0], [1], [0, 0, 1, 1], [], []>} : vector<64x128xf32>, vector<128x128xf32>, vector<64x128xf32> -> vector<64x128xf32>
    %cst_83 = arith.constant 0.000000e+00 : f32
    %123 = vector.broadcast %cst_83 : f32 to vector<64x128xf32>
    %124 = arith.maximumf %122, %123 : vector<64x128xf32>
    %c1_84 = arith.constant 1 : index
    %c0_85 = arith.constant 0 : index
    %c0_86 = arith.constant 0 : index
    %125 = vector.load %arg7[%c1_84, %c0_85, %c0_86] : memref<4x128x128xf32, #tpu.memory_space<vmem>>, vector<1x128x128xf32>
    %126 = vector.shape_cast %125 : vector<1x128x128xf32> to vector<128x128xf32>
    %cst_87 = arith.constant dense<0.000000e+00> : vector<64x128xf32>
    %127 = tpu.matmul %124, %126, %cst_87 {dimension_numbers = #tpu.dot_dimension_numbers<[1], [0], [0], [1], [0, 0, 1, 1], [], []>} : vector<64x128xf32>, vector<128x128xf32>, vector<64x128xf32> -> vector<64x128xf32>
    %128 = arith.addf %36, %127 : vector<64x128xf32>
    %cst_88 = arith.constant 0.000000e+00 : f32
    %129 = vector.broadcast %cst_88 : f32 to vector<4x16x128xf32>
    %130 = arith.index_cast %11 : i32 to index
    %c1_89 = arith.constant 1 : index
    %c1_90 = arith.constant 1 : index
    %c0_91 = arith.constant 0 : index
    %131 = vector.load %arg12[%130, %c1_89, %c1_90, %c0_91] : memref<2x10x32x128xf32, #tpu.memory_space<vmem>>, vector<1x4x16x128xf32>
    %132 = vector.shape_cast %131 : vector<1x4x16x128xf32> to vector<4x16x128xf32>
    %c1_92 = arith.constant 1 : index
    %c0_93 = arith.constant 0 : index
    %c0_94 = arith.constant 0 : index
    %c0_95 = arith.constant 0 : index
    %133 = vector.load %arg5[%c1_92, %c0_93, %c0_94, %c0_95] : memref<3x9x1x128xf32, #tpu.memory_space<vmem>>, vector<1x1x1x128xf32>
    %134 = vector.shape_cast %133 : vector<1x1x1x128xf32> to vector<1x128xf32>
    %135 = vector.shape_cast %134 : vector<1x128xf32> to vector<1x1x128xf32>
    %136 = vector.broadcast %135 : vector<1x1x128xf32> to vector<4x16x128xf32>
    %137 = arith.mulf %132, %136 : vector<4x16x128xf32>
    %138 = arith.addf %129, %137 : vector<4x16x128xf32>
    %139 = arith.index_cast %11 : i32 to index
    %c1_96 = arith.constant 1 : index
    %c3_97 = arith.constant 3 : index
    %c0_98 = arith.constant 0 : index
    %140 = vector.load %arg12[%139, %c1_96, %c3_97, %c0_98] : memref<2x10x32x128xf32, #tpu.memory_space<vmem>>, vector<1x4x16x128xf32>
    %141 = vector.shape_cast %140 : vector<1x4x16x128xf32> to vector<4x16x128xf32>
    %c1_99 = arith.constant 1 : index
    %c1_100 = arith.constant 1 : index
    %c0_101 = arith.constant 0 : index
    %c0_102 = arith.constant 0 : index
    %142 = vector.load %arg5[%c1_99, %c1_100, %c0_101, %c0_102] : memref<3x9x1x128xf32, #tpu.memory_space<vmem>>, vector<1x1x1x128xf32>
    %143 = vector.shape_cast %142 : vector<1x1x1x128xf32> to vector<1x128xf32>
    %144 = vector.shape_cast %143 : vector<1x128xf32> to vector<1x1x128xf32>
    %145 = vector.broadcast %144 : vector<1x1x128xf32> to vector<4x16x128xf32>
    %146 = arith.mulf %141, %145 : vector<4x16x128xf32>
    %147 = arith.addf %138, %146 : vector<4x16x128xf32>
    %148 = arith.index_cast %11 : i32 to index
    %c1_103 = arith.constant 1 : index
    %c5_104 = arith.constant 5 : index
    %c0_105 = arith.constant 0 : index
    %149 = vector.load %arg12[%148, %c1_103, %c5_104, %c0_105] : memref<2x10x32x128xf32, #tpu.memory_space<vmem>>, vector<1x4x16x128xf32>
    %150 = vector.shape_cast %149 : vector<1x4x16x128xf32> to vector<4x16x128xf32>
    %c1_106 = arith.constant 1 : index
    %c2_107 = arith.constant 2 : index
    %c0_108 = arith.constant 0 : index
    %c0_109 = arith.constant 0 : index
    %151 = vector.load %arg5[%c1_106, %c2_107, %c0_108, %c0_109] : memref<3x9x1x128xf32, #tpu.memory_space<vmem>>, vector<1x1x1x128xf32>
    %152 = vector.shape_cast %151 : vector<1x1x1x128xf32> to vector<1x128xf32>
    %153 = vector.shape_cast %152 : vector<1x128xf32> to vector<1x1x128xf32>
    %154 = vector.broadcast %153 : vector<1x1x128xf32> to vector<4x16x128xf32>
    %155 = arith.mulf %150, %154 : vector<4x16x128xf32>
    %156 = arith.addf %147, %155 : vector<4x16x128xf32>
    %157 = arith.index_cast %11 : i32 to index
    %c3_110 = arith.constant 3 : index
    %c1_111 = arith.constant 1 : index
    %c0_112 = arith.constant 0 : index
    %158 = vector.load %arg12[%157, %c3_110, %c1_111, %c0_112] : memref<2x10x32x128xf32, #tpu.memory_space<vmem>>, vector<1x4x16x128xf32>
    %159 = vector.shape_cast %158 : vector<1x4x16x128xf32> to vector<4x16x128xf32>
    %c1_113 = arith.constant 1 : index
    %c3_114 = arith.constant 3 : index
    %c0_115 = arith.constant 0 : index
    %c0_116 = arith.constant 0 : index
    %160 = vector.load %arg5[%c1_113, %c3_114, %c0_115, %c0_116] : memref<3x9x1x128xf32, #tpu.memory_space<vmem>>, vector<1x1x1x128xf32>
    %161 = vector.shape_cast %160 : vector<1x1x1x128xf32> to vector<1x128xf32>
    %162 = vector.shape_cast %161 : vector<1x128xf32> to vector<1x1x128xf32>
    %163 = vector.broadcast %162 : vector<1x1x128xf32> to vector<4x16x128xf32>
    %164 = arith.mulf %159, %163 : vector<4x16x128xf32>
    %165 = arith.addf %156, %164 : vector<4x16x128xf32>
    %166 = arith.index_cast %11 : i32 to index
    %c3_117 = arith.constant 3 : index
    %c3_118 = arith.constant 3 : index
    %c0_119 = arith.constant 0 : index
    %167 = vector.load %arg12[%166, %c3_117, %c3_118, %c0_119] : memref<2x10x32x128xf32, #tpu.memory_space<vmem>>, vector<1x4x16x128xf32>
    %168 = vector.shape_cast %167 : vector<1x4x16x128xf32> to vector<4x16x128xf32>
    %c1_120 = arith.constant 1 : index
    %c4_121 = arith.constant 4 : index
    %c0_122 = arith.constant 0 : index
    %c0_123 = arith.constant 0 : index
    %169 = vector.load %arg5[%c1_120, %c4_121, %c0_122, %c0_123] : memref<3x9x1x128xf32, #tpu.memory_space<vmem>>, vector<1x1x1x128xf32>
    %170 = vector.shape_cast %169 : vector<1x1x1x128xf32> to vector<1x128xf32>
    %171 = vector.shape_cast %170 : vector<1x128xf32> to vector<1x1x128xf32>
    %172 = vector.broadcast %171 : vector<1x1x128xf32> to vector<4x16x128xf32>
    %173 = arith.mulf %168, %172 : vector<4x16x128xf32>
    %174 = arith.addf %165, %173 : vector<4x16x128xf32>
    %175 = arith.index_cast %11 : i32 to index
    %c3_124 = arith.constant 3 : index
    %c5_125 = arith.constant 5 : index
    %c0_126 = arith.constant 0 : index
    %176 = vector.load %arg12[%175, %c3_124, %c5_125, %c0_126] : memref<2x10x32x128xf32, #tpu.memory_space<vmem>>, vector<1x4x16x128xf32>
    %177 = vector.shape_cast %176 : vector<1x4x16x128xf32> to vector<4x16x128xf32>
    %c1_127 = arith.constant 1 : index
    %c5_128 = arith.constant 5 : index
    %c0_129 = arith.constant 0 : index
    %c0_130 = arith.constant 0 : index
    %178 = vector.load %arg5[%c1_127, %c5_128, %c0_129, %c0_130] : memref<3x9x1x128xf32, #tpu.memory_space<vmem>>, vector<1x1x1x128xf32>
    %179 = vector.shape_cast %178 : vector<1x1x1x128xf32> to vector<1x128xf32>
    %180 = vector.shape_cast %179 : vector<1x128xf32> to vector<1x1x128xf32>
    %181 = vector.broadcast %180 : vector<1x1x128xf32> to vector<4x16x128xf32>
    %182 = arith.mulf %177, %181 : vector<4x16x128xf32>
    %183 = arith.addf %174, %182 : vector<4x16x128xf32>
    %184 = arith.index_cast %11 : i32 to index
    %c5_131 = arith.constant 5 : index
    %c1_132 = arith.constant 1 : index
    %c0_133 = arith.constant 0 : index
    %185 = vector.load %arg12[%184, %c5_131, %c1_132, %c0_133] : memref<2x10x32x128xf32, #tpu.memory_space<vmem>>, vector<1x4x16x128xf32>
    %186 = vector.shape_cast %185 : vector<1x4x16x128xf32> to vector<4x16x128xf32>
    %c1_134 = arith.constant 1 : index
    %c6_135 = arith.constant 6 : index
    %c0_136 = arith.constant 0 : index
    %c0_137 = arith.constant 0 : index
    %187 = vector.load %arg5[%c1_134, %c6_135, %c0_136, %c0_137] : memref<3x9x1x128xf32, #tpu.memory_space<vmem>>, vector<1x1x1x128xf32>
    %188 = vector.shape_cast %187 : vector<1x1x1x128xf32> to vector<1x128xf32>
    %189 = vector.shape_cast %188 : vector<1x128xf32> to vector<1x1x128xf32>
    %190 = vector.broadcast %189 : vector<1x1x128xf32> to vector<4x16x128xf32>
    %191 = arith.mulf %186, %190 : vector<4x16x128xf32>
    %192 = arith.addf %183, %191 : vector<4x16x128xf32>
    %193 = arith.index_cast %11 : i32 to index
    %c5_138 = arith.constant 5 : index
    %c3_139 = arith.constant 3 : index
    %c0_140 = arith.constant 0 : index
    %194 = vector.load %arg12[%193, %c5_138, %c3_139, %c0_140] : memref<2x10x32x128xf32, #tpu.memory_space<vmem>>, vector<1x4x16x128xf32>
    %195 = vector.shape_cast %194 : vector<1x4x16x128xf32> to vector<4x16x128xf32>
    %c1_141 = arith.constant 1 : index
    %c7_142 = arith.constant 7 : index
    %c0_143 = arith.constant 0 : index
    %c0_144 = arith.constant 0 : index
    %196 = vector.load %arg5[%c1_141, %c7_142, %c0_143, %c0_144] : memref<3x9x1x128xf32, #tpu.memory_space<vmem>>, vector<1x1x1x128xf32>
    %197 = vector.shape_cast %196 : vector<1x1x1x128xf32> to vector<1x128xf32>
    %198 = vector.shape_cast %197 : vector<1x128xf32> to vector<1x1x128xf32>
    %199 = vector.broadcast %198 : vector<1x1x128xf32> to vector<4x16x128xf32>
    %200 = arith.mulf %195, %199 : vector<4x16x128xf32>
    %201 = arith.addf %192, %200 : vector<4x16x128xf32>
    %202 = arith.index_cast %11 : i32 to index
    %c5_145 = arith.constant 5 : index
    %c5_146 = arith.constant 5 : index
    %c0_147 = arith.constant 0 : index
    %203 = vector.load %arg12[%202, %c5_145, %c5_146, %c0_147] : memref<2x10x32x128xf32, #tpu.memory_space<vmem>>, vector<1x4x16x128xf32>
    %204 = vector.shape_cast %203 : vector<1x4x16x128xf32> to vector<4x16x128xf32>
    %c1_148 = arith.constant 1 : index
    %c8_149 = arith.constant 8 : index
    %c0_150 = arith.constant 0 : index
    %c0_151 = arith.constant 0 : index
    %205 = vector.load %arg5[%c1_148, %c8_149, %c0_150, %c0_151] : memref<3x9x1x128xf32, #tpu.memory_space<vmem>>, vector<1x1x1x128xf32>
    %206 = vector.shape_cast %205 : vector<1x1x1x128xf32> to vector<1x128xf32>
    %207 = vector.shape_cast %206 : vector<1x128xf32> to vector<1x1x128xf32>
    %208 = vector.broadcast %207 : vector<1x1x128xf32> to vector<4x16x128xf32>
    %209 = arith.mulf %204, %208 : vector<4x16x128xf32>
    %210 = arith.addf %201, %209 : vector<4x16x128xf32>
    %211 = vector.shape_cast %210 : vector<4x16x128xf32> to vector<64x128xf32>
    %c1_152 = arith.constant 1 : index
    %c0_153 = arith.constant 0 : index
    %c0_154 = arith.constant 0 : index
    %212 = vector.load %arg6[%c1_152, %c0_153, %c0_154] : memref<3x128x128xf32, #tpu.memory_space<vmem>>, vector<1x128x128xf32>
    %213 = vector.shape_cast %212 : vector<1x128x128xf32> to vector<128x128xf32>
    %cst_155 = arith.constant dense<0.000000e+00> : vector<64x128xf32>
    %214 = tpu.matmul %211, %213, %cst_155 {dimension_numbers = #tpu.dot_dimension_numbers<[1], [0], [0], [1], [0, 0, 1, 1], [], []>} : vector<64x128xf32>, vector<128x128xf32>, vector<64x128xf32> -> vector<64x128xf32>
    %cst_156 = arith.constant 0.000000e+00 : f32
    %215 = vector.broadcast %cst_156 : f32 to vector<64x128xf32>
    %216 = arith.maximumf %214, %215 : vector<64x128xf32>
    %c2_157 = arith.constant 2 : index
    %c0_158 = arith.constant 0 : index
    %c0_159 = arith.constant 0 : index
    %217 = vector.load %arg7[%c2_157, %c0_158, %c0_159] : memref<4x128x128xf32, #tpu.memory_space<vmem>>, vector<1x128x128xf32>
    %218 = vector.shape_cast %217 : vector<1x128x128xf32> to vector<128x128xf32>
    %cst_160 = arith.constant dense<0.000000e+00> : vector<64x128xf32>
    %219 = tpu.matmul %216, %218, %cst_160 {dimension_numbers = #tpu.dot_dimension_numbers<[1], [0], [0], [1], [0, 0, 1, 1], [], []>} : vector<64x128xf32>, vector<128x128xf32>, vector<64x128xf32> -> vector<64x128xf32>
    %220 = arith.addf %128, %219 : vector<64x128xf32>
    %cst_161 = arith.constant 0.000000e+00 : f32
    %221 = vector.broadcast %cst_161 : f32 to vector<4x16x128xf32>
    %222 = arith.index_cast %11 : i32 to index
    %c0_162 = arith.constant 0 : index
    %c0_163 = arith.constant 0 : index
    %c0_164 = arith.constant 0 : index
    %223 = vector.load %arg12[%222, %c0_162, %c0_163, %c0_164] : memref<2x10x32x128xf32, #tpu.memory_space<vmem>>, vector<1x4x16x128xf32>
    %224 = vector.shape_cast %223 : vector<1x4x16x128xf32> to vector<4x16x128xf32>
    %c2_165 = arith.constant 2 : index
    %c0_166 = arith.constant 0 : index
    %c0_167 = arith.constant 0 : index
    %c0_168 = arith.constant 0 : index
    %225 = vector.load %arg5[%c2_165, %c0_166, %c0_167, %c0_168] : memref<3x9x1x128xf32, #tpu.memory_space<vmem>>, vector<1x1x1x128xf32>
    %226 = vector.shape_cast %225 : vector<1x1x1x128xf32> to vector<1x128xf32>
    %227 = vector.shape_cast %226 : vector<1x128xf32> to vector<1x1x128xf32>
    %228 = vector.broadcast %227 : vector<1x1x128xf32> to vector<4x16x128xf32>
    %229 = arith.mulf %224, %228 : vector<4x16x128xf32>
    %230 = arith.addf %221, %229 : vector<4x16x128xf32>
    %231 = arith.index_cast %11 : i32 to index
    %c0_169 = arith.constant 0 : index
    %c3_170 = arith.constant 3 : index
    %c0_171 = arith.constant 0 : index
    %232 = vector.load %arg12[%231, %c0_169, %c3_170, %c0_171] : memref<2x10x32x128xf32, #tpu.memory_space<vmem>>, vector<1x4x16x128xf32>
    %233 = vector.shape_cast %232 : vector<1x4x16x128xf32> to vector<4x16x128xf32>
    %c2_172 = arith.constant 2 : index
    %c1_173 = arith.constant 1 : index
    %c0_174 = arith.constant 0 : index
    %c0_175 = arith.constant 0 : index
    %234 = vector.load %arg5[%c2_172, %c1_173, %c0_174, %c0_175] : memref<3x9x1x128xf32, #tpu.memory_space<vmem>>, vector<1x1x1x128xf32>
    %235 = vector.shape_cast %234 : vector<1x1x1x128xf32> to vector<1x128xf32>
    %236 = vector.shape_cast %235 : vector<1x128xf32> to vector<1x1x128xf32>
    %237 = vector.broadcast %236 : vector<1x1x128xf32> to vector<4x16x128xf32>
    %238 = arith.mulf %233, %237 : vector<4x16x128xf32>
    %239 = arith.addf %230, %238 : vector<4x16x128xf32>
    %240 = arith.index_cast %11 : i32 to index
    %c0_176 = arith.constant 0 : index
    %c6_177 = arith.constant 6 : index
    %c0_178 = arith.constant 0 : index
    %241 = vector.load %arg12[%240, %c0_176, %c6_177, %c0_178] : memref<2x10x32x128xf32, #tpu.memory_space<vmem>>, vector<1x4x16x128xf32>
    %242 = vector.shape_cast %241 : vector<1x4x16x128xf32> to vector<4x16x128xf32>
    %c2_179 = arith.constant 2 : index
    %c2_180 = arith.constant 2 : index
    %c0_181 = arith.constant 0 : index
    %c0_182 = arith.constant 0 : index
    %243 = vector.load %arg5[%c2_179, %c2_180, %c0_181, %c0_182] : memref<3x9x1x128xf32, #tpu.memory_space<vmem>>, vector<1x1x1x128xf32>
    %244 = vector.shape_cast %243 : vector<1x1x1x128xf32> to vector<1x128xf32>
    %245 = vector.shape_cast %244 : vector<1x128xf32> to vector<1x1x128xf32>
    %246 = vector.broadcast %245 : vector<1x1x128xf32> to vector<4x16x128xf32>
    %247 = arith.mulf %242, %246 : vector<4x16x128xf32>
    %248 = arith.addf %239, %247 : vector<4x16x128xf32>
    %249 = arith.index_cast %11 : i32 to index
    %c3_183 = arith.constant 3 : index
    %c0_184 = arith.constant 0 : index
    %c0_185 = arith.constant 0 : index
    %250 = vector.load %arg12[%249, %c3_183, %c0_184, %c0_185] : memref<2x10x32x128xf32, #tpu.memory_space<vmem>>, vector<1x4x16x128xf32>
    %251 = vector.shape_cast %250 : vector<1x4x16x128xf32> to vector<4x16x128xf32>
    %c2_186 = arith.constant 2 : index
    %c3_187 = arith.constant 3 : index
    %c0_188 = arith.constant 0 : index
    %c0_189 = arith.constant 0 : index
    %252 = vector.load %arg5[%c2_186, %c3_187, %c0_188, %c0_189] : memref<3x9x1x128xf32, #tpu.memory_space<vmem>>, vector<1x1x1x128xf32>
    %253 = vector.shape_cast %252 : vector<1x1x1x128xf32> to vector<1x128xf32>
    %254 = vector.shape_cast %253 : vector<1x128xf32> to vector<1x1x128xf32>
    %255 = vector.broadcast %254 : vector<1x1x128xf32> to vector<4x16x128xf32>
    %256 = arith.mulf %251, %255 : vector<4x16x128xf32>
    %257 = arith.addf %248, %256 : vector<4x16x128xf32>
    %258 = arith.index_cast %11 : i32 to index
    %c3_190 = arith.constant 3 : index
    %c3_191 = arith.constant 3 : index
    %c0_192 = arith.constant 0 : index
    %259 = vector.load %arg12[%258, %c3_190, %c3_191, %c0_192] : memref<2x10x32x128xf32, #tpu.memory_space<vmem>>, vector<1x4x16x128xf32>
    %260 = vector.shape_cast %259 : vector<1x4x16x128xf32> to vector<4x16x128xf32>
    %c2_193 = arith.constant 2 : index
    %c4_194 = arith.constant 4 : index
    %c0_195 = arith.constant 0 : index
    %c0_196 = arith.constant 0 : index
    %261 = vector.load %arg5[%c2_193, %c4_194, %c0_195, %c0_196] : memref<3x9x1x128xf32, #tpu.memory_space<vmem>>, vector<1x1x1x128xf32>
    %262 = vector.shape_cast %261 : vector<1x1x1x128xf32> to vector<1x128xf32>
    %263 = vector.shape_cast %262 : vector<1x128xf32> to vector<1x1x128xf32>
    %264 = vector.broadcast %263 : vector<1x1x128xf32> to vector<4x16x128xf32>
    %265 = arith.mulf %260, %264 : vector<4x16x128xf32>
    %266 = arith.addf %257, %265 : vector<4x16x128xf32>
    %267 = arith.index_cast %11 : i32 to index
    %c3_197 = arith.constant 3 : index
    %c6_198 = arith.constant 6 : index
    %c0_199 = arith.constant 0 : index
    %268 = vector.load %arg12[%267, %c3_197, %c6_198, %c0_199] : memref<2x10x32x128xf32, #tpu.memory_space<vmem>>, vector<1x4x16x128xf32>
    %269 = vector.shape_cast %268 : vector<1x4x16x128xf32> to vector<4x16x128xf32>
    %c2_200 = arith.constant 2 : index
    %c5_201 = arith.constant 5 : index
    %c0_202 = arith.constant 0 : index
    %c0_203 = arith.constant 0 : index
    %270 = vector.load %arg5[%c2_200, %c5_201, %c0_202, %c0_203] : memref<3x9x1x128xf32, #tpu.memory_space<vmem>>, vector<1x1x1x128xf32>
    %271 = vector.shape_cast %270 : vector<1x1x1x128xf32> to vector<1x128xf32>
    %272 = vector.shape_cast %271 : vector<1x128xf32> to vector<1x1x128xf32>
    %273 = vector.broadcast %272 : vector<1x1x128xf32> to vector<4x16x128xf32>
    %274 = arith.mulf %269, %273 : vector<4x16x128xf32>
    %275 = arith.addf %266, %274 : vector<4x16x128xf32>
    %276 = arith.index_cast %11 : i32 to index
    %c6_204 = arith.constant 6 : index
    %c0_205 = arith.constant 0 : index
    %c0_206 = arith.constant 0 : index
    %277 = vector.load %arg12[%276, %c6_204, %c0_205, %c0_206] : memref<2x10x32x128xf32, #tpu.memory_space<vmem>>, vector<1x4x16x128xf32>
    %278 = vector.shape_cast %277 : vector<1x4x16x128xf32> to vector<4x16x128xf32>
    %c2_207 = arith.constant 2 : index
    %c6_208 = arith.constant 6 : index
    %c0_209 = arith.constant 0 : index
    %c0_210 = arith.constant 0 : index
    %279 = vector.load %arg5[%c2_207, %c6_208, %c0_209, %c0_210] : memref<3x9x1x128xf32, #tpu.memory_space<vmem>>, vector<1x1x1x128xf32>
    %280 = vector.shape_cast %279 : vector<1x1x1x128xf32> to vector<1x128xf32>
    %281 = vector.shape_cast %280 : vector<1x128xf32> to vector<1x1x128xf32>
    %282 = vector.broadcast %281 : vector<1x1x128xf32> to vector<4x16x128xf32>
    %283 = arith.mulf %278, %282 : vector<4x16x128xf32>
    %284 = arith.addf %275, %283 : vector<4x16x128xf32>
    %285 = arith.index_cast %11 : i32 to index
    %c6_211 = arith.constant 6 : index
    %c3_212 = arith.constant 3 : index
    %c0_213 = arith.constant 0 : index
    %286 = vector.load %arg12[%285, %c6_211, %c3_212, %c0_213] : memref<2x10x32x128xf32, #tpu.memory_space<vmem>>, vector<1x4x16x128xf32>
    %287 = vector.shape_cast %286 : vector<1x4x16x128xf32> to vector<4x16x128xf32>
    %c2_214 = arith.constant 2 : index
    %c7_215 = arith.constant 7 : index
    %c0_216 = arith.constant 0 : index
    %c0_217 = arith.constant 0 : index
    %288 = vector.load %arg5[%c2_214, %c7_215, %c0_216, %c0_217] : memref<3x9x1x128xf32, #tpu.memory_space<vmem>>, vector<1x1x1x128xf32>
    %289 = vector.shape_cast %288 : vector<1x1x1x128xf32> to vector<1x128xf32>
    %290 = vector.shape_cast %289 : vector<1x128xf32> to vector<1x1x128xf32>
    %291 = vector.broadcast %290 : vector<1x1x128xf32> to vector<4x16x128xf32>
    %292 = arith.mulf %287, %291 : vector<4x16x128xf32>
    %293 = arith.addf %284, %292 : vector<4x16x128xf32>
    %294 = arith.index_cast %11 : i32 to index
    %c6_218 = arith.constant 6 : index
    %c6_219 = arith.constant 6 : index
    %c0_220 = arith.constant 0 : index
    %295 = vector.load %arg12[%294, %c6_218, %c6_219, %c0_220] : memref<2x10x32x128xf32, #tpu.memory_space<vmem>>, vector<1x4x16x128xf32>
    %296 = vector.shape_cast %295 : vector<1x4x16x128xf32> to vector<4x16x128xf32>
    %c2_221 = arith.constant 2 : index
    %c8_222 = arith.constant 8 : index
    %c0_223 = arith.constant 0 : index
    %c0_224 = arith.constant 0 : index
    %297 = vector.load %arg5[%c2_221, %c8_222, %c0_223, %c0_224] : memref<3x9x1x128xf32, #tpu.memory_space<vmem>>, vector<1x1x1x128xf32>
    %298 = vector.shape_cast %297 : vector<1x1x1x128xf32> to vector<1x128xf32>
    %299 = vector.shape_cast %298 : vector<1x128xf32> to vector<1x1x128xf32>
    %300 = vector.broadcast %299 : vector<1x1x128xf32> to vector<4x16x128xf32>
    %301 = arith.mulf %296, %300 : vector<4x16x128xf32>
    %302 = arith.addf %293, %301 : vector<4x16x128xf32>
    %303 = vector.shape_cast %302 : vector<4x16x128xf32> to vector<64x128xf32>
    %c2_225 = arith.constant 2 : index
    %c0_226 = arith.constant 0 : index
    %c0_227 = arith.constant 0 : index
    %304 = vector.load %arg6[%c2_225, %c0_226, %c0_227] : memref<3x128x128xf32, #tpu.memory_space<vmem>>, vector<1x128x128xf32>
    %305 = vector.shape_cast %304 : vector<1x128x128xf32> to vector<128x128xf32>
    %cst_228 = arith.constant dense<0.000000e+00> : vector<64x128xf32>
    %306 = tpu.matmul %303, %305, %cst_228 {dimension_numbers = #tpu.dot_dimension_numbers<[1], [0], [0], [1], [0, 0, 1, 1], [], []>} : vector<64x128xf32>, vector<128x128xf32>, vector<64x128xf32> -> vector<64x128xf32>
    %cst_229 = arith.constant 0.000000e+00 : f32
    %307 = vector.broadcast %cst_229 : f32 to vector<64x128xf32>
    %308 = arith.maximumf %306, %307 : vector<64x128xf32>
    %c3_230 = arith.constant 3 : index
    %c0_231 = arith.constant 0 : index
    %c0_232 = arith.constant 0 : index
    %309 = vector.load %arg7[%c3_230, %c0_231, %c0_232] : memref<4x128x128xf32, #tpu.memory_space<vmem>>, vector<1x128x128xf32>
    %310 = vector.shape_cast %309 : vector<1x128x128xf32> to vector<128x128xf32>
    %cst_233 = arith.constant dense<0.000000e+00> : vector<64x128xf32>
    %311 = tpu.matmul %308, %310, %cst_233 {dimension_numbers = #tpu.dot_dimension_numbers<[1], [0], [0], [1], [0, 0, 1, 1], [], []>} : vector<64x128xf32>, vector<128x128xf32>, vector<64x128xf32> -> vector<64x128xf32>
    %312 = arith.addf %220, %311 : vector<64x128xf32>
    %c0_234 = arith.constant 0 : index
    %c0_235 = arith.constant 0 : index
    %c0_236 = arith.constant 0 : index
    %313 = vector.load %arg8[%c0_234, %c0_235, %c0_236] : memref<1x1x128xf32, #tpu.memory_space<vmem>>, vector<1x1x128xf32>
    %314 = vector.shape_cast %313 : vector<1x1x128xf32> to vector<1x128xf32>
    %315 = vector.broadcast %314 : vector<1x128xf32> to vector<64x128xf32>
    %316 = arith.addf %312, %315 : vector<64x128xf32>
    %cst_237 = arith.constant 0.000000e+00 : f32
    %317 = vector.broadcast %cst_237 : f32 to vector<64x128xf32>
    %318 = arith.maximumf %316, %317 : vector<64x128xf32>
    %c0_238 = arith.constant 0 : index
    %c0_239 = arith.constant 0 : index
    %319 = vector.load %arg9[%c0_238, %c0_239] : memref<1x128xf32, #tpu.memory_space<vmem>>, vector<1x128xf32>
    %320 = vector.broadcast %319 : vector<1x128xf32> to vector<64x128xf32>
    %321 = arith.mulf %318, %320 : vector<64x128xf32>
    %c0_240 = arith.constant 0 : index
    %c0_241 = arith.constant 0 : index
    %322 = vector.load %arg10[%c0_240, %c0_241] : memref<1x128xf32, #tpu.memory_space<vmem>>, vector<1x128xf32>
    %323 = vector.broadcast %322 : vector<1x128xf32> to vector<64x128xf32>
    %324 = arith.addf %321, %323 : vector<64x128xf32>
    %c0_242 = arith.constant 0 : index
    %c0_243 = arith.constant 0 : index
    %325 = vector.load %arg11[%c0_242, %c0_243] : memref<64x128xf32, #tpu.memory_space<vmem>>, vector<64x128xf32>
    tpu.vector_store %arg11[%c0_242, %c0_243], %324 {strides = array<i32>} : memref<64x128xf32, #tpu.memory_space<vmem>>, vector<64x128xf32>,
    return
  }
  func.func @transform_1(%arg0: i32, %arg1: i32, %arg2: i32) -> (i32, i32) {
    %c0_i32 = arith.constant 0 : i32
    %c0_i32_0 = arith.constant 0 : i32
    %c0_i32_1 = arith.constant 0 : i32
    return %c0_i32, %c0_i32_0 : i32, i32
  }
  func.func @transform_2(%arg0: i32, %arg1: i32, %arg2: i32) -> (i32, i32, i32, i32) {
    %c0_i32 = arith.constant 0 : i32
    %c0_i32_0 = arith.constant 0 : i32
    %c0_i32_1 = arith.constant 0 : i32
    %c0_i32_2 = arith.constant 0 : i32
    %c0_i32_3 = arith.constant 0 : i32
    return %c0_i32, %c0_i32_0, %c0_i32_1, %c0_i32_2 : i32, i32, i32, i32
  }
  func.func @transform_3(%arg0: i32, %arg1: i32, %arg2: i32) -> (i32, i32, i32) {
    %c0_i32 = arith.constant 0 : i32
    %c0_i32_0 = arith.constant 0 : i32
    %c0_i32_1 = arith.constant 0 : i32
    %c0_i32_2 = arith.constant 0 : i32
    return %c0_i32, %c0_i32_0, %c0_i32_1 : i32, i32, i32
  }
  func.func @transform_4(%arg0: i32, %arg1: i32, %arg2: i32) -> (i32, i32, i32) {
    %c0_i32 = arith.constant 0 : i32
    %c0_i32_0 = arith.constant 0 : i32
    %c0_i32_1 = arith.constant 0 : i32
    %c0_i32_2 = arith.constant 0 : i32
    return %c0_i32, %c0_i32_0, %c0_i32_1 : i32, i32, i32
  }
  func.func @transform_5(%arg0: i32, %arg1: i32, %arg2: i32) -> (i32, i32, i32) {
    %c0_i32 = arith.constant 0 : i32
    %c0_i32_0 = arith.constant 0 : i32
    %c0_i32_1 = arith.constant 0 : i32
    return %arg0, %c0_i32, %c0_i32_0 : i32, i32, i32
  }
  func.func @transform_6(%arg0: i32, %arg1: i32, %arg2: i32) -> (i32, i32) {
    %c0_i32 = arith.constant 0 : i32
    %c0_i32_0 = arith.constant 0 : i32
    %c0_i32_1 = arith.constant 0 : i32
    return %c0_i32, %c0_i32_0 : i32, i32
  }
  func.func @transform_7(%arg0: i32, %arg1: i32, %arg2: i32) -> (i32, i32) {
    %c0_i32 = arith.constant 0 : i32
    %c0_i32_0 = arith.constant 0 : i32
    %c0_i32_1 = arith.constant 0 : i32
    return %c0_i32, %c0_i32_0 : i32, i32
  }
  func.func @transform_8(%arg0: i32, %arg1: i32, %arg2: i32) -> (i32, i32) {
    %c4_i32 = arith.constant 4 : i32
    %0 = arith.muli %arg0, %c4_i32 : i32
    %c2_i32 = arith.constant 2 : i32
    %1 = arith.muli %arg1, %c2_i32 : i32
    %2 = arith.addi %0, %1 : i32
    %3 = arith.addi %2, %arg2 : i32
    %c0_i32 = arith.constant 0 : i32
    %c0_i32_0 = arith.constant 0 : i32
    return %3, %c0_i32 : i32, i32
  }
}

</mosaic_0001>

<llo_original>
// kernel: tpu_custom_call.1
$region0: #{tpu_custom_call.1}
  #allocation0 [shape = 'u32[]', space=smem, size = 0x4, offset = 0x4, fixed_abs, tag = 'smem constant byte address 0x4 - core index']
  #allocation1 [shape = 'u32[144,128]{1,0:T(1,128)}', space=vmem, size = 0x12000, scoped, tag = 'internal scratch']
  #allocation2 [shape = 'f32[2,10,32,128]{3,2,1,0:T(8,128)}', space=vmem, size = 0x50000, scoped, tag = 'scratch operand']
  #allocation3 [shape = 's32[2]{0}', space=sflag, size = 0x8, scoped, tag = 'scratch operand']
  #allocation13 [shape = 's32[]', space=sflag, size = 0x4, offset = 0, fixed_abs, tag = 'sflag constant byte address 0x0 - dummy sync flag']
  #allocation14 [shape = 's32[]', space=sflag, size = 0x4, offset = 0, fixed_abs, tag = 'sflag constant byte address 0x0 - dummy sync flag']
  #allocation15 [shape = 'u32[]', space=smem, size = 0x4, offset = 0x44, fixed_abs, tag = 'smem constant byte address 0x44 - assertion arg 0']
  #allocation16 [shape = 'u32[]', space=smem, size = 0x4, offset = 0x48, fixed_abs, tag = 'smem constant byte address 0x48 - assertion arg 1']
  #allocation17 [shape = 's32[]', space=sflag, size = 0x4, offset = 0, fixed_abs, tag = 'sflag constant byte address 0x0 - dummy sync flag']
  #allocation18 [shape = 's32[]', space=sflag, size = 0x4, offset = 0, fixed_abs, tag = 'sflag constant byte address 0x0 - dummy sync flag']
  %s0 = inlined_call_operand.hbm [shape: f32[2,22,32,128], index: 0, kind: input, shape index: {}]
  %s1 = inlined_call_operand.hbm [shape: f32[128,128], index: 1, kind: input, shape index: {}]
  %s2 = inlined_call_operand.hbm [shape: f32[3,9,1,128], index: 2, kind: input, shape index: {}]
  %s3 = inlined_call_operand.hbm [shape: f32[3,128,128], index: 3, kind: input, shape index: {}]
  %s4 = inlined_call_operand.hbm [shape: f32[4,128,128], index: 4, kind: input, shape index: {}]
  %s5 = inlined_call_operand.vmem [shape: f32[2,1,128], index: 5, kind: input, shape index: {}]
  %s6 = inlined_call_operand.vmem [shape: f32[1,128], index: 6, kind: input, shape index: {}]
  %s7 = inlined_call_operand.vmem [shape: f32[1,128], index: 7, kind: input, shape index: {}]
  %s8 = inlined_call_operand.hbm [shape: f32[512,128], index: 8, kind: output, shape index: {}]
  %s9 = sld [smem:[#allocation0]]
  $region93: #{tpu_custom_call.1} parent=0
    _
  %s11 = ssub.s32 1, %s9
  %s12 = scalar_select 0, %s11, %s9
  $region1: #{tpu_custom_call.1} parent=0
    #allocation4 [shape = 'u8[65536]{0}', space=vmem, size = 0x10000, scoped, tag = 'input window, operand 1, single buffered']
    #allocation5 [shape = 's32[2]{0}', space=sflag, size = 0x8, scoped, tag = 'scoped memory for tpu_custom_call.1']
    #allocation6 [shape = 's32[2]{0}', space=sflag, size = 0x8, scoped, tag = 'scoped memory for tpu_custom_call.1']
    #allocation7 [shape = 'u8[13824]{0}', space=vmem, size = 0x3800, scoped, tag = 'input window, operand 2, single buffered']
    #allocation8 [shape = 's32[1]{0}', space=sflag, size = 0x4, scoped, tag = 'scoped memory for tpu_custom_call.1']
    #allocation9 [shape = 'u8[196608]{0}', space=vmem, size = 0x30000, scoped, tag = 'input window, operand 3, single buffered']
    #allocation10 [shape = 'u8[262144]{0}', space=vmem, size = 0x40000, scoped, tag = 'input window, operand 4, single buffered']
    #allocation11 [shape = 's32[1]{0}', space=sflag, size = 0x4, scoped, tag = 'scoped memory for tpu_custom_call.1']
    #allocation12 [shape = 'u8[65536]{0}', space=vmem, size = 0x10000, scoped, tag = 'output window, operand 0']
    %13 = vsyncpa [#allocation5], 0
    %14 = vsyncpa [#allocation8], 0
    %15 = vsyncpa [#allocation11], 0
    %16 = vsyncpa [#allocation6], 0
    %s17 = scalar_lea.sflag [#allocation6], 1
    %18 = vsyncpa %s17, 0
    loop: start=0, step=1, limit=10
    $region2: #{tpu_custom_call.1} parent=1 // loop_pre_header
      _
    $region3: #{tpu_custom_call.1} parent=1 // loop_header
      %s20 = sphi 0, %s24
      %p21 = scmp.ge.s32.totalorder %s20, 10
      %s27 = sphi 0, %s46
      %s28 = sphi 0, %s42
      %s29 = sphi 0, %s38
      %s30 = sphi 0, %s27
      %s31 = sphi 0, %s28
      %s32 = sphi 0, %s29
      %s33 = sphi 0, %s30
      %s34 = sphi 0, %s31
      %s35 = sphi 0, %s32
      %s47 = sphi 0, %s47
      %s49 = sphi 0, %s47
      %s50 = sphi 0, %s49
      %s64 = sphi 0, %s50
      %s68 = sphi 0, %s68
      %s70 = sphi 0, %s68
      %s71 = sphi 0, %s70
      %s85 = sphi 0, %s71
      %s89 = sphi 0, %s89
      %s91 = sphi 0, %s89
      %s92 = sphi 0, %s91
      %s106 = sphi 0, %s92
      %s110 = sphi 0, %s110
      %s112 = sphi 0, %s110
      %s113 = sphi 0, %s112
      %s127 = sphi 0, %s113
      %s133 = sphi 0, %s135
      %s136 = sphi 0, %s133
      %s137 = sphi 0, %s136
      %s153 = sphi 0, %s137
      %s157 = sphi 0, %s157
      %s159 = sphi 0, %s157
      %s160 = sphi 0, %s159
      %s174 = sphi 0, %s160
      %s178 = sphi 0, %s178
      %s180 = sphi 0, %s178
      %s181 = sphi 0, %s180
      %s195 = sphi 0, %s181
      %s209 = sphi 0, %s211
      %s212 = sphi 0, %s209
      %s213 = sphi 0, %s212
      %s229 = sphi 0, %s213
    $region4: #{tpu_custom_call.1} parent=1 // loop_header_branch
      %23 = sbr.rel (%p21) target = $region8
    $region5: #{tpu_custom_call.1} parent=1 // loop_body
      %s25 = ssub.s32 %s20, 1
      %s26 = ssub.s32 %s20, 2
      %s36 = sadd.s32 1, %s29
      %p37 = scmp.ge.s32.totalorder %s36, 2
      %s38 = scalar_select %p37, 0, %s36
      %s39 = sadd.s32 1, %s28
      %s40 = scalar_select %p37, %s39, %s28
      %p41 = scmp.ge.s32.totalorder %s40, 2
      %s42 = scalar_select %p41, 0, %s40
      %s43 = sadd.s32 1, %s27
      %s44 = scalar_select %p41, %s43, %s27
      %p45 = scmp.ge.s32.totalorder %s44, 2
      %s46 = scalar_select %p45, 0, %s44
      %s48 = sadd.s32 %s47, 1
      %p51 = scmp.eq.s32.totalorder %s20, 7
      %p52 = scmp.ne.s32.totalorder %s47, %s49
      %p53 = scmp.eq.s32.totalorder %s20, 0
      %p54 = por %p52, %p53
      %p55 = scmp.ne.s32.totalorder %s47, %s49
      %p56 = scmp.eq.s32.totalorder %s25, 7
      %p57 = por %p55, %p56
      %p58 = scmp.ne.s32.totalorder %s49, %s50
      %p59 = scmp.eq.s32.totalorder %s25, 0
      %p60 = por %p58, %p59
      %p61 = scmp.ne.s32.totalorder %s49, %s50
      %p62 = scmp.eq.s32.totalorder %s26, 7
      %p63 = por %p61, %p62
      %p65 = scmp.ne.s32.totalorder %s50, %s64
      %p66 = scmp.eq.s32.totalorder %s26, 0
      %p67 = por %p65, %p66
      %s69 = sadd.s32 %s68, 1
      %p72 = scmp.eq.s32.totalorder %s20, 7
      %p73 = scmp.ne.s32.totalorder %s68, %s70
      %p74 = scmp.eq.s32.totalorder %s20, 0
      %p75 = por %p73, %p74
      %p76 = scmp.ne.s32.totalorder %s68, %s70
      %p77 = scmp.eq.s32.totalorder %s25, 7
      %p78 = por %p76, %p77
      %p79 = scmp.ne.s32.totalorder %s70, %s71
      %p80 = scmp.eq.s32.totalorder %s25, 0
      %p81 = por %p79, %p80
      %p82 = scmp.ne.s32.totalorder %s70, %s71
      %p83 = scmp.eq.s32.totalorder %s26, 7
      %p84 = por %p82, %p83
      %p86 = scmp.ne.s32.totalorder %s71, %s85
      %p87 = scmp.eq.s32.totalorder %s26, 0
      %p88 = por %p86, %p87
      %s90 = sadd.s32 %s89, 1
      %p93 = scmp.eq.s32.totalorder %s20, 7
      %p94 = scmp.ne.s32.totalorder %s89, %s91
      %p95 = scmp.eq.s32.totalorder %s20, 0
      %p96 = por %p94, %p95
      %p97 = scmp.ne.s32.totalorder %s89, %s91
      %p98 = scmp.eq.s32.totalorder %s25, 7
      %p99 = por %p97, %p98
      %p100 = scmp.ne.s32.totalorder %s91, %s92
      %p101 = scmp.eq.s32.totalorder %s25, 0
      %p102 = por %p100, %p101
      %p103 = scmp.ne.s32.totalorder %s91, %s92
      %p104 = scmp.eq.s32.totalorder %s26, 7
      %p105 = por %p103, %p104
      %p107 = scmp.ne.s32.totalorder %s92, %s106
      %p108 = scmp.eq.s32.totalorder %s26, 0
      %p109 = por %p107, %p108
      %s111 = sadd.s32 %s110, 1
      %p114 = scmp.eq.s32.totalorder %s20, 7
      %p115 = scmp.ne.s32.totalorder %s110, %s112
      %p116 = scmp.eq.s32.totalorder %s20, 0
      %p117 = por %p115, %p116
      %p118 = scmp.ne.s32.totalorder %s110, %s112
      %p119 = scmp.eq.s32.totalorder %s25, 7
      %p120 = por %p118, %p119
      %p121 = scmp.ne.s32.totalorder %s112, %s113
      %p122 = scmp.eq.s32.totalorder %s25, 0
      %p123 = por %p121, %p122
      %p124 = scmp.ne.s32.totalorder %s112, %s113
      %p125 = scmp.eq.s32.totalorder %s26, 7
      %p126 = por %p124, %p125
      %p128 = scmp.ne.s32.totalorder %s113, %s127
      %p129 = scmp.eq.s32.totalorder %s26, 0
      %p130 = por %p128, %p129
      %s131 = ssub.s32 %s27, %s46
      %p132 = scmp.eq.s32.totalorder %s131, 0
      %s134 = sadd.s32 %s133, 1
      %s135 = scalar_select %p132, %s133, %s134
      %p138 = pneg %p132
      %p139 = scmp.eq.s32.totalorder %s20, 7
      %p140 = por %p138, %p139
      %p141 = scmp.ne.s32.totalorder %s133, %s136
      %p142 = scmp.eq.s32.totalorder %s20, 0
      %p143 = por %p141, %p142
      %p144 = scmp.ne.s32.totalorder %s133, %s136
      %p145 = scmp.eq.s32.totalorder %s25, 7
      %p146 = por %p144, %p145
      %p147 = scmp.ne.s32.totalorder %s136, %s137
      %p148 = scmp.eq.s32.totalorder %s25, 0
      %p149 = por %p147, %p148
      %p150 = scmp.ne.s32.totalorder %s136, %s137
      %p151 = scmp.eq.s32.totalorder %s26, 7
      %p152 = por %p150, %p151
      %p154 = scmp.ne.s32.totalorder %s137, %s153
      %p155 = scmp.eq.s32.totalorder %s26, 0
      %p156 = por %p154, %p155
      %s158 = sadd.s32 %s157, 1
      %p161 = scmp.eq.s32.totalorder %s20, 7
      %p162 = scmp.ne.s32.totalorder %s157, %s159
      %p163 = scmp.eq.s32.totalorder %s20, 0
      %p164 = por %p162, %p163
      %p165 = scmp.ne.s32.totalorder %s157, %s159
      %p166 = scmp.eq.s32.totalorder %s25, 7
      %p167 = por %p165, %p166
      %p168 = scmp.ne.s32.totalorder %s159, %s160
      %p169 = scmp.eq.s32.totalorder %s25, 0
      %p170 = por %p168, %p169
      %p171 = scmp.ne.s32.totalorder %s159, %s160
      %p172 = scmp.eq.s32.totalorder %s26, 7
      %p173 = por %p171, %p172
      %p175 = scmp.ne.s32.totalorder %s160, %s174
      %p176 = scmp.eq.s32.totalorder %s26, 0
      %p177 = por %p175, %p176
      %s179 = sadd.s32 %s178, 1
      %p182 = scmp.eq.s32.totalorder %s20, 7
      %p183 = scmp.ne.s32.totalorder %s178, %s180
      %p184 = scmp.eq.s32.totalorder %s20, 0
      %p185 = por %p183, %p184
      %p186 = scmp.ne.s32.totalorder %s178, %s180
      %p187 = scmp.eq.s32.totalorder %s25, 7
      %p188 = por %p186, %p187
      %p189 = scmp.ne.s32.totalorder %s180, %s181
      %p190 = scmp.eq.s32.totalorder %s25, 0
      %p191 = por %p189, %p190
      %p192 = scmp.ne.s32.totalorder %s180, %s181
      %p193 = scmp.eq.s32.totalorder %s26, 7
      %p194 = por %p192, %p193
      %p196 = scmp.ne.s32.totalorder %s181, %s195
      %p197 = scmp.eq.s32.totalorder %s26, 0
      %p198 = por %p196, %p197
      %s199 = smul.u32 %s27, 4
      %s200 = smul.u32 %s28, 2
      %s201 = sadd.s32 %s199, %s200
      %s202 = sadd.s32 %s201, %s29
      %s203 = smul.u32 %s46, 4
      %s204 = smul.u32 %s42, 2
      %s205 = sadd.s32 %s203, %s204
      %s206 = sadd.s32 %s205, %s38
      %s207 = ssub.s32 %s202, %s206
      %p208 = scmp.eq.s32.totalorder %s207, 0
      %s210 = sadd.s32 %s209, 1
      %s211 = scalar_select %p208, %s209, %s210
      %p214 = pneg %p208
      %p215 = scmp.eq.s32.totalorder %s20, 7
      %p216 = por %p214, %p215
      %p217 = scmp.ne.s32.totalorder %s209, %s212
      %p218 = scmp.eq.s32.totalorder %s20, 0
      %p219 = por %p217, %p218
      %p220 = scmp.ne.s32.totalorder %s209, %s212
      %p221 = scmp.eq.s32.totalorder %s25, 7
      %p222 = por %p220, %p221
      %p223 = scmp.ne.s32.totalorder %s212, %s213
      %p224 = scmp.eq.s32.totalorder %s25, 0
      %p225 = por %p223, %p224
      %p226 = scmp.ne.s32.totalorder %s212, %s213
      %p227 = scmp.eq.s32.totalorder %s26, 7
      %p228 = por %p226, %p227
      %p230 = scmp.ne.s32.totalorder %s213, %s229
      %p231 = scmp.eq.s32.totalorder %s26, 0
      %p232 = por %p230, %p231
      %p233 = scmp.le.s32.totalorder 1, %s20
      %p234 = scmp.lt.s32.totalorder %s20, 9
      %p235 = pnand %p233, %p234
      %p236 = pneg %p235
      // Predicated region
      $region9: #{tpu_custom_call.1} parent=5 // pred_check
        _
      $region10: #{tpu_custom_call.1} parent=5 // pred_check_branch
        %238 = sbr.rel (%p235) target = $region12
      $region11: #{tpu_custom_call.1} parent=5 // pred_region
        %s239 = ssub.s32 %s20, 1
        // Predicated region
        $region13: #{tpu_custom_call.1} parent=11 // pred_check
          %p240 = pneg %p60
        $region14: #{tpu_custom_call.1} parent=11 // pred_check_branch
          %242 = sbr.rel (%p240) target = $region16
        $region15: #{tpu_custom_call.1} parent=11 // pred_region
          %s244 = ssub.s32 2048, 2048
          %245 = vsyncadd [#allocation5], %s244
          %s246 = sshll.u32 [#allocation4], 4
          %s247 = int_to_ptr.vmem [resolvable:$true] %s246
          %252 = dma.hbm_to_vmem [thread:$0]  %s1, 2048, %s247, [#allocation5], 128, 128, 8
        $region16: #{tpu_custom_call.1} parent=11 // pred_fallthru
          _
        // Predicated region
        $region17: #{tpu_custom_call.1} parent=11 // pred_check
          %p253 = pneg %p81
        $region18: #{tpu_custom_call.1} parent=11 // pred_check_branch
          %255 = sbr.rel (%p253) target = $region20
        $region19: #{tpu_custom_call.1} parent=11 // pred_region
          %s257 = ssub.s32 432, 432
          %258 = vsyncadd [#allocation8], %s257
          %s259 = sshll.u32 [#allocation7], 4
          %s260 = int_to_ptr.vmem [resolvable:$true] %s259
          %265 = dma.hbm_to_vmem [thread:$0]  %s2, 432, %s260, [#allocation8], 16, 16, 1
        $region20: #{tpu_custom_call.1} parent=11 // pred_fallthru
          _
        // Predicated region
        $region21: #{tpu_custom_call.1} parent=11 // pred_check
          %p266 = pneg %p102
        $region22: #{tpu_custom_call.1} parent=11 // pred_check_branch
          %268 = sbr.rel (%p266) target = $region24
        $region23: #{tpu_custom_call.1} parent=11 // pred_region
          %s270 = ssub.s32 6144, 6144
          %271 = vsyncadd [#allocation8], %s270
          %s272 = sshll.u32 [#allocation9], 4
          %s273 = int_to_ptr.vmem [resolvable:$true] %s272
          %278 = dma.hbm_to_vmem [thread:$0]  %s3, 6144, %s273, [#allocation8], 128, 128, 8
        $region24: #{tpu_custom_call.1} parent=11 // pred_fallthru
          _
        // Predicated region
        $region25: #{tpu_custom_call.1} parent=11 // pred_check
          %p279 = pneg %p123
        $region26: #{tpu_custom_call.1} parent=11 // pred_check_branch
          %281 = sbr.rel (%p279) target = $region28
        $region27: #{tpu_custom_call.1} parent=11 // pred_region
          %s283 = ssub.s32 8192, 8192
          %284 = vsyncadd [#allocation11], %s283
          %s285 = sshll.u32 [#allocation10], 4
          %s286 = int_to_ptr.vmem [resolvable:$true] %s285
          %291 = dma.hbm_to_vmem [thread:$0]  %s4, 8192, %s286, [#allocation11], 128, 128, 8
        $region28: #{tpu_custom_call.1} parent=11 // pred_fallthru
          _
        // Predicated region
        $region29: #{tpu_custom_call.1} parent=11 // pred_check
          %p292 = pneg %p170
        $region30: #{tpu_custom_call.1} parent=11 // pred_check_branch
          %294 = sbr.rel (%p292) target = $region32
        $region31: #{tpu_custom_call.1} parent=11 // pred_region
          _
        $region32: #{tpu_custom_call.1} parent=11 // pred_fallthru
          _
        // Predicated region
        $region33: #{tpu_custom_call.1} parent=11 // pred_check
          %p295 = pneg %p191
        $region34: #{tpu_custom_call.1} parent=11 // pred_check_branch
          %297 = sbr.rel (%p295) target = $region36
        $region35: #{tpu_custom_call.1} parent=11 // pred_region
          _
        $region36: #{tpu_custom_call.1} parent=11 // pred_fallthru
          _
      $region12: #{tpu_custom_call.1} parent=5 // pred_fallthru
        _
      %p298 = scmp.lt.s32.totalorder %s20, 8
      // Predicated region
      $region37: #{tpu_custom_call.1} parent=5 // pred_check
        %p299 = pneg %p298
      $region38: #{tpu_custom_call.1} parent=5 // pred_check_branch
        %301 = sbr.rel (%p299) target = $region40
      $region39: #{tpu_custom_call.1} parent=5 // pred_region
        // Predicated region
        $region41: #{tpu_custom_call.1} parent=39 // pred_check
          %p302 = pneg %p143
        $region42: #{tpu_custom_call.1} parent=39 // pred_check_branch
          %304 = sbr.rel (%p302) target = $region44
        $region43: #{tpu_custom_call.1} parent=39 // pred_region
          %p305 = scmp.lt.s32.totalorder %s27, 1
          %s306 = scalar_select %p305, %s27, 1
          %s307 = scalar_lea.vmem %s5, %s306
        $region44: #{tpu_custom_call.1} parent=39 // pred_fallthru
          _
      $region40: #{tpu_custom_call.1} parent=5 // pred_fallthru
        _
      %p308 = scmp.le.s32.totalorder 1, %s20
      %p309 = scmp.lt.s32.totalorder %s20, 9
      %p310 = pnand %p308, %p309
      %p311 = pneg %p310
      // Predicated region
      $region45: #{tpu_custom_call.1} parent=5 // pred_check
        _
      $region46: #{tpu_custom_call.1} parent=5 // pred_check_branch
        %313 = sbr.rel (%p310) target = $region48
      $region47: #{tpu_custom_call.1} parent=5 // pred_region
        %s314 = ssub.s32 %s20, 1
        // Predicated region
        $region49: #{tpu_custom_call.1} parent=47 // pred_check
          %p315 = pneg %p60
        $region50: #{tpu_custom_call.1} parent=47 // pred_check_branch
          %317 = sbr.rel (%p315) target = $region52
        $region51: #{tpu_custom_call.1} parent=47 // pred_region
          %318 = dma.done [#allocation5], 2048
        $region52: #{tpu_custom_call.1} parent=47 // pred_fallthru
          _
        // Predicated region
        $region53: #{tpu_custom_call.1} parent=47 // pred_check
          %p319 = pneg %p81
        $region54: #{tpu_custom_call.1} parent=47 // pred_check_branch
          %321 = sbr.rel (%p319) target = $region56
        $region55: #{tpu_custom_call.1} parent=47 // pred_region
          %322 = dma.done [#allocation8], 432
        $region56: #{tpu_custom_call.1} parent=47 // pred_fallthru
          _
        // Predicated region
        $region57: #{tpu_custom_call.1} parent=47 // pred_check
          %p323 = pneg %p102
        $region58: #{tpu_custom_call.1} parent=47 // pred_check_branch
          %325 = sbr.rel (%p323) target = $region60
        $region59: #{tpu_custom_call.1} parent=47 // pred_region
          %326 = dma.done [#allocation8], 6144
        $region60: #{tpu_custom_call.1} parent=47 // pred_fallthru
          _
        // Predicated region
        $region61: #{tpu_custom_call.1} parent=47 // pred_check
          %p327 = pneg %p123
        $region62: #{tpu_custom_call.1} parent=47 // pred_check_branch
          %329 = sbr.rel (%p327) target = $region64
        $region63: #{tpu_custom_call.1} parent=47 // pred_region
          %330 = dma.done [#allocation11], 8192
        $region64: #{tpu_custom_call.1} parent=47 // pred_fallthru
          _
        %p331 = pneg %p60
        %p332 = pneg %p57
        %p333 = pneg %p81
        %p334 = pneg %p78
        %p335 = pneg %p102
        %p336 = pneg %p99
        %p337 = pneg %p123
        %p338 = pneg %p120
        %p339 = scmp.lt.s32.totalorder %s30, 1
        %s340 = scalar_select %p339, %s30, 1
        %s341 = scalar_lea.vmem %s5, %s340
        %p342 = pneg %p149
        %p343 = pneg %p146
        %p344 = pneg %p170
        %p345 = pneg %p167
        %p346 = pneg %p191
        %p347 = pneg %p188
        %p348 = pneg %p225
        %p349 = pneg %p222
        %s350 = sand.u32 %s212, 1
        %s351 = scalar_lea.sflag [#allocation6], %s350
        %s352 = sand.u32 %s212, 1
        %s353 = smul.addr %s352, 64
        %s354 = scalar_lea.vmem [#allocation12], %s353
        %p355 = scmp.lt.s32.totalorder %s30, 1
        %s356 = scalar_select %p355, %s30, 1
        %s357 = scalar_lea.vmem %s5, %s356
        %s358 = smul.u32 %s30, 4
        %s359 = smul.u32 %s31, 2
        %s360 = sadd.s32 %s358, %s359
        %s361 = sadd.s32 %s360, %s32
        %s362 = smul.u32 8, %s361
        %s363 = smul.u32 %s31, 2
        %s364 = sadd.s32 %s363, %s32
        %p365 = scmp.lt.s32.totalorder %s32, 0
        %s366 = ssub.s32 0, %s32
        %s367 = scalar_select %p365, %s366, %s32
        %s368 = sand.u32 %s367, 1
        %s369 = ssub.s32 0, %s368
        %s370 = scalar_select %p365, %s369, %s368
        %p371 = scmp.ne.s32.totalorder %s370, 0
        %p372 = scmp.lt.s32.totalorder %s370, 0
        %p373 = pnand %p372, %p371
        %p374 = pneg %p373
        %s375 = sadd.s32 %s370, 2
        %s376 = scalar_select %p374, %s375, %s370
        %p377 = scmp.eq.s32.totalorder %s32, 0
        // Predicated region
        $region65: #{tpu_custom_call.1} parent=47 // pred_check
          %p378 = pneg %p377
        $region66: #{tpu_custom_call.1} parent=47 // pred_check_branch
          %380 = sbr.rel (%p378) target = $region68
        $region67: #{tpu_custom_call.1} parent=47 // pred_region
          %s381 = smul.u32 %s364, 4
          %s382 = smul.u32 %s381, 32
          %s383 = smul.u32 %s30, 704
          %s384 = sadd.s32 %s382, %s383
          %s385 = smul.addr %s384, 16
          %s386 = scalar_lea.hbm %s0, %s385
          %s387 = smul.u32 %s376, 320
          %s388 = scalar_lea.vmem [#allocation2], %s387
          %s389 = scalar_lea.sflag [#allocation3], %s376
          // Predicated region
          $region69: #{tpu_custom_call.1} parent=67 // pred_check
            _
          $region70: #{tpu_custom_call.1} parent=67 // pred_check_branch
            %391 = sbr.rel target = $region72
          $region71: #{tpu_custom_call.1} parent=67 // pred_region
            %392 = sst [smem:[#allocation15]] [#allocation14]
            %393 = sst [smem:[#allocation16]] [#allocation13]
          $region72: #{tpu_custom_call.1} parent=67 // pred_fallthru
            _
          %395 = shalt.err (0)
          %s397 = sshll.u32 %s388, 4
          %s398 = int_to_ptr.vmem [resolvable:$true] %s397
          %400 = dma.hbm_to_vmem [thread:$0]  %s386, 5120, %s398, %s389
        $region68: #{tpu_custom_call.1} parent=47 // pred_fallthru
          _
        %s401 = scalar_lea.sflag [#allocation3], %s376
        %s402 = smul.u32 10, 32
        %s403 = smul.u32 %s402, 1
        %s404 = sshll.u32 %s403, 4
        %405 = dma.done %s401, %s404
        %s406 = sadd.s32 %s32, 1
        %p407 = scmp.lt.s32.totalorder %s406, 2
        // Predicated region
        $region73: #{tpu_custom_call.1} parent=47 // pred_check
          %p408 = pneg %p407
        $region74: #{tpu_custom_call.1} parent=47 // pred_check_branch
          %410 = sbr.rel (%p408) target = $region76
        $region75: #{tpu_custom_call.1} parent=47 // pred_region
          %s411 = sadd.s32 %s364, 1
          %s412 = ssub.s32 1, %s376
          %s413 = smul.u32 %s411, 4
          %s414 = smul.u32 %s413, 32
          %s415 = smul.u32 %s30, 704
          %s416 = sadd.s32 %s414, %s415
          %s417 = smul.addr %s416, 16
          %s418 = scalar_lea.hbm %s0, %s417
          %s419 = smul.u32 %s412, 320
          %s420 = scalar_lea.vmem [#allocation2], %s419
          %s421 = scalar_lea.sflag [#allocation3], %s412
          // Predicated region
          $region77: #{tpu_custom_call.1} parent=75 // pred_check
            _
          $region78: #{tpu_custom_call.1} parent=75 // pred_check_branch
            %423 = sbr.rel target = $region80
          $region79: #{tpu_custom_call.1} parent=75 // pred_region
            %424 = sst [smem:[#allocation15]] [#allocation18]
            %425 = sst [smem:[#allocation16]] [#allocation17]
          $region80: #{tpu_custom_call.1} parent=75 // pred_fallthru
            _
          %427 = shalt.err (0)
          %s429 = sshll.u32 %s420, 4
          %s430 = int_to_ptr.vmem [resolvable:$true] %s429
          %432 = dma.hbm_to_vmem [thread:$0]  %s418, 5120, %s430, %s421
        $region76: #{tpu_custom_call.1} parent=47 // pred_fallthru
          _
        %s433 = smul.u32 %s376, 320
        %s434 = sadd.s32 96, %s433
        %s435 = scalar_lea.vmem [#allocation2], %s434
        %v436 = vld [vmem:[%s435 + $0x3] sm:$0xff]
        %v437 = vld [vmem:[%s435 + $0xb] sm:$0xff]
        %v438 = vld [vmem:[%s435 + $0x23] sm:$0xff]
        %v439 = vld [vmem:[%s435 + $0x2b] sm:$0xff]
        %v440 = vld [vmem:[%s435 + $0x43] sm:$0xff]
        %v441 = vld [vmem:[%s435 + $0x4b] sm:$0xff]
        %v442 = vld [vmem:[%s435 + $0x63] sm:$0xff]
        %v443 = vld [vmem:[%s435 + $0x6b] sm:$0xff]
        %v444 = vld [vmem:[#allocation4] sm:$0xff]
        %v445 = vld [vmem:[#allocation4 + $0x8] sm:$0xff]
        %v446 = vld [vmem:[#allocation4 + $0x10] sm:$0xff]
        %v447 = vld [vmem:[#allocation4 + $0x18] sm:$0xff]
        %v448 = vld [vmem:[#allocation4 + $0x20] sm:$0xff]
        %v449 = vld [vmem:[#allocation4 + $0x28] sm:$0xff]
        %v450 = vld [vmem:[#allocation4 + $0x30] sm:$0xff]
        %v451 = vld [vmem:[#allocation4 + $0x38] sm:$0xff]
        %v452 = vld [vmem:[#allocation4 + $0x40] sm:$0xff]
        %v453 = vld [vmem:[#allocation4 + $0x48] sm:$0xff]
        %v454 = vld [vmem:[#allocation4 + $0x50] sm:$0xff]
        %v455 = vld [vmem:[#allocation4 + $0x58] sm:$0xff]
        %v456 = vld [vmem:[#allocation4 + $0x60] sm:$0xff]
        %v457 = vld [vmem:[#allocation4 + $0x68] sm:$0xff]
        %v458 = vld [vmem:[#allocation4 + $0x70] sm:$0xff]
        %v459 = vld [vmem:[#allocation4 + $0x78] sm:$0xff]
        %460 = vmatprep.subr.mxu0 0.0
        %461 = vmatpush1.msra.mxu0 %v459
        %462 = vmatprep.subr.mxu0 0.0
        %463 = vmatpush1.msra.mxu0 %v458
        %464 = vmatprep.subr.mxu0 0.0
        %465 = vmatpush1.msra.mxu0 %v457
        %466 = vmatprep.subr.mxu0 0.0
        %467 = vmatpush1.msra.mxu0 %v456
        %468 = vmatprep.subr.mxu0 0.0
        %469 = vmatpush1.msra.mxu0 %v455
        %470 = vmatprep.subr.mxu0 0.0
        %471 = vmatpush1.msra.mxu0 %v454
        %472 = vmatprep.subr.mxu0 0.0
        %473 = vmatpush1.msra.mxu0 %v453
        %474 = vmatprep.subr.mxu0 0.0
        %475 = vmatpush1.msra.mxu0 %v452
        %476 = vmatprep.subr.mxu0 0.0
        %477 = vmatpush1.msra.mxu0 %v451
        %478 = vmatprep.subr.mxu0 0.0
        %479 = vmatpush1.msra.mxu0 %v450
        %480 = vmatprep.subr.mxu0 0.0
        %481 = vmatpush1.msra.mxu0 %v449
        %482 = vmatprep.subr.mxu0 0.0
        %483 = vmatpush1.msra.mxu0 %v448
        %484 = vmatprep.subr.mxu0 0.0
        %485 = vmatpush1.msra.mxu0 %v447
        %486 = vmatprep.subr.mxu0 0.0
        %487 = vmatpush1.msra.mxu0 %v446
        %488 = vmatprep.subr.mxu0 0.0
        %489 = vmatpush1.msra.mxu0 %v445
        %490 = vmatprep.subr.mxu0 0.0
        %491 = vmatpush1.msra.mxu0 %v444
        %492 = vmatprep.subr.mxu0 0.0
        %493 = vmatpush2.msra.mxu0 0.0
        %494 = vmatprep.subr.mxu0 0.0
        %495 = vmatpush2.msra.mxu0 0.0
        %496 = vmatprep.subr.mxu0 0.0
        %497 = vmatpush2.msra.mxu0 0.0
        %498 = vmatprep.subr.mxu0 0.0
        %499 = vmatpush2.msra.mxu0 0.0
        %500 = vmatprep.subr.mxu0 0.0
        %501 = vmatpush2.msra.mxu0 0.0
        %502 = vmatprep.subr.mxu0 0.0
        %503 = vmatpush2.msra.mxu0 0.0
        %504 = vmatprep.subr.mxu0 0.0
        %505 = vmatpush2.msra.mxu0 0.0
        %506 = vmatprep.subr.mxu0 0.0
        %507 = vmatpush2.msra.mxu0 0.0
        %508 = vmatprep.subr.mxu0 0.0
        %509 = vmatpush2.msra.mxu0 0.0
        %510 = vmatprep.subr.mxu0 0.0
        %511 = vmatpush2.msra.mxu0 0.0
        %512 = vmatprep.subr.mxu0 0.0
        %513 = vmatpush2.msra.mxu0 0.0
        %514 = vmatprep.subr.mxu0 0.0
        %515 = vmatpush2.msra.mxu0 0.0
        %516 = vmatprep.subr.mxu0 0.0
        %517 = vmatpush2.msra.mxu0 0.0
        %518 = vmatprep.subr.mxu0 0.0
        %519 = vmatpush2.msra.mxu0 0.0
        %520 = vmatprep.subr.mxu0 0.0
        %521 = vmatpush2.msra.mxu0 0.0
        %522 = vmatprep.subr.mxu0 0.0
        %523 = vmatpush2.msra.mxu0 0.0
        %524 = vmatprep.mubr.f32.mxu0 0.0
        %525 = vmatmul.mubr.f32.gmra.mxu0 %v436
        %v526 = vpop.f32.mrf.mxu0
        %v527 = vadd.f32 0.0, %v526
        %v528 = vpop.f32.mrf.mxu0
        %529 = vmatprep.mubr.f32.mxu0 0.0
        %530 = vmatmul.mubr.f32.gmra.mxu0 %v437
        %v531 = vpop.f32.mrf.mxu0
        %v532 = vadd.f32 0.0, %v531
        %v533 = vpop.f32.mrf.mxu0
        %534 = vmatprep.mubr.f32.mxu0 0.0
        %535 = vmatmul.mubr.f32.gmra.mxu0 %v438
        %v536 = vpop.f32.mrf.mxu0
        %v537 = vadd.f32 0.0, %v536
        %v538 = vpop.f32.mrf.mxu0
        %539 = vmatprep.mubr.f32.mxu0 0.0
        %540 = vmatmul.mubr.f32.gmra.mxu0 %v439
        %v541 = vpop.f32.mrf.mxu0
        %v542 = vadd.f32 0.0, %v541
        %v543 = vpop.f32.mrf.mxu0
        %544 = vmatprep.mubr.f32.mxu0 0.0
        %545 = vmatmul.mubr.f32.gmra.mxu0 %v440
        %v546 = vpop.f32.mrf.mxu0
        %v547 = vadd.f32 0.0, %v546
        %v548 = vpop.f32.mrf.mxu0
        %549 = vmatprep.mubr.f32.mxu0 0.0
        %550 = vmatmul.mubr.f32.gmra.mxu0 %v441
        %v551 = vpop.f32.mrf.mxu0
        %v552 = vadd.f32 0.0, %v551
        %v553 = vpop.f32.mrf.mxu0
        %554 = vmatprep.mubr.f32.mxu0 0.0
        %555 = vmatmul.mubr.f32.gmra.mxu0 %v442
        %v556 = vpop.f32.mrf.mxu0
        %v557 = vadd.f32 0.0, %v556
        %v558 = vpop.f32.mrf.mxu0
        %559 = vmatprep.mubr.f32.mxu0 0.0
        %560 = vmatmul.mubr.f32.gmra.mxu0 %v443
        %v561 = vpop.f32.mrf.mxu0
        %v562 = vadd.f32 0.0, %v561
        %v563 = vpop.f32.mrf.mxu0
        %564 = vdwg.mxu0
        %v565 = vmax.f32 %v527, 0.0
        %v566 = vmax.f32 %v532, 0.0
        %v567 = vmax.f32 %v537, 0.0
        %v568 = vmax.f32 %v542, 0.0
        %v569 = vmax.f32 %v547, 0.0
        %v570 = vmax.f32 %v552, 0.0
        %v571 = vmax.f32 %v557, 0.0
        %v572 = vmax.f32 %v562, 0.0
        %v573 = vld [vmem:[#allocation10] sm:$0xff]
        %v574 = vld [vmem:[#allocation10 + $0x8] sm:$0xff]
        %v575 = vld [vmem:[#allocation10 + $0x10] sm:$0xff]
        %v576 = vld [vmem:[#allocation10 + $0x18] sm:$0xff]
        %v577 = vld [vmem:[#allocation10 + $0x20] sm:$0xff]
        %v578 = vld [vmem:[#allocation10 + $0x28] sm:$0xff]
        %v579 = vld [vmem:[#allocation10 + $0x30] sm:$0xff]
        %v580 = vld [vmem:[#allocation10 + $0x38] sm:$0xff]
        %v581 = vld [vmem:[#allocation10 + $0x40] sm:$0xff]
        %v582 = vld [vmem:[#allocation10 + $0x48] sm:$0xff]
        %v583 = vld [vmem:[#allocation10 + $0x50] sm:$0xff]
        %v584 = vld [vmem:[#allocation10 + $0x58] sm:$0xff]
        %v585 = vld [vmem:[#allocation10 + $0x60] sm:$0xff]
        %v586 = vld [vmem:[#allocation10 + $0x68] sm:$0xff]
        %v587 = vld [vmem:[#allocation10 + $0x70] sm:$0xff]
        %v588 = vld [vmem:[#allocation10 + $0x78] sm:$0xff]
        %s589 = sadd.s32 64, %s433
        %s590 = scalar_lea.vmem [#allocation2], %s589
        %v591 = vld [vmem:[%s590 + $0x2] sm:$0xff]
        %v592 = vld [vmem:[%s590 + $0xa] sm:$0xff]
        %v593 = vld [vmem:[%s590 + $0x22] sm:$0xff]
        %v594 = vld [vmem:[%s590 + $0x2a] sm:$0xff]
        %v595 = vld [vmem:[%s590 + $0x42] sm:$0xff]
        %v596 = vld [vmem:[%s590 + $0x4a] sm:$0xff]
        %v597 = vld [vmem:[%s590 + $0x62] sm:$0xff]
        %v598 = vld [vmem:[%s590 + $0x6a] sm:$0xff]
        %v599 = vld [vmem:[#allocation7] sm:$0x1]
        %v601 = vlaneseq
        %v602 = vshrl.u32 %v601, 7
        %v603 = vsub.s32 0, %v602
        %v604 = vrot.slane %v599, %v603
        %v606 = vmul.f32 %v591, %v604
        %v607 = vmul.f32 %v592, %v604
        %v608 = vmul.f32 %v593, %v604
        %v609 = vmul.f32 %v594, %v604
        %v610 = vmul.f32 %v595, %v604
        %v611 = vmul.f32 %v596, %v604
        %v612 = vmul.f32 %v597, %v604
        %v613 = vmul.f32 %v598, %v604
        %v614 = vadd.f32 %v606, 0.0
        %v615 = vadd.f32 %v607, 0.0
        %v616 = vadd.f32 %v608, 0.0
        %v617 = vadd.f32 %v609, 0.0
        %v618 = vadd.f32 %v610, 0.0
        %v619 = vadd.f32 %v611, 0.0
        %v620 = vadd.f32 %v612, 0.0
        %v621 = vadd.f32 %v613, 0.0
        %v622 = vld [vmem:[%s590 + $0x3] sm:$0xff]
        %v623 = vld [vmem:[%s590 + $0xb] sm:$0xff]
        %v624 = vld [vmem:[%s590 + $0x23] sm:$0xff]
        %v625 = vld [vmem:[%s590 + $0x2b] sm:$0xff]
        %v626 = vld [vmem:[%s590 + $0x43] sm:$0xff]
        %v627 = vld [vmem:[%s590 + $0x4b] sm:$0xff]
        %v628 = vld [vmem:[%s590 + $0x63] sm:$0xff]
        %v629 = vld [vmem:[%s590 + $0x6b] sm:$0xff]
        %s630 = scalar_lea.vmem [#allocation7], 1
        %v631 = vld [vmem:[%s630] sm:$0x1]
        %v633 = vlaneseq
        %v634 = vshrl.u32 %v633, 7
        %v635 = vsub.s32 0, %v634
        %v636 = vrot.slane %v631, %v635
        %v638 = vmul.f32 %v622, %v636
        %v639 = vmul.f32 %v623, %v636
        %v640 = vmul.f32 %v624, %v636
        %v641 = vmul.f32 %v625, %v636
        %v642 = vmul.f32 %v626, %v636
        %v643 = vmul.f32 %v627, %v636
        %v644 = vmul.f32 %v628, %v636
        %v645 = vmul.f32 %v629, %v636
        %v646 = vadd.f32 %v614, %v638
        %v647 = vadd.f32 %v615, %v639
        %v648 = vadd.f32 %v616, %v640
        %v649 = vadd.f32 %v617, %v641
        %v650 = vadd.f32 %v618, %v642
        %v651 = vadd.f32 %v619, %v643
        %v652 = vadd.f32 %v620, %v644
        %v653 = vadd.f32 %v621, %v645
        %v654 = vld [vmem:[%s590 + $0x4] sm:$0xff]
        %v655 = vld [vmem:[%s590 + $0xc] sm:$0xff]
        %v656 = vld [vmem:[%s590 + $0x24] sm:$0xff]
        %v657 = vld [vmem:[%s590 + $0x2c] sm:$0xff]
        %v658 = vld [vmem:[%s590 + $0x44] sm:$0xff]
        %v659 = vld [vmem:[%s590 + $0x4c] sm:$0xff]
        %v660 = vld [vmem:[%s590 + $0x64] sm:$0xff]
        %v661 = vld [vmem:[%s590 + $0x6c] sm:$0xff]
        %s662 = scalar_lea.vmem [#allocation7], 2
        %v663 = vld [vmem:[%s662] sm:$0x1]
        %v665 = vlaneseq
        %v666 = vshrl.u32 %v665, 7
        %v667 = vsub.s32 0, %v666
        %v668 = vrot.slane %v663, %v667
        %v670 = vmul.f32 %v654, %v668
        %v671 = vmul.f32 %v655, %v668
        %v672 = vmul.f32 %v656, %v668
        %v673 = vmul.f32 %v657, %v668
        %v674 = vmul.f32 %v658, %v668
        %v675 = vmul.f32 %v659, %v668
        %v676 = vmul.f32 %v660, %v668
        %v677 = vmul.f32 %v661, %v668
        %v678 = vadd.f32 %v646, %v670
        %v679 = vadd.f32 %v647, %v671
        %v680 = vadd.f32 %v648, %v672
        %v681 = vadd.f32 %v649, %v673
        %v682 = vadd.f32 %v650, %v674
        %v683 = vadd.f32 %v651, %v675
        %v684 = vadd.f32 %v652, %v676
        %v685 = vadd.f32 %v653, %v677
        %v686 = vld [vmem:[%s435 + $0x2] sm:$0xff]
        %v687 = vld [vmem:[%s435 + $0xa] sm:$0xff]
        %v688 = vld [vmem:[%s435 + $0x22] sm:$0xff]
        %v689 = vld [vmem:[%s435 + $0x2a] sm:$0xff]
        %v690 = vld [vmem:[%s435 + $0x42] sm:$0xff]
        %v691 = vld [vmem:[%s435 + $0x4a] sm:$0xff]
        %v692 = vld [vmem:[%s435 + $0x62] sm:$0xff]
        %v693 = vld [vmem:[%s435 + $0x6a] sm:$0xff]
        %s694 = scalar_lea.vmem [#allocation7], 3
        %v695 = vld [vmem:[%s694] sm:$0x1]
        %v697 = vlaneseq
        %v698 = vshrl.u32 %v697, 7
        %v699 = vsub.s32 0, %v698
        %v700 = vrot.slane %v695, %v699
        %v702 = vmul.f32 %v686, %v700
        %v703 = vmul.f32 %v687, %v700
        %v704 = vmul.f32 %v688, %v700
        %v705 = vmul.f32 %v689, %v700
        %v706 = vmul.f32 %v690, %v700
        %v707 = vmul.f32 %v691, %v700
        %v708 = vmul.f32 %v692, %v700
        %v709 = vmul.f32 %v693, %v700
        %v710 = vadd.f32 %v678, %v702
        %v711 = vadd.f32 %v679, %v703
        %v712 = vadd.f32 %v680, %v704
        %v713 = vadd.f32 %v681, %v705
        %v714 = vadd.f32 %v682, %v706
        %v715 = vadd.f32 %v683, %v707
        %v716 = vadd.f32 %v684, %v708
        %v717 = vadd.f32 %v685, %v709
        %s718 = scalar_lea.vmem [#allocation7], 4
        %v719 = vld [vmem:[%s718] sm:$0x1]
        %v721 = vlaneseq
        %v722 = vshrl.u32 %v721, 7
        %v723 = vsub.s32 0, %v722
        %v724 = vrot.slane %v719, %v723
        %v726 = vmul.f32 %v436, %v724
        %v727 = vmul.f32 %v437, %v724
        %v728 = vmul.f32 %v438, %v724
        %v729 = vmul.f32 %v439, %v724
        %v730 = vmul.f32 %v440, %v724
        %v731 = vmul.f32 %v441, %v724
        %v732 = vmul.f32 %v442, %v724
        %v733 = vmul.f32 %v443, %v724
        %v734 = vadd.f32 %v710, %v726
        %v735 = vadd.f32 %v711, %v727
        %v736 = vadd.f32 %v712, %v728
        %v737 = vadd.f32 %v713, %v729
        %v738 = vadd.f32 %v714, %v730
        %v739 = vadd.f32 %v715, %v731
        %v740 = vadd.f32 %v716, %v732
        %v741 = vadd.f32 %v717, %v733
        %v742 = vld [vmem:[%s435 + $0x4] sm:$0xff]
        %v743 = vld [vmem:[%s435 + $0xc] sm:$0xff]
        %v744 = vld [vmem:[%s435 + $0x24] sm:$0xff]
        %v745 = vld [vmem:[%s435 + $0x2c] sm:$0xff]
        %v746 = vld [vmem:[%s435 + $0x44] sm:$0xff]
        %v747 = vld [vmem:[%s435 + $0x4c] sm:$0xff]
        %v748 = vld [vmem:[%s435 + $0x64] sm:$0xff]
        %v749 = vld [vmem:[%s435 + $0x6c] sm:$0xff]
        %s750 = scalar_lea.vmem [#allocation7], 5
        %v751 = vld [vmem:[%s750] sm:$0x1]
        %v753 = vlaneseq
        %v754 = vshrl.u32 %v753, 7
        %v755 = vsub.s32 0, %v754
        %v756 = vrot.slane %v751, %v755
        %v758 = vmul.f32 %v742, %v756
        %v759 = vmul.f32 %v743, %v756
        %v760 = vmul.f32 %v744, %v756
        %v761 = vmul.f32 %v745, %v756
        %v762 = vmul.f32 %v746, %v756
        %v763 = vmul.f32 %v747, %v756
        %v764 = vmul.f32 %v748, %v756
        %v765 = vmul.f32 %v749, %v756
        %v766 = vadd.f32 %v734, %v758
        %v767 = vadd.f32 %v735, %v759
        %v768 = vadd.f32 %v736, %v760
        %v769 = vadd.f32 %v737, %v761
        %v770 = vadd.f32 %v738, %v762
        %v771 = vadd.f32 %v739, %v763
        %v772 = vadd.f32 %v740, %v764
        %v773 = vadd.f32 %v741, %v765
        %s774 = sadd.s32 128, %s433
        %s775 = scalar_lea.vmem [#allocation2], %s774
        %v776 = vld [vmem:[%s775 + $0x2] sm:$0xff]
        %v777 = vld [vmem:[%s775 + $0xa] sm:$0xff]
        %v778 = vld [vmem:[%s775 + $0x22] sm:$0xff]
        %v779 = vld [vmem:[%s775 + $0x2a] sm:$0xff]
        %v780 = vld [vmem:[%s775 + $0x42] sm:$0xff]
        %v781 = vld [vmem:[%s775 + $0x4a] sm:$0xff]
        %v782 = vld [vmem:[%s775 + $0x62] sm:$0xff]
        %v783 = vld [vmem:[%s775 + $0x6a] sm:$0xff]
        %s784 = scalar_lea.vmem [#allocation7], 6
        %v785 = vld [vmem:[%s784] sm:$0x1]
        %v787 = vlaneseq
        %v788 = vshrl.u32 %v787, 7
        %v789 = vsub.s32 0, %v788
        %v790 = vrot.slane %v785, %v789
        %v792 = vmul.f32 %v776, %v790
        %v793 = vmul.f32 %v777, %v790
        %v794 = vmul.f32 %v778, %v790
        %v795 = vmul.f32 %v779, %v790
        %v796 = vmul.f32 %v780, %v790
        %v797 = vmul.f32 %v781, %v790
        %v798 = vmul.f32 %v782, %v790
        %v799 = vmul.f32 %v783, %v790
        %v800 = vadd.f32 %v766, %v792
        %v801 = vadd.f32 %v767, %v793
        %v802 = vadd.f32 %v768, %v794
        %v803 = vadd.f32 %v769, %v795
        %v804 = vadd.f32 %v770, %v796
        %v805 = vadd.f32 %v771, %v797
        %v806 = vadd.f32 %v772, %v798
        %v807 = vadd.f32 %v773, %v799
        %v808 = vld [vmem:[%s775 + $0x3] sm:$0xff]
        %v809 = vld [vmem:[%s775 + $0xb] sm:$0xff]
        %v810 = vld [vmem:[%s775 + $0x23] sm:$0xff]
        %v811 = vld [vmem:[%s775 + $0x2b] sm:$0xff]
        %v812 = vld [vmem:[%s775 + $0x43] sm:$0xff]
        %v813 = vld [vmem:[%s775 + $0x4b] sm:$0xff]
        %v814 = vld [vmem:[%s775 + $0x63] sm:$0xff]
        %v815 = vld [vmem:[%s775 + $0x6b] sm:$0xff]
        %s816 = scalar_lea.vmem [#allocation7], 7
        %v817 = vld [vmem:[%s816] sm:$0x1]
        %v819 = vlaneseq
        %v820 = vshrl.u32 %v819, 7
        %v821 = vsub.s32 0, %v820
        %v822 = vrot.slane %v817, %v821
        %v824 = vmul.f32 %v808, %v822
        %v825 = vmul.f32 %v809, %v822
        %v826 = vmul.f32 %v810, %v822
        %v827 = vmul.f32 %v811, %v822
        %v828 = vmul.f32 %v812, %v822
        %v829 = vmul.f32 %v813, %v822
        %v830 = vmul.f32 %v814, %v822
        %v831 = vmul.f32 %v815, %v822
        %v832 = vadd.f32 %v800, %v824
        %v833 = vadd.f32 %v801, %v825
        %v834 = vadd.f32 %v802, %v826
        %v835 = vadd.f32 %v803, %v827
        %v836 = vadd.f32 %v804, %v828
        %v837 = vadd.f32 %v805, %v829
        %v838 = vadd.f32 %v806, %v830
        %v839 = vadd.f32 %v807, %v831
        %v840 = vld [vmem:[%s775 + $0x4] sm:$0xff]
        %v841 = vld [vmem:[%s775 + $0xc] sm:$0xff]
        %v842 = vld [vmem:[%s775 + $0x24] sm:$0xff]
        %v843 = vld [vmem:[%s775 + $0x2c] sm:$0xff]
        %v844 = vld [vmem:[%s775 + $0x44] sm:$0xff]
        %v845 = vld [vmem:[%s775 + $0x4c] sm:$0xff]
        %v846 = vld [vmem:[%s775 + $0x64] sm:$0xff]
        %v847 = vld [vmem:[%s775 + $0x6c] sm:$0xff]
        %s848 = scalar_lea.vmem [#allocation7], 8
        %v849 = vld [vmem:[%s848] sm:$0x1]
        %v851 = vlaneseq
        %v852 = vshrl.u32 %v851, 7
        %v853 = vsub.s32 0, %v852
        %v854 = vrot.slane %v849, %v853
        %v856 = vmul.f32 %v840, %v854
        %v857 = vmul.f32 %v841, %v854
        %v858 = vmul.f32 %v842, %v854
        %v859 = vmul.f32 %v843, %v854
        %v860 = vmul.f32 %v844, %v854
        %v861 = vmul.f32 %v845, %v854
        %v862 = vmul.f32 %v846, %v854
        %v863 = vmul.f32 %v847, %v854
        %v864 = vadd.f32 %v832, %v856
        %v865 = vadd.f32 %v833, %v857
        %v866 = vadd.f32 %v834, %v858
        %v867 = vadd.f32 %v835, %v859
        %v868 = vadd.f32 %v836, %v860
        %v869 = vadd.f32 %v837, %v861
        %v870 = vadd.f32 %v838, %v862
        %v871 = vadd.f32 %v839, %v863
        %v872 = vld [vmem:[#allocation9] sm:$0xff]
        %v873 = vld [vmem:[#allocation9 + $0x8] sm:$0xff]
        %v874 = vld [vmem:[#allocation9 + $0x10] sm:$0xff]
        %v875 = vld [vmem:[#allocation9 + $0x18] sm:$0xff]
        %v876 = vld [vmem:[#allocation9 + $0x20] sm:$0xff]
        %v877 = vld [vmem:[#allocation9 + $0x28] sm:$0xff]
        %v878 = vld [vmem:[#allocation9 + $0x30] sm:$0xff]
        %v879 = vld [vmem:[#allocation9 + $0x38] sm:$0xff]
        %v880 = vld [vmem:[#allocation9 + $0x40] sm:$0xff]
        %v881 = vld [vmem:[#allocation9 + $0x48] sm:$0xff]
        %v882 = vld [vmem:[#allocation9 + $0x50] sm:$0xff]
        %v883 = vld [vmem:[#allocation9 + $0x58] sm:$0xff]
        %v884 = vld [vmem:[#allocation9 + $0x60] sm:$0xff]
        %v885 = vld [vmem:[#allocation9 + $0x68] sm:$0xff]
        %v886 = vld [vmem:[#allocation9 + $0x70] sm:$0xff]
        %v887 = vld [vmem:[#allocation9 + $0x78] sm:$0xff]
        %888 = vmatprep.subr.mxu0 0.0
        %889 = vmatpush1.msra.mxu0 %v887
        %890 = vmatprep.subr.mxu0 0.0
        %891 = vmatpush1.msra.mxu0 %v886
        %892 = vmatprep.subr.mxu0 0.0
        %893 = vmatpush1.msra.mxu0 %v885
        %894 = vmatprep.subr.mxu0 0.0
        %895 = vmatpush1.msra.mxu0 %v884
        %896 = vmatprep.subr.mxu0 0.0
        %897 = vmatpush1.msra.mxu0 %v883
        %898 = vmatprep.subr.mxu0 0.0
        %899 = vmatpush1.msra.mxu0 %v882
        %900 = vmatprep.subr.mxu0 0.0
        %901 = vmatpush1.msra.mxu0 %v881
        %902 = vmatprep.subr.mxu0 0.0
        %903 = vmatpush1.msra.mxu0 %v880
        %904 = vmatprep.subr.mxu0 0.0
        %905 = vmatpush1.msra.mxu0 %v879
        %906 = vmatprep.subr.mxu0 0.0
        %907 = vmatpush1.msra.mxu0 %v878
        %908 = vmatprep.subr.mxu0 0.0
        %909 = vmatpush1.msra.mxu0 %v877
        %910 = vmatprep.subr.mxu0 0.0
        %911 = vmatpush1.msra.mxu0 %v876
        %912 = vmatprep.subr.mxu0 0.0
        %913 = vmatpush1.msra.mxu0 %v875
        %914 = vmatprep.subr.mxu0 0.0
        %915 = vmatpush1.msra.mxu0 %v874
        %916 = vmatprep.subr.mxu0 0.0
        %917 = vmatpush1.msra.mxu0 %v873
        %918 = vmatprep.subr.mxu0 0.0
        %919 = vmatpush1.msra.mxu0 %v872
        %920 = vmatprep.subr.mxu0 0.0
        %921 = vmatpush2.msra.mxu0 0.0
        %922 = vmatprep.subr.mxu0 0.0
        %923 = vmatpush2.msra.mxu0 0.0
        %924 = vmatprep.subr.mxu0 0.0
        %925 = vmatpush2.msra.mxu0 0.0
        %926 = vmatprep.subr.mxu0 0.0
        %927 = vmatpush2.msra.mxu0 0.0
        %928 = vmatprep.subr.mxu0 0.0
        %929 = vmatpush2.msra.mxu0 0.0
        %930 = vmatprep.subr.mxu0 0.0
        %931 = vmatpush2.msra.mxu0 0.0
        %932 = vmatprep.subr.mxu0 0.0
        %933 = vmatpush2.msra.mxu0 0.0
        %934 = vmatprep.subr.mxu0 0.0
        %935 = vmatpush2.msra.mxu0 0.0
        %936 = vmatprep.subr.mxu0 0.0
        %937 = vmatpush2.msra.mxu0 0.0
        %938 = vmatprep.subr.mxu0 0.0
        %939 = vmatpush2.msra.mxu0 0.0
        %940 = vmatprep.subr.mxu0 0.0
        %941 = vmatpush2.msra.mxu0 0.0
        %942 = vmatprep.subr.mxu0 0.0
        %943 = vmatpush2.msra.mxu0 0.0
        %944 = vmatprep.subr.mxu0 0.0
        %945 = vmatpush2.msra.mxu0 0.0
        %946 = vmatprep.subr.mxu0 0.0
        %947 = vmatpush2.msra.mxu0 0.0
        %948 = vmatprep.subr.mxu0 0.0
        %949 = vmatpush2.msra.mxu0 0.0
        %950 = vmatprep.subr.mxu0 0.0
        %951 = vmatpush2.msra.mxu0 0.0
        %952 = vmatprep.mubr.f32.mxu0 0.0
        %953 = vmatmul.mubr.f32.gmra.mxu0 %v864
        %v954 = vpop.f32.mrf.mxu0
        %v955 = vadd.f32 0.0, %v954
        %v956 = vpop.f32.mrf.mxu0
        %957 = vmatprep.mubr.f32.mxu0 0.0
        %958 = vmatmul.mubr.f32.gmra.mxu0 %v865
        %v959 = vpop.f32.mrf.mxu0
        %v960 = vadd.f32 0.0, %v959
        %v961 = vpop.f32.mrf.mxu0
        %962 = vmatprep.mubr.f32.mxu0 0.0
        %963 = vmatmul.mubr.f32.gmra.mxu0 %v866
        %v964 = vpop.f32.mrf.mxu0
        %v965 = vadd.f32 0.0, %v964
        %v966 = vpop.f32.mrf.mxu0
        %967 = vmatprep.mubr.f32.mxu0 0.0
        %968 = vmatmul.mubr.f32.gmra.mxu0 %v867
        %v969 = vpop.f32.mrf.mxu0
        %v970 = vadd.f32 0.0, %v969
        %v971 = vpop.f32.mrf.mxu0
        %972 = vmatprep.mubr.f32.mxu0 0.0
        %973 = vmatmul.mubr.f32.gmra.mxu0 %v868
        %v974 = vpop.f32.mrf.mxu0
        %v975 = vadd.f32 0.0, %v974
        %v976 = vpop.f32.mrf.mxu0
        %977 = vmatprep.mubr.f32.mxu0 0.0
        %978 = vmatmul.mubr.f32.gmra.mxu0 %v869
        %v979 = vpop.f32.mrf.mxu0
        %v980 = vadd.f32 0.0, %v979
        %v981 = vpop.f32.mrf.mxu0
        %982 = vmatprep.mubr.f32.mxu0 0.0
        %983 = vmatmul.mubr.f32.gmra.mxu0 %v870
        %v984 = vpop.f32.mrf.mxu0
        %v985 = vadd.f32 0.0, %v984
        %v986 = vpop.f32.mrf.mxu0
        %987 = vmatprep.mubr.f32.mxu0 0.0
        %988 = vmatmul.mubr.f32.gmra.mxu0 %v871
        %v989 = vpop.f32.mrf.mxu0
        %v990 = vadd.f32 0.0, %v989
        %v991 = vpop.f32.mrf.mxu0
        %992 = vdwg.mxu0
        %v993 = vmax.f32 %v955, 0.0
        %v994 = vmax.f32 %v960, 0.0
        %v995 = vmax.f32 %v965, 0.0
        %v996 = vmax.f32 %v970, 0.0
        %v997 = vmax.f32 %v975, 0.0
        %v998 = vmax.f32 %v980, 0.0
        %v999 = vmax.f32 %v985, 0.0
        %v1000 = vmax.f32 %v990, 0.0
        %s1001 = scalar_lea.vmem [#allocation10], 128
        %v1002 = vld [vmem:[%s1001] sm:$0xff]
        %v1003 = vld [vmem:[%s1001 + $0x8] sm:$0xff]
        %v1004 = vld [vmem:[%s1001 + $0x10] sm:$0xff]
        %v1005 = vld [vmem:[%s1001 + $0x18] sm:$0xff]
        %v1006 = vld [vmem:[%s1001 + $0x20] sm:$0xff]
        %v1007 = vld [vmem:[%s1001 + $0x28] sm:$0xff]
        %v1008 = vld [vmem:[%s1001 + $0x30] sm:$0xff]
        %v1009 = vld [vmem:[%s1001 + $0x38] sm:$0xff]
        %v1010 = vld [vmem:[%s1001 + $0x40] sm:$0xff]
        %v1011 = vld [vmem:[%s1001 + $0x48] sm:$0xff]
        %v1012 = vld [vmem:[%s1001 + $0x50] sm:$0xff]
        %v1013 = vld [vmem:[%s1001 + $0x58] sm:$0xff]
        %v1014 = vld [vmem:[%s1001 + $0x60] sm:$0xff]
        %v1015 = vld [vmem:[%s1001 + $0x68] sm:$0xff]
        %v1016 = vld [vmem:[%s1001 + $0x70] sm:$0xff]
        %v1017 = vld [vmem:[%s1001 + $0x78] sm:$0xff]
        %1018 = vmatprep.subr.mxu0 0.0
        %1019 = vmatpush1.msra.mxu0 %v1017
        %1020 = vmatprep.subr.mxu0 0.0
        %1021 = vmatpush1.msra.mxu0 %v1016
        %1022 = vmatprep.subr.mxu0 0.0
        %1023 = vmatpush1.msra.mxu0 %v1015
        %1024 = vmatprep.subr.mxu0 0.0
        %1025 = vmatpush1.msra.mxu0 %v1014
        %1026 = vmatprep.subr.mxu0 0.0
        %1027 = vmatpush1.msra.mxu0 %v1013
        %1028 = vmatprep.subr.mxu0 0.0
        %1029 = vmatpush1.msra.mxu0 %v1012
        %1030 = vmatprep.subr.mxu0 0.0
        %1031 = vmatpush1.msra.mxu0 %v1011
        %1032 = vmatprep.subr.mxu0 0.0
        %1033 = vmatpush1.msra.mxu0 %v1010
        %1034 = vmatprep.subr.mxu0 0.0
        %1035 = vmatpush1.msra.mxu0 %v1009
        %1036 = vmatprep.subr.mxu0 0.0
        %1037 = vmatpush1.msra.mxu0 %v1008
        %1038 = vmatprep.subr.mxu0 0.0
        %1039 = vmatpush1.msra.mxu0 %v1007
        %1040 = vmatprep.subr.mxu0 0.0
        %1041 = vmatpush1.msra.mxu0 %v1006
        %1042 = vmatprep.subr.mxu0 0.0
        %1043 = vmatpush1.msra.mxu0 %v1005
        %1044 = vmatprep.subr.mxu0 0.0
        %1045 = vmatpush1.msra.mxu0 %v1004
        %1046 = vmatprep.subr.mxu0 0.0
        %1047 = vmatpush1.msra.mxu0 %v1003
        %1048 = vmatprep.subr.mxu0 0.0
        %1049 = vmatpush1.msra.mxu0 %v1002
        %1050 = vmatprep.subr.mxu0 0.0
        %1051 = vmatpush2.msra.mxu0 0.0
        %1052 = vmatprep.subr.mxu0 0.0
        %1053 = vmatpush2.msra.mxu0 0.0
        %1054 = vmatprep.subr.mxu0 0.0
        %1055 = vmatpush2.msra.mxu0 0.0
        %1056 = vmatprep.subr.mxu0 0.0
        %1057 = vmatpush2.msra.mxu0 0.0
        %1058 = vmatprep.subr.mxu0 0.0
        %1059 = vmatpush2.msra.mxu0 0.0
        %1060 = vmatprep.subr.mxu0 0.0
        %1061 = vmatpush2.msra.mxu0 0.0
        %1062 = vmatprep.subr.mxu0 0.0
        %1063 = vmatpush2.msra.mxu0 0.0
        %1064 = vmatprep.subr.mxu0 0.0
        %1065 = vmatpush2.msra.mxu0 0.0
        %1066 = vmatprep.subr.mxu0 0.0
        %1067 = vmatpush2.msra.mxu0 0.0
        %1068 = vmatprep.subr.mxu0 0.0
        %1069 = vmatpush2.msra.mxu0 0.0
        %1070 = vmatprep.subr.mxu0 0.0
        %1071 = vmatpush2.msra.mxu0 0.0
        %1072 = vmatprep.subr.mxu0 0.0
        %1073 = vmatpush2.msra.mxu0 0.0
        %1074 = vmatprep.subr.mxu0 0.0
        %1075 = vmatpush2.msra.mxu0 0.0
        %1076 = vmatprep.subr.mxu0 0.0
        %1077 = vmatpush2.msra.mxu0 0.0
        %1078 = vmatprep.subr.mxu0 0.0
        %1079 = vmatpush2.msra.mxu0 0.0
        %1080 = vmatprep.subr.mxu0 0.0
        %1081 = vmatpush2.msra.mxu0 0.0
        %1082 = vmatprep.mubr.f32.mxu0 0.0
        %1083 = vmatmul.mubr.f32.gmra.mxu0 %v993
        %v1084 = vpop.f32.mrf.mxu0
        %v1085 = vadd.f32 0.0, %v1084
        %v1086 = vpop.f32.mrf.mxu0
        %1087 = vmatprep.mubr.f32.mxu0 0.0
        %1088 = vmatmul.mubr.f32.gmra.mxu0 %v994
        %v1089 = vpop.f32.mrf.mxu0
        %v1090 = vadd.f32 0.0, %v1089
        %v1091 = vpop.f32.mrf.mxu0
        %1092 = vmatprep.mubr.f32.mxu0 0.0
        %1093 = vmatmul.mubr.f32.gmra.mxu0 %v995
        %v1094 = vpop.f32.mrf.mxu0
        %v1095 = vadd.f32 0.0, %v1094
        %v1096 = vpop.f32.mrf.mxu0
        %1097 = vmatprep.mubr.f32.mxu0 0.0
        %1098 = vmatmul.mubr.f32.gmra.mxu0 %v996
        %v1099 = vpop.f32.mrf.mxu0
        %v1100 = vadd.f32 0.0, %v1099
        %v1101 = vpop.f32.mrf.mxu0
        %1102 = vmatprep.mubr.f32.mxu0 0.0
        %1103 = vmatmul.mubr.f32.gmra.mxu0 %v997
        %v1104 = vpop.f32.mrf.mxu0
        %v1105 = vadd.f32 0.0, %v1104
        %v1106 = vpop.f32.mrf.mxu0
        %1107 = vmatprep.mubr.f32.mxu0 0.0
        %1108 = vmatmul.mubr.f32.gmra.mxu0 %v998
        %v1109 = vpop.f32.mrf.mxu0
        %v1110 = vadd.f32 0.0, %v1109
        %v1111 = vpop.f32.mrf.mxu0
        %1112 = vmatprep.mubr.f32.mxu0 0.0
        %1113 = vmatmul.mubr.f32.gmra.mxu0 %v999
        %v1114 = vpop.f32.mrf.mxu0
        %v1115 = vadd.f32 0.0, %v1114
        %v1116 = vpop.f32.mrf.mxu0
        %1117 = vmatprep.mubr.f32.mxu0 0.0
        %1118 = vmatmul.mubr.f32.gmra.mxu0 %v1000
        %v1119 = vpop.f32.mrf.mxu0
        %v1120 = vadd.f32 0.0, %v1119
        %v1121 = vpop.f32.mrf.mxu0
        %1122 = vdwg.mxu0
        %1123 = vmatprep.subr.mxu0 0.0
        %1124 = vmatpush1.msra.mxu0 %v588
        %1125 = vmatprep.subr.mxu0 0.0
        %1126 = vmatpush1.msra.mxu0 %v587
        %1127 = vmatprep.subr.mxu0 0.0
        %1128 = vmatpush1.msra.mxu0 %v586
        %1129 = vmatprep.subr.mxu0 0.0
        %1130 = vmatpush1.msra.mxu0 %v585
        %1131 = vmatprep.subr.mxu0 0.0
        %1132 = vmatpush1.msra.mxu0 %v584
        %1133 = vmatprep.subr.mxu0 0.0
        %1134 = vmatpush1.msra.mxu0 %v583
        %1135 = vmatprep.subr.mxu0 0.0
        %1136 = vmatpush1.msra.mxu0 %v582
        %1137 = vmatprep.subr.mxu0 0.0
        %1138 = vmatpush1.msra.mxu0 %v581
        %1139 = vmatprep.subr.mxu0 0.0
        %1140 = vmatpush1.msra.mxu0 %v580
        %1141 = vmatprep.subr.mxu0 0.0
        %1142 = vmatpush1.msra.mxu0 %v579
        %1143 = vmatprep.subr.mxu0 0.0
        %1144 = vmatpush1.msra.mxu0 %v578
        %1145 = vmatprep.subr.mxu0 0.0
        %1146 = vmatpush1.msra.mxu0 %v577
        %1147 = vmatprep.subr.mxu0 0.0
        %1148 = vmatpush1.msra.mxu0 %v576
        %1149 = vmatprep.subr.mxu0 0.0
        %1150 = vmatpush1.msra.mxu0 %v575
        %1151 = vmatprep.subr.mxu0 0.0
        %1152 = vmatpush1.msra.mxu0 %v574
        %1153 = vmatprep.subr.mxu0 0.0
        %1154 = vmatpush1.msra.mxu0 %v573
        %1155 = vmatprep.subr.mxu0 0.0
        %1156 = vmatpush2.msra.mxu0 0.0
        %1157 = vmatprep.subr.mxu0 0.0
        %1158 = vmatpush2.msra.mxu0 0.0
        %1159 = vmatprep.subr.mxu0 0.0
        %1160 = vmatpush2.msra.mxu0 0.0
        %1161 = vmatprep.subr.mxu0 0.0
        %1162 = vmatpush2.msra.mxu0 0.0
        %1163 = vmatprep.subr.mxu0 0.0
        %1164 = vmatpush2.msra.mxu0 0.0
        %1165 = vmatprep.subr.mxu0 0.0
        %1166 = vmatpush2.msra.mxu0 0.0
        %1167 = vmatprep.subr.mxu0 0.0
        %1168 = vmatpush2.msra.mxu0 0.0
        %1169 = vmatprep.subr.mxu0 0.0
        %1170 = vmatpush2.msra.mxu0 0.0
        %1171 = vmatprep.subr.mxu0 0.0
        %1172 = vmatpush2.msra.mxu0 0.0
        %1173 = vmatprep.subr.mxu0 0.0
        %1174 = vmatpush2.msra.mxu0 0.0
        %1175 = vmatprep.subr.mxu0 0.0
        %1176 = vmatpush2.msra.mxu0 0.0
        %1177 = vmatprep.subr.mxu0 0.0
        %1178 = vmatpush2.msra.mxu0 0.0
        %1179 = vmatprep.subr.mxu0 0.0
        %1180 = vmatpush2.msra.mxu0 0.0
        %1181 = vmatprep.subr.mxu0 0.0
        %1182 = vmatpush2.msra.mxu0 0.0
        %1183 = vmatprep.subr.mxu0 0.0
        %1184 = vmatpush2.msra.mxu0 0.0
        %1185 = vmatprep.subr.mxu0 0.0
        %1186 = vmatpush2.msra.mxu0 0.0
        %1187 = vmatprep.mubr.f32.mxu0 0.0
        %1188 = vmatmul.mubr.f32.gmra.mxu0 %v565
        %v1189 = vpop.f32.mrf.mxu0
        %v1190 = vadd.f32 %v1085, %v1189
        %v1191 = vpop.f32.mrf.mxu0
        %1192 = vmatprep.mubr.f32.mxu0 0.0
        %1193 = vmatmul.mubr.f32.gmra.mxu0 %v566
        %v1194 = vpop.f32.mrf.mxu0
        %v1195 = vadd.f32 %v1090, %v1194
        %v1196 = vpop.f32.mrf.mxu0
        %1197 = vmatprep.mubr.f32.mxu0 0.0
        %1198 = vmatmul.mubr.f32.gmra.mxu0 %v567
        %v1199 = vpop.f32.mrf.mxu0
        %v1200 = vadd.f32 %v1095, %v1199
        %v1201 = vpop.f32.mrf.mxu0
        %1202 = vmatprep.mubr.f32.mxu0 0.0
        %1203 = vmatmul.mubr.f32.gmra.mxu0 %v568
        %v1204 = vpop.f32.mrf.mxu0
        %v1205 = vadd.f32 %v1100, %v1204
        %v1206 = vpop.f32.mrf.mxu0
        %1207 = vmatprep.mubr.f32.mxu0 0.0
        %1208 = vmatmul.mubr.f32.gmra.mxu0 %v569
        %v1209 = vpop.f32.mrf.mxu0
        %v1210 = vadd.f32 %v1105, %v1209
        %v1211 = vpop.f32.mrf.mxu0
        %1212 = vmatprep.mubr.f32.mxu0 0.0
        %1213 = vmatmul.mubr.f32.gmra.mxu0 %v570
        %v1214 = vpop.f32.mrf.mxu0
        %v1215 = vadd.f32 %v1110, %v1214
        %v1216 = vpop.f32.mrf.mxu0
        %1217 = vmatprep.mubr.f32.mxu0 0.0
        %1218 = vmatmul.mubr.f32.gmra.mxu0 %v571
        %v1219 = vpop.f32.mrf.mxu0
        %v1220 = vadd.f32 %v1115, %v1219
        %v1221 = vpop.f32.mrf.mxu0
        %1222 = vmatprep.mubr.f32.mxu0 0.0
        %1223 = vmatmul.mubr.f32.gmra.mxu0 %v572
        %v1224 = vpop.f32.mrf.mxu0
        %v1225 = vadd.f32 %v1120, %v1224
        %v1226 = vpop.f32.mrf.mxu0
        %1227 = vdwg.mxu0
        %s1228 = sadd.s32 32, %s433
        %s1229 = scalar_lea.vmem [#allocation2], %s1228
        %v1230 = vld [vmem:[%s1229 + $0x1] sm:$0xff]
        %v1231 = vld [vmem:[%s1229 + $0x9] sm:$0xff]
        %v1232 = vld [vmem:[%s1229 + $0x21] sm:$0xff]
        %v1233 = vld [vmem:[%s1229 + $0x29] sm:$0xff]
        %v1234 = vld [vmem:[%s1229 + $0x41] sm:$0xff]
        %v1235 = vld [vmem:[%s1229 + $0x49] sm:$0xff]
        %v1236 = vld [vmem:[%s1229 + $0x61] sm:$0xff]
        %v1237 = vld [vmem:[%s1229 + $0x69] sm:$0xff]
        %s1238 = scalar_lea.vmem [#allocation7], 9
        %v1239 = vld [vmem:[%s1238] sm:$0x1]
        %v1241 = vlaneseq
        %v1242 = vshrl.u32 %v1241, 7
        %v1243 = vsub.s32 0, %v1242
        %v1244 = vrot.slane %v1239, %v1243
        %v1246 = vmul.f32 %v1230, %v1244
        %v1247 = vmul.f32 %v1231, %v1244
        %v1248 = vmul.f32 %v1232, %v1244
        %v1249 = vmul.f32 %v1233, %v1244
        %v1250 = vmul.f32 %v1234, %v1244
        %v1251 = vmul.f32 %v1235, %v1244
        %v1252 = vmul.f32 %v1236, %v1244
        %v1253 = vmul.f32 %v1237, %v1244
        %v1254 = vadd.f32 %v1246, 0.0
        %v1255 = vadd.f32 %v1247, 0.0
        %v1256 = vadd.f32 %v1248, 0.0
        %v1257 = vadd.f32 %v1249, 0.0
        %v1258 = vadd.f32 %v1250, 0.0
        %v1259 = vadd.f32 %v1251, 0.0
        %v1260 = vadd.f32 %v1252, 0.0
        %v1261 = vadd.f32 %v1253, 0.0
        %v1262 = vld [vmem:[%s1229 + $0x3] sm:$0xff]
        %v1263 = vld [vmem:[%s1229 + $0xb] sm:$0xff]
        %v1264 = vld [vmem:[%s1229 + $0x23] sm:$0xff]
        %v1265 = vld [vmem:[%s1229 + $0x2b] sm:$0xff]
        %v1266 = vld [vmem:[%s1229 + $0x43] sm:$0xff]
        %v1267 = vld [vmem:[%s1229 + $0x4b] sm:$0xff]
        %v1268 = vld [vmem:[%s1229 + $0x63] sm:$0xff]
        %v1269 = vld [vmem:[%s1229 + $0x6b] sm:$0xff]
        %s1270 = scalar_lea.vmem [#allocation7], 10
        %v1271 = vld [vmem:[%s1270] sm:$0x1]
        %v1273 = vlaneseq
        %v1274 = vshrl.u32 %v1273, 7
        %v1275 = vsub.s32 0, %v1274
        %v1276 = vrot.slane %v1271, %v1275
        %v1278 = vmul.f32 %v1262, %v1276
        %v1279 = vmul.f32 %v1263, %v1276
        %v1280 = vmul.f32 %v1264, %v1276
        %v1281 = vmul.f32 %v1265, %v1276
        %v1282 = vmul.f32 %v1266, %v1276
        %v1283 = vmul.f32 %v1267, %v1276
        %v1284 = vmul.f32 %v1268, %v1276
        %v1285 = vmul.f32 %v1269, %v1276
        %v1286 = vadd.f32 %v1254, %v1278
        %v1287 = vadd.f32 %v1255, %v1279
        %v1288 = vadd.f32 %v1256, %v1280
        %v1289 = vadd.f32 %v1257, %v1281
        %v1290 = vadd.f32 %v1258, %v1282
        %v1291 = vadd.f32 %v1259, %v1283
        %v1292 = vadd.f32 %v1260, %v1284
        %v1293 = vadd.f32 %v1261, %v1285
        %v1294 = vld [vmem:[%s1229 + $0x5] sm:$0xff]
        %v1295 = vld [vmem:[%s1229 + $0xd] sm:$0xff]
        %v1296 = vld [vmem:[%s1229 + $0x25] sm:$0xff]
        %v1297 = vld [vmem:[%s1229 + $0x2d] sm:$0xff]
        %v1298 = vld [vmem:[%s1229 + $0x45] sm:$0xff]
        %v1299 = vld [vmem:[%s1229 + $0x4d] sm:$0xff]
        %v1300 = vld [vmem:[%s1229 + $0x65] sm:$0xff]
        %v1301 = vld [vmem:[%s1229 + $0x6d] sm:$0xff]
        %s1302 = scalar_lea.vmem [#allocation7], 11
        %v1303 = vld [vmem:[%s1302] sm:$0x1]
        %v1305 = vlaneseq
        %v1306 = vshrl.u32 %v1305, 7
        %v1307 = vsub.s32 0, %v1306
        %v1308 = vrot.slane %v1303, %v1307
        %v1310 = vmul.f32 %v1294, %v1308
        %v1311 = vmul.f32 %v1295, %v1308
        %v1312 = vmul.f32 %v1296, %v1308
        %v1313 = vmul.f32 %v1297, %v1308
        %v1314 = vmul.f32 %v1298, %v1308
        %v1315 = vmul.f32 %v1299, %v1308
        %v1316 = vmul.f32 %v1300, %v1308
        %v1317 = vmul.f32 %v1301, %v1308
        %v1318 = vadd.f32 %v1286, %v1310
        %v1319 = vadd.f32 %v1287, %v1311
        %v1320 = vadd.f32 %v1288, %v1312
        %v1321 = vadd.f32 %v1289, %v1313
        %v1322 = vadd.f32 %v1290, %v1314
        %v1323 = vadd.f32 %v1291, %v1315
        %v1324 = vadd.f32 %v1292, %v1316
        %v1325 = vadd.f32 %v1293, %v1317
        %v1326 = vld [vmem:[%s435 + $0x1] sm:$0xff]
        %v1327 = vld [vmem:[%s435 + $0x9] sm:$0xff]
        %v1328 = vld [vmem:[%s435 + $0x21] sm:$0xff]
        %v1329 = vld [vmem:[%s435 + $0x29] sm:$0xff]
        %v1330 = vld [vmem:[%s435 + $0x41] sm:$0xff]
        %v1331 = vld [vmem:[%s435 + $0x49] sm:$0xff]
        %v1332 = vld [vmem:[%s435 + $0x61] sm:$0xff]
        %v1333 = vld [vmem:[%s435 + $0x69] sm:$0xff]
        %s1334 = scalar_lea.vmem [#allocation7], 12
        %v1335 = vld [vmem:[%s1334] sm:$0x1]
        %v1337 = vlaneseq
        %v1338 = vshrl.u32 %v1337, 7
        %v1339 = vsub.s32 0, %v1338
        %v1340 = vrot.slane %v1335, %v1339
        %v1342 = vmul.f32 %v1326, %v1340
        %v1343 = vmul.f32 %v1327, %v1340
        %v1344 = vmul.f32 %v1328, %v1340
        %v1345 = vmul.f32 %v1329, %v1340
        %v1346 = vmul.f32 %v1330, %v1340
        %v1347 = vmul.f32 %v1331, %v1340
        %v1348 = vmul.f32 %v1332, %v1340
        %v1349 = vmul.f32 %v1333, %v1340
        %v1350 = vadd.f32 %v1318, %v1342
        %v1351 = vadd.f32 %v1319, %v1343
        %v1352 = vadd.f32 %v1320, %v1344
        %v1353 = vadd.f32 %v1321, %v1345
        %v1354 = vadd.f32 %v1322, %v1346
        %v1355 = vadd.f32 %v1323, %v1347
        %v1356 = vadd.f32 %v1324, %v1348
        %v1357 = vadd.f32 %v1325, %v1349
        %s1358 = scalar_lea.vmem [#allocation7], 13
        %v1359 = vld [vmem:[%s1358] sm:$0x1]
        %v1361 = vlaneseq
        %v1362 = vshrl.u32 %v1361, 7
        %v1363 = vsub.s32 0, %v1362
        %v1364 = vrot.slane %v1359, %v1363
        %v1366 = vmul.f32 %v436, %v1364
        %v1367 = vmul.f32 %v437, %v1364
        %v1368 = vmul.f32 %v438, %v1364
        %v1369 = vmul.f32 %v439, %v1364
        %v1370 = vmul.f32 %v440, %v1364
        %v1371 = vmul.f32 %v441, %v1364
        %v1372 = vmul.f32 %v442, %v1364
        %v1373 = vmul.f32 %v443, %v1364
        %v1374 = vadd.f32 %v1350, %v1366
        %v1375 = vadd.f32 %v1351, %v1367
        %v1376 = vadd.f32 %v1352, %v1368
        %v1377 = vadd.f32 %v1353, %v1369
        %v1378 = vadd.f32 %v1354, %v1370
        %v1379 = vadd.f32 %v1355, %v1371
        %v1380 = vadd.f32 %v1356, %v1372
        %v1381 = vadd.f32 %v1357, %v1373
        %v1382 = vld [vmem:[%s435 + $0x5] sm:$0xff]
        %v1383 = vld [vmem:[%s435 + $0xd] sm:$0xff]
        %v1384 = vld [vmem:[%s435 + $0x25] sm:$0xff]
        %v1385 = vld [vmem:[%s435 + $0x2d] sm:$0xff]
        %v1386 = vld [vmem:[%s435 + $0x45] sm:$0xff]
        %v1387 = vld [vmem:[%s435 + $0x4d] sm:$0xff]
        %v1388 = vld [vmem:[%s435 + $0x65] sm:$0xff]
        %v1389 = vld [vmem:[%s435 + $0x6d] sm:$0xff]
        %s1390 = scalar_lea.vmem [#allocation7], 14
        %v1391 = vld [vmem:[%s1390] sm:$0x1]
        %v1393 = vlaneseq
        %v1394 = vshrl.u32 %v1393, 7
        %v1395 = vsub.s32 0, %v1394
        %v1396 = vrot.slane %v1391, %v1395
        %v1398 = vmul.f32 %v1382, %v1396
        %v1399 = vmul.f32 %v1383, %v1396
        %v1400 = vmul.f32 %v1384, %v1396
        %v1401 = vmul.f32 %v1385, %v1396
        %v1402 = vmul.f32 %v1386, %v1396
        %v1403 = vmul.f32 %v1387, %v1396
        %v1404 = vmul.f32 %v1388, %v1396
        %v1405 = vmul.f32 %v1389, %v1396
        %v1406 = vadd.f32 %v1374, %v1398
        %v1407 = vadd.f32 %v1375, %v1399
        %v1408 = vadd.f32 %v1376, %v1400
        %v1409 = vadd.f32 %v1377, %v1401
        %v1410 = vadd.f32 %v1378, %v1402
        %v1411 = vadd.f32 %v1379, %v1403
        %v1412 = vadd.f32 %v1380, %v1404
        %v1413 = vadd.f32 %v1381, %v1405
        %s1414 = sadd.s32 160, %s433
        %s1415 = scalar_lea.vmem [#allocation2], %s1414
        %v1416 = vld [vmem:[%s1415 + $0x1] sm:$0xff]
        %v1417 = vld [vmem:[%s1415 + $0x9] sm:$0xff]
        %v1418 = vld [vmem:[%s1415 + $0x21] sm:$0xff]
        %v1419 = vld [vmem:[%s1415 + $0x29] sm:$0xff]
        %v1420 = vld [vmem:[%s1415 + $0x41] sm:$0xff]
        %v1421 = vld [vmem:[%s1415 + $0x49] sm:$0xff]
        %v1422 = vld [vmem:[%s1415 + $0x61] sm:$0xff]
        %v1423 = vld [vmem:[%s1415 + $0x69] sm:$0xff]
        %s1424 = scalar_lea.vmem [#allocation7], 15
        %v1425 = vld [vmem:[%s1424] sm:$0x1]
        %v1427 = vlaneseq
        %v1428 = vshrl.u32 %v1427, 7
        %v1429 = vsub.s32 0, %v1428
        %v1430 = vrot.slane %v1425, %v1429
        %v1432 = vmul.f32 %v1416, %v1430
        %v1433 = vmul.f32 %v1417, %v1430
        %v1434 = vmul.f32 %v1418, %v1430
        %v1435 = vmul.f32 %v1419, %v1430
        %v1436 = vmul.f32 %v1420, %v1430
        %v1437 = vmul.f32 %v1421, %v1430
        %v1438 = vmul.f32 %v1422, %v1430
        %v1439 = vmul.f32 %v1423, %v1430
        %v1440 = vadd.f32 %v1406, %v1432
        %v1441 = vadd.f32 %v1407, %v1433
        %v1442 = vadd.f32 %v1408, %v1434
        %v1443 = vadd.f32 %v1409, %v1435
        %v1444 = vadd.f32 %v1410, %v1436
        %v1445 = vadd.f32 %v1411, %v1437
        %v1446 = vadd.f32 %v1412, %v1438
        %v1447 = vadd.f32 %v1413, %v1439
        %v1448 = vld [vmem:[%s1415 + $0x3] sm:$0xff]
        %v1449 = vld [vmem:[%s1415 + $0xb] sm:$0xff]
        %v1450 = vld [vmem:[%s1415 + $0x23] sm:$0xff]
        %v1451 = vld [vmem:[%s1415 + $0x2b] sm:$0xff]
        %v1452 = vld [vmem:[%s1415 + $0x43] sm:$0xff]
        %v1453 = vld [vmem:[%s1415 + $0x4b] sm:$0xff]
        %v1454 = vld [vmem:[%s1415 + $0x63] sm:$0xff]
        %v1455 = vld [vmem:[%s1415 + $0x6b] sm:$0xff]
        %s1456 = scalar_lea.vmem [#allocation7], 16
        %v1457 = vld [vmem:[%s1456] sm:$0x1]
        %v1459 = vlaneseq
        %v1460 = vshrl.u32 %v1459, 7
        %v1461 = vsub.s32 0, %v1460
        %v1462 = vrot.slane %v1457, %v1461
        %v1464 = vmul.f32 %v1448, %v1462
        %v1465 = vmul.f32 %v1449, %v1462
        %v1466 = vmul.f32 %v1450, %v1462
        %v1467 = vmul.f32 %v1451, %v1462
        %v1468 = vmul.f32 %v1452, %v1462
        %v1469 = vmul.f32 %v1453, %v1462
        %v1470 = vmul.f32 %v1454, %v1462
        %v1471 = vmul.f32 %v1455, %v1462
        %v1472 = vadd.f32 %v1440, %v1464
        %v1473 = vadd.f32 %v1441, %v1465
        %v1474 = vadd.f32 %v1442, %v1466
        %v1475 = vadd.f32 %v1443, %v1467
        %v1476 = vadd.f32 %v1444, %v1468
        %v1477 = vadd.f32 %v1445, %v1469
        %v1478 = vadd.f32 %v1446, %v1470
        %v1479 = vadd.f32 %v1447, %v1471
        %v1480 = vld [vmem:[%s1415 + $0x5] sm:$0xff]
        %v1481 = vld [vmem:[%s1415 + $0xd] sm:$0xff]
        %v1482 = vld [vmem:[%s1415 + $0x25] sm:$0xff]
        %v1483 = vld [vmem:[%s1415 + $0x2d] sm:$0xff]
        %v1484 = vld [vmem:[%s1415 + $0x45] sm:$0xff]
        %v1485 = vld [vmem:[%s1415 + $0x4d] sm:$0xff]
        %v1486 = vld [vmem:[%s1415 + $0x65] sm:$0xff]
        %v1487 = vld [vmem:[%s1415 + $0x6d] sm:$0xff]
        %s1488 = scalar_lea.vmem [#allocation7], 17
        %v1489 = vld [vmem:[%s1488] sm:$0x1]
        %v1491 = vlaneseq
        %v1492 = vshrl.u32 %v1491, 7
        %v1493 = vsub.s32 0, %v1492
        %v1494 = vrot.slane %v1489, %v1493
        %v1496 = vmul.f32 %v1480, %v1494
        %v1497 = vmul.f32 %v1481, %v1494
        %v1498 = vmul.f32 %v1482, %v1494
        %v1499 = vmul.f32 %v1483, %v1494
        %v1500 = vmul.f32 %v1484, %v1494
        %v1501 = vmul.f32 %v1485, %v1494
        %v1502 = vmul.f32 %v1486, %v1494
        %v1503 = vmul.f32 %v1487, %v1494
        %v1504 = vadd.f32 %v1472, %v1496
        %v1505 = vadd.f32 %v1473, %v1497
        %v1506 = vadd.f32 %v1474, %v1498
        %v1507 = vadd.f32 %v1475, %v1499
        %v1508 = vadd.f32 %v1476, %v1500
        %v1509 = vadd.f32 %v1477, %v1501
        %v1510 = vadd.f32 %v1478, %v1502
        %v1511 = vadd.f32 %v1479, %v1503
        %s1512 = scalar_lea.vmem [#allocation9], 128
        %v1513 = vld [vmem:[%s1512] sm:$0xff]
        %v1514 = vld [vmem:[%s1512 + $0x8] sm:$0xff]
        %v1515 = vld [vmem:[%s1512 + $0x10] sm:$0xff]
        %v1516 = vld [vmem:[%s1512 + $0x18] sm:$0xff]
        %v1517 = vld [vmem:[%s1512 + $0x20] sm:$0xff]
        %v1518 = vld [vmem:[%s1512 + $0x28] sm:$0xff]
        %v1519 = vld [vmem:[%s1512 + $0x30] sm:$0xff]
        %v1520 = vld [vmem:[%s1512 + $0x38] sm:$0xff]
        %v1521 = vld [vmem:[%s1512 + $0x40] sm:$0xff]
        %v1522 = vld [vmem:[%s1512 + $0x48] sm:$0xff]
        %v1523 = vld [vmem:[%s1512 + $0x50] sm:$0xff]
        %v1524 = vld [vmem:[%s1512 + $0x58] sm:$0xff]
        %v1525 = vld [vmem:[%s1512 + $0x60] sm:$0xff]
        %v1526 = vld [vmem:[%s1512 + $0x68] sm:$0xff]
        %v1527 = vld [vmem:[%s1512 + $0x70] sm:$0xff]
        %v1528 = vld [vmem:[%s1512 + $0x78] sm:$0xff]
        %1529 = vmatprep.subr.mxu0 0.0
        %1530 = vmatpush1.msra.mxu0 %v1528
        %1531 = vmatprep.subr.mxu0 0.0
        %1532 = vmatpush1.msra.mxu0 %v1527
        %1533 = vmatprep.subr.mxu0 0.0
        %1534 = vmatpush1.msra.mxu0 %v1526
        %1535 = vmatprep.subr.mxu0 0.0
        %1536 = vmatpush1.msra.mxu0 %v1525
        %1537 = vmatprep.subr.mxu0 0.0
        %1538 = vmatpush1.msra.mxu0 %v1524
        %1539 = vmatprep.subr.mxu0 0.0
        %1540 = vmatpush1.msra.mxu0 %v1523
        %1541 = vmatprep.subr.mxu0 0.0
        %1542 = vmatpush1.msra.mxu0 %v1522
        %1543 = vmatprep.subr.mxu0 0.0
        %1544 = vmatpush1.msra.mxu0 %v1521
        %1545 = vmatprep.subr.mxu0 0.0
        %1546 = vmatpush1.msra.mxu0 %v1520
        %1547 = vmatprep.subr.mxu0 0.0
        %1548 = vmatpush1.msra.mxu0 %v1519
        %1549 = vmatprep.subr.mxu0 0.0
        %1550 = vmatpush1.msra.mxu0 %v1518
        %1551 = vmatprep.subr.mxu0 0.0
        %1552 = vmatpush1.msra.mxu0 %v1517
        %1553 = vmatprep.subr.mxu0 0.0
        %1554 = vmatpush1.msra.mxu0 %v1516
        %1555 = vmatprep.subr.mxu0 0.0
        %1556 = vmatpush1.msra.mxu0 %v1515
        %1557 = vmatprep.subr.mxu0 0.0
        %1558 = vmatpush1.msra.mxu0 %v1514
        %1559 = vmatprep.subr.mxu0 0.0
        %1560 = vmatpush1.msra.mxu0 %v1513
        %1561 = vmatprep.subr.mxu0 0.0
        %1562 = vmatpush2.msra.mxu0 0.0
        %1563 = vmatprep.subr.mxu0 0.0
        %1564 = vmatpush2.msra.mxu0 0.0
        %1565 = vmatprep.subr.mxu0 0.0
        %1566 = vmatpush2.msra.mxu0 0.0
        %1567 = vmatprep.subr.mxu0 0.0
        %1568 = vmatpush2.msra.mxu0 0.0
        %1569 = vmatprep.subr.mxu0 0.0
        %1570 = vmatpush2.msra.mxu0 0.0
        %1571 = vmatprep.subr.mxu0 0.0
        %1572 = vmatpush2.msra.mxu0 0.0
        %1573 = vmatprep.subr.mxu0 0.0
        %1574 = vmatpush2.msra.mxu0 0.0
        %1575 = vmatprep.subr.mxu0 0.0
        %1576 = vmatpush2.msra.mxu0 0.0
        %1577 = vmatprep.subr.mxu0 0.0
        %1578 = vmatpush2.msra.mxu0 0.0
        %1579 = vmatprep.subr.mxu0 0.0
        %1580 = vmatpush2.msra.mxu0 0.0
        %1581 = vmatprep.subr.mxu0 0.0
        %1582 = vmatpush2.msra.mxu0 0.0
        %1583 = vmatprep.subr.mxu0 0.0
        %1584 = vmatpush2.msra.mxu0 0.0
        %1585 = vmatprep.subr.mxu0 0.0
        %1586 = vmatpush2.msra.mxu0 0.0
        %1587 = vmatprep.subr.mxu0 0.0
        %1588 = vmatpush2.msra.mxu0 0.0
        %1589 = vmatprep.subr.mxu0 0.0
        %1590 = vmatpush2.msra.mxu0 0.0
        %1591 = vmatprep.subr.mxu0 0.0
        %1592 = vmatpush2.msra.mxu0 0.0
        %1593 = vmatprep.mubr.f32.mxu0 0.0
        %1594 = vmatmul.mubr.f32.gmra.mxu0 %v1504
        %v1595 = vpop.f32.mrf.mxu0
        %v1596 = vadd.f32 0.0, %v1595
        %v1597 = vpop.f32.mrf.mxu0
        %1598 = vmatprep.mubr.f32.mxu0 0.0
        %1599 = vmatmul.mubr.f32.gmra.mxu0 %v1505
        %v1600 = vpop.f32.mrf.mxu0
        %v1601 = vadd.f32 0.0, %v1600
        %v1602 = vpop.f32.mrf.mxu0
        %1603 = vmatprep.mubr.f32.mxu0 0.0
        %1604 = vmatmul.mubr.f32.gmra.mxu0 %v1506
        %v1605 = vpop.f32.mrf.mxu0
        %v1606 = vadd.f32 0.0, %v1605
        %v1607 = vpop.f32.mrf.mxu0
        %1608 = vmatprep.mubr.f32.mxu0 0.0
        %1609 = vmatmul.mubr.f32.gmra.mxu0 %v1507
        %v1610 = vpop.f32.mrf.mxu0
        %v1611 = vadd.f32 0.0, %v1610
        %v1612 = vpop.f32.mrf.mxu0
        %1613 = vmatprep.mubr.f32.mxu0 0.0
        %1614 = vmatmul.mubr.f32.gmra.mxu0 %v1508
        %v1615 = vpop.f32.mrf.mxu0
        %v1616 = vadd.f32 0.0, %v1615
        %v1617 = vpop.f32.mrf.mxu0
        %1618 = vmatprep.mubr.f32.mxu0 0.0
        %1619 = vmatmul.mubr.f32.gmra.mxu0 %v1509
        %v1620 = vpop.f32.mrf.mxu0
        %v1621 = vadd.f32 0.0, %v1620
        %v1622 = vpop.f32.mrf.mxu0
        %1623 = vmatprep.mubr.f32.mxu0 0.0
        %1624 = vmatmul.mubr.f32.gmra.mxu0 %v1510
        %v1625 = vpop.f32.mrf.mxu0
        %v1626 = vadd.f32 0.0, %v1625
        %v1627 = vpop.f32.mrf.mxu0
        %1628 = vmatprep.mubr.f32.mxu0 0.0
        %1629 = vmatmul.mubr.f32.gmra.mxu0 %v1511
        %v1630 = vpop.f32.mrf.mxu0
        %v1631 = vadd.f32 0.0, %v1630
        %v1632 = vpop.f32.mrf.mxu0
        %1633 = vdwg.mxu0
        %v1634 = vmax.f32 %v1596, 0.0
        %v1635 = vmax.f32 %v1601, 0.0
        %v1636 = vmax.f32 %v1606, 0.0
        %v1637 = vmax.f32 %v1611, 0.0
        %v1638 = vmax.f32 %v1616, 0.0
        %v1639 = vmax.f32 %v1621, 0.0
        %v1640 = vmax.f32 %v1626, 0.0
        %v1641 = vmax.f32 %v1631, 0.0
        %s1642 = scalar_lea.vmem [#allocation10], 256
        %v1643 = vld [vmem:[%s1642] sm:$0xff]
        %v1644 = vld [vmem:[%s1642 + $0x8] sm:$0xff]
        %v1645 = vld [vmem:[%s1642 + $0x10] sm:$0xff]
        %v1646 = vld [vmem:[%s1642 + $0x18] sm:$0xff]
        %v1647 = vld [vmem:[%s1642 + $0x20] sm:$0xff]
        %v1648 = vld [vmem:[%s1642 + $0x28] sm:$0xff]
        %v1649 = vld [vmem:[%s1642 + $0x30] sm:$0xff]
        %v1650 = vld [vmem:[%s1642 + $0x38] sm:$0xff]
        %v1651 = vld [vmem:[%s1642 + $0x40] sm:$0xff]
        %v1652 = vld [vmem:[%s1642 + $0x48] sm:$0xff]
        %v1653 = vld [vmem:[%s1642 + $0x50] sm:$0xff]
        %v1654 = vld [vmem:[%s1642 + $0x58] sm:$0xff]
        %v1655 = vld [vmem:[%s1642 + $0x60] sm:$0xff]
        %v1656 = vld [vmem:[%s1642 + $0x68] sm:$0xff]
        %v1657 = vld [vmem:[%s1642 + $0x70] sm:$0xff]
        %v1658 = vld [vmem:[%s1642 + $0x78] sm:$0xff]
        %1659 = vmatprep.subr.mxu0 0.0
        %1660 = vmatpush1.msra.mxu0 %v1658
        %1661 = vmatprep.subr.mxu0 0.0
        %1662 = vmatpush1.msra.mxu0 %v1657
        %1663 = vmatprep.subr.mxu0 0.0
        %1664 = vmatpush1.msra.mxu0 %v1656
        %1665 = vmatprep.subr.mxu0 0.0
        %1666 = vmatpush1.msra.mxu0 %v1655
        %1667 = vmatprep.subr.mxu0 0.0
        %1668 = vmatpush1.msra.mxu0 %v1654
        %1669 = vmatprep.subr.mxu0 0.0
        %1670 = vmatpush1.msra.mxu0 %v1653
        %1671 = vmatprep.subr.mxu0 0.0
        %1672 = vmatpush1.msra.mxu0 %v1652
        %1673 = vmatprep.subr.mxu0 0.0
        %1674 = vmatpush1.msra.mxu0 %v1651
        %1675 = vmatprep.subr.mxu0 0.0
        %1676 = vmatpush1.msra.mxu0 %v1650
        %1677 = vmatprep.subr.mxu0 0.0
        %1678 = vmatpush1.msra.mxu0 %v1649
        %1679 = vmatprep.subr.mxu0 0.0
        %1680 = vmatpush1.msra.mxu0 %v1648
        %1681 = vmatprep.subr.mxu0 0.0
        %1682 = vmatpush1.msra.mxu0 %v1647
        %1683 = vmatprep.subr.mxu0 0.0
        %1684 = vmatpush1.msra.mxu0 %v1646
        %1685 = vmatprep.subr.mxu0 0.0
        %1686 = vmatpush1.msra.mxu0 %v1645
        %1687 = vmatprep.subr.mxu0 0.0
        %1688 = vmatpush1.msra.mxu0 %v1644
        %1689 = vmatprep.subr.mxu0 0.0
        %1690 = vmatpush1.msra.mxu0 %v1643
        %1691 = vmatprep.subr.mxu0 0.0
        %1692 = vmatpush2.msra.mxu0 0.0
        %1693 = vmatprep.subr.mxu0 0.0
        %1694 = vmatpush2.msra.mxu0 0.0
        %1695 = vmatprep.subr.mxu0 0.0
        %1696 = vmatpush2.msra.mxu0 0.0
        %1697 = vmatprep.subr.mxu0 0.0
        %1698 = vmatpush2.msra.mxu0 0.0
        %1699 = vmatprep.subr.mxu0 0.0
        %1700 = vmatpush2.msra.mxu0 0.0
        %1701 = vmatprep.subr.mxu0 0.0
        %1702 = vmatpush2.msra.mxu0 0.0
        %1703 = vmatprep.subr.mxu0 0.0
        %1704 = vmatpush2.msra.mxu0 0.0
        %1705 = vmatprep.subr.mxu0 0.0
        %1706 = vmatpush2.msra.mxu0 0.0
        %1707 = vmatprep.subr.mxu0 0.0
        %1708 = vmatpush2.msra.mxu0 0.0
        %1709 = vmatprep.subr.mxu0 0.0
        %1710 = vmatpush2.msra.mxu0 0.0
        %1711 = vmatprep.subr.mxu0 0.0
        %1712 = vmatpush2.msra.mxu0 0.0
        %1713 = vmatprep.subr.mxu0 0.0
        %1714 = vmatpush2.msra.mxu0 0.0
        %1715 = vmatprep.subr.mxu0 0.0
        %1716 = vmatpush2.msra.mxu0 0.0
        %1717 = vmatprep.subr.mxu0 0.0
        %1718 = vmatpush2.msra.mxu0 0.0
        %1719 = vmatprep.subr.mxu0 0.0
        %1720 = vmatpush2.msra.mxu0 0.0
        %1721 = vmatprep.subr.mxu0 0.0
        %1722 = vmatpush2.msra.mxu0 0.0
        %1723 = vmatprep.mubr.f32.mxu0 0.0
        %1724 = vmatmul.mubr.f32.gmra.mxu0 %v1634
        %v1725 = vpop.f32.mrf.mxu0
        %v1726 = vadd.f32 0.0, %v1725
        %v1727 = vpop.f32.mrf.mxu0
        %1728 = vmatprep.mubr.f32.mxu0 0.0
        %1729 = vmatmul.mubr.f32.gmra.mxu0 %v1635
        %v1730 = vpop.f32.mrf.mxu0
        %v1731 = vadd.f32 0.0, %v1730
        %v1732 = vpop.f32.mrf.mxu0
        %1733 = vmatprep.mubr.f32.mxu0 0.0
        %1734 = vmatmul.mubr.f32.gmra.mxu0 %v1636
        %v1735 = vpop.f32.mrf.mxu0
        %v1736 = vadd.f32 0.0, %v1735
        %v1737 = vpop.f32.mrf.mxu0
        %1738 = vmatprep.mubr.f32.mxu0 0.0
        %1739 = vmatmul.mubr.f32.gmra.mxu0 %v1637
        %v1740 = vpop.f32.mrf.mxu0
        %v1741 = vadd.f32 0.0, %v1740
        %v1742 = vpop.f32.mrf.mxu0
        %1743 = vmatprep.mubr.f32.mxu0 0.0
        %1744 = vmatmul.mubr.f32.gmra.mxu0 %v1638
        %v1745 = vpop.f32.mrf.mxu0
        %v1746 = vadd.f32 0.0, %v1745
        %v1747 = vpop.f32.mrf.mxu0
        %1748 = vmatprep.mubr.f32.mxu0 0.0
        %1749 = vmatmul.mubr.f32.gmra.mxu0 %v1639
        %v1750 = vpop.f32.mrf.mxu0
        %v1751 = vadd.f32 0.0, %v1750
        %v1752 = vpop.f32.mrf.mxu0
        %1753 = vmatprep.mubr.f32.mxu0 0.0
        %1754 = vmatmul.mubr.f32.gmra.mxu0 %v1640
        %v1755 = vpop.f32.mrf.mxu0
        %v1756 = vadd.f32 0.0, %v1755
        %v1757 = vpop.f32.mrf.mxu0
        %1758 = vmatprep.mubr.f32.mxu0 0.0
        %1759 = vmatmul.mubr.f32.gmra.mxu0 %v1641
        %v1760 = vpop.f32.mrf.mxu0
        %v1761 = vadd.f32 0.0, %v1760
        %v1762 = vpop.f32.mrf.mxu0
        %1763 = vdwg.mxu0
        %v1764 = vadd.f32 %v1190, %v1726
        %v1765 = vadd.f32 %v1195, %v1731
        %v1766 = vadd.f32 %v1200, %v1736
        %v1767 = vadd.f32 %v1205, %v1741
        %v1768 = vadd.f32 %v1210, %v1746
        %v1769 = vadd.f32 %v1215, %v1751
        %v1770 = vadd.f32 %v1220, %v1756
        %v1771 = vadd.f32 %v1225, %v1761
        %s1772 = scalar_lea.vmem [#allocation2], %s433
        %v1773 = vld [vmem:[%s1772] sm:$0xff]
        %v1774 = vld [vmem:[%s1772 + $0x8] sm:$0xff]
        %v1775 = vld [vmem:[%s1772 + $0x20] sm:$0xff]
        %v1776 = vld [vmem:[%s1772 + $0x28] sm:$0xff]
        %v1777 = vld [vmem:[%s1772 + $0x40] sm:$0xff]
        %v1778 = vld [vmem:[%s1772 + $0x48] sm:$0xff]
        %v1779 = vld [vmem:[%s1772 + $0x60] sm:$0xff]
        %v1780 = vld [vmem:[%s1772 + $0x68] sm:$0xff]
        %s1781 = scalar_lea.vmem [#allocation7], 18
        %v1782 = vld [vmem:[%s1781] sm:$0x1]
        %v1784 = vlaneseq
        %v1785 = vshrl.u32 %v1784, 7
        %v1786 = vsub.s32 0, %v1785
        %v1787 = vrot.slane %v1782, %v1786
        %v1789 = vmul.f32 %v1773, %v1787
        %v1790 = vmul.f32 %v1774, %v1787
        %v1791 = vmul.f32 %v1775, %v1787
        %v1792 = vmul.f32 %v1776, %v1787
        %v1793 = vmul.f32 %v1777, %v1787
        %v1794 = vmul.f32 %v1778, %v1787
        %v1795 = vmul.f32 %v1779, %v1787
        %v1796 = vmul.f32 %v1780, %v1787
        %v1797 = vadd.f32 %v1789, 0.0
        %v1798 = vadd.f32 %v1790, 0.0
        %v1799 = vadd.f32 %v1791, 0.0
        %v1800 = vadd.f32 %v1792, 0.0
        %v1801 = vadd.f32 %v1793, 0.0
        %v1802 = vadd.f32 %v1794, 0.0
        %v1803 = vadd.f32 %v1795, 0.0
        %v1804 = vadd.f32 %v1796, 0.0
        %v1805 = vld [vmem:[%s1772 + $0x3] sm:$0xff]
        %v1806 = vld [vmem:[%s1772 + $0xb] sm:$0xff]
        %v1807 = vld [vmem:[%s1772 + $0x23] sm:$0xff]
        %v1808 = vld [vmem:[%s1772 + $0x2b] sm:$0xff]
        %v1809 = vld [vmem:[%s1772 + $0x43] sm:$0xff]
        %v1810 = vld [vmem:[%s1772 + $0x4b] sm:$0xff]
        %v1811 = vld [vmem:[%s1772 + $0x63] sm:$0xff]
        %v1812 = vld [vmem:[%s1772 + $0x6b] sm:$0xff]
        %s1813 = scalar_lea.vmem [#allocation7], 19
        %v1814 = vld [vmem:[%s1813] sm:$0x1]
        %v1816 = vlaneseq
        %v1817 = vshrl.u32 %v1816, 7
        %v1818 = vsub.s32 0, %v1817
        %v1819 = vrot.slane %v1814, %v1818
        %v1821 = vmul.f32 %v1805, %v1819
        %v1822 = vmul.f32 %v1806, %v1819
        %v1823 = vmul.f32 %v1807, %v1819
        %v1824 = vmul.f32 %v1808, %v1819
        %v1825 = vmul.f32 %v1809, %v1819
        %v1826 = vmul.f32 %v1810, %v1819
        %v1827 = vmul.f32 %v1811, %v1819
        %v1828 = vmul.f32 %v1812, %v1819
        %v1829 = vadd.f32 %v1797, %v1821
        %v1830 = vadd.f32 %v1798, %v1822
        %v1831 = vadd.f32 %v1799, %v1823
        %v1832 = vadd.f32 %v1800, %v1824
        %v1833 = vadd.f32 %v1801, %v1825
        %v1834 = vadd.f32 %v1802, %v1826
        %v1835 = vadd.f32 %v1803, %v1827
        %v1836 = vadd.f32 %v1804, %v1828
        %v1837 = vld [vmem:[%s1772 + $0x6] sm:$0xff]
        %v1838 = vld [vmem:[%s1772 + $0xe] sm:$0xff]
        %v1839 = vld [vmem:[%s1772 + $0x26] sm:$0xff]
        %v1840 = vld [vmem:[%s1772 + $0x2e] sm:$0xff]
        %v1841 = vld [vmem:[%s1772 + $0x46] sm:$0xff]
        %v1842 = vld [vmem:[%s1772 + $0x4e] sm:$0xff]
        %v1843 = vld [vmem:[%s1772 + $0x66] sm:$0xff]
        %v1844 = vld [vmem:[%s1772 + $0x6e] sm:$0xff]
        %s1845 = scalar_lea.vmem [#allocation7], 20
        %v1846 = vld [vmem:[%s1845] sm:$0x1]
        %v1848 = vlaneseq
        %v1849 = vshrl.u32 %v1848, 7
        %v1850 = vsub.s32 0, %v1849
        %v1851 = vrot.slane %v1846, %v1850
        %v1853 = vmul.f32 %v1837, %v1851
        %v1854 = vmul.f32 %v1838, %v1851
        %v1855 = vmul.f32 %v1839, %v1851
        %v1856 = vmul.f32 %v1840, %v1851
        %v1857 = vmul.f32 %v1841, %v1851
        %v1858 = vmul.f32 %v1842, %v1851
        %v1859 = vmul.f32 %v1843, %v1851
        %v1860 = vmul.f32 %v1844, %v1851
        %v1861 = vadd.f32 %v1829, %v1853
        %v1862 = vadd.f32 %v1830, %v1854
        %v1863 = vadd.f32 %v1831, %v1855
        %v1864 = vadd.f32 %v1832, %v1856
        %v1865 = vadd.f32 %v1833, %v1857
        %v1866 = vadd.f32 %v1834, %v1858
        %v1867 = vadd.f32 %v1835, %v1859
        %v1868 = vadd.f32 %v1836, %v1860
        %v1869 = vld [vmem:[%s435] sm:$0xff]
        %v1870 = vld [vmem:[%s435 + $0x8] sm:$0xff]
        %v1871 = vld [vmem:[%s435 + $0x20] sm:$0xff]
        %v1872 = vld [vmem:[%s435 + $0x28] sm:$0xff]
        %v1873 = vld [vmem:[%s435 + $0x40] sm:$0xff]
        %v1874 = vld [vmem:[%s435 + $0x48] sm:$0xff]
        %v1875 = vld [vmem:[%s435 + $0x60] sm:$0xff]
        %v1876 = vld [vmem:[%s435 + $0x68] sm:$0xff]
        %s1877 = scalar_lea.vmem [#allocation7], 21
        %v1878 = vld [vmem:[%s1877] sm:$0x1]
        %v1880 = vlaneseq
        %v1881 = vshrl.u32 %v1880, 7
        %v1882 = vsub.s32 0, %v1881
        %v1883 = vrot.slane %v1878, %v1882
        %v1885 = vmul.f32 %v1869, %v1883
        %v1886 = vmul.f32 %v1870, %v1883
        %v1887 = vmul.f32 %v1871, %v1883
        %v1888 = vmul.f32 %v1872, %v1883
        %v1889 = vmul.f32 %v1873, %v1883
        %v1890 = vmul.f32 %v1874, %v1883
        %v1891 = vmul.f32 %v1875, %v1883
        %v1892 = vmul.f32 %v1876, %v1883
        %v1893 = vadd.f32 %v1861, %v1885
        %v1894 = vadd.f32 %v1862, %v1886
        %v1895 = vadd.f32 %v1863, %v1887
        %v1896 = vadd.f32 %v1864, %v1888
        %v1897 = vadd.f32 %v1865, %v1889
        %v1898 = vadd.f32 %v1866, %v1890
        %v1899 = vadd.f32 %v1867, %v1891
        %v1900 = vadd.f32 %v1868, %v1892
        %s1901 = scalar_lea.vmem [#allocation7], 22
        %v1902 = vld [vmem:[%s1901] sm:$0x1]
        %v1904 = vlaneseq
        %v1905 = vshrl.u32 %v1904, 7
        %v1906 = vsub.s32 0, %v1905
        %v1907 = vrot.slane %v1902, %v1906
        %v1909 = vmul.f32 %v436, %v1907
        %v1910 = vmul.f32 %v437, %v1907
        %v1911 = vmul.f32 %v438, %v1907
        %v1912 = vmul.f32 %v439, %v1907
        %v1913 = vmul.f32 %v440, %v1907
        %v1914 = vmul.f32 %v441, %v1907
        %v1915 = vmul.f32 %v442, %v1907
        %v1916 = vmul.f32 %v443, %v1907
        %v1917 = vadd.f32 %v1893, %v1909
        %v1918 = vadd.f32 %v1894, %v1910
        %v1919 = vadd.f32 %v1895, %v1911
        %v1920 = vadd.f32 %v1896, %v1912
        %v1921 = vadd.f32 %v1897, %v1913
        %v1922 = vadd.f32 %v1898, %v1914
        %v1923 = vadd.f32 %v1899, %v1915
        %v1924 = vadd.f32 %v1900, %v1916
        %v1925 = vld [vmem:[%s435 + $0x6] sm:$0xff]
        %v1926 = vld [vmem:[%s435 + $0xe] sm:$0xff]
        %v1927 = vld [vmem:[%s435 + $0x26] sm:$0xff]
        %v1928 = vld [vmem:[%s435 + $0x2e] sm:$0xff]
        %v1929 = vld [vmem:[%s435 + $0x46] sm:$0xff]
        %v1930 = vld [vmem:[%s435 + $0x4e] sm:$0xff]
        %v1931 = vld [vmem:[%s435 + $0x66] sm:$0xff]
        %v1932 = vld [vmem:[%s435 + $0x6e] sm:$0xff]
        %s1933 = scalar_lea.vmem [#allocation7], 23
        %v1934 = vld [vmem:[%s1933] sm:$0x1]
        %v1936 = vlaneseq
        %v1937 = vshrl.u32 %v1936, 7
        %v1938 = vsub.s32 0, %v1937
        %v1939 = vrot.slane %v1934, %v1938
        %v1941 = vmul.f32 %v1925, %v1939
        %v1942 = vmul.f32 %v1926, %v1939
        %v1943 = vmul.f32 %v1927, %v1939
        %v1944 = vmul.f32 %v1928, %v1939
        %v1945 = vmul.f32 %v1929, %v1939
        %v1946 = vmul.f32 %v1930, %v1939
        %v1947 = vmul.f32 %v1931, %v1939
        %v1948 = vmul.f32 %v1932, %v1939
        %v1949 = vadd.f32 %v1917, %v1941
        %v1950 = vadd.f32 %v1918, %v1942
        %v1951 = vadd.f32 %v1919, %v1943
        %v1952 = vadd.f32 %v1920, %v1944
        %v1953 = vadd.f32 %v1921, %v1945
        %v1954 = vadd.f32 %v1922, %v1946
        %v1955 = vadd.f32 %v1923, %v1947
        %v1956 = vadd.f32 %v1924, %v1948
        %s1957 = sadd.s32 192, %s433
        %s1958 = scalar_lea.vmem [#allocation2], %s1957
        %v1959 = vld [vmem:[%s1958] sm:$0xff]
        %v1960 = vld [vmem:[%s1958 + $0x8] sm:$0xff]
        %v1961 = vld [vmem:[%s1958 + $0x20] sm:$0xff]
        %v1962 = vld [vmem:[%s1958 + $0x28] sm:$0xff]
        %v1963 = vld [vmem:[%s1958 + $0x40] sm:$0xff]
        %v1964 = vld [vmem:[%s1958 + $0x48] sm:$0xff]
        %v1965 = vld [vmem:[%s1958 + $0x60] sm:$0xff]
        %v1966 = vld [vmem:[%s1958 + $0x68] sm:$0xff]
        %s1967 = scalar_lea.vmem [#allocation7], 24
        %v1968 = vld [vmem:[%s1967] sm:$0x1]
        %v1970 = vlaneseq
        %v1971 = vshrl.u32 %v1970, 7
        %v1972 = vsub.s32 0, %v1971
        %v1973 = vrot.slane %v1968, %v1972
        %v1975 = vmul.f32 %v1959, %v1973
        %v1976 = vmul.f32 %v1960, %v1973
        %v1977 = vmul.f32 %v1961, %v1973
        %v1978 = vmul.f32 %v1962, %v1973
        %v1979 = vmul.f32 %v1963, %v1973
        %v1980 = vmul.f32 %v1964, %v1973
        %v1981 = vmul.f32 %v1965, %v1973
        %v1982 = vmul.f32 %v1966, %v1973
        %v1983 = vadd.f32 %v1949, %v1975
        %v1984 = vadd.f32 %v1950, %v1976
        %v1985 = vadd.f32 %v1951, %v1977
        %v1986 = vadd.f32 %v1952, %v1978
        %v1987 = vadd.f32 %v1953, %v1979
        %v1988 = vadd.f32 %v1954, %v1980
        %v1989 = vadd.f32 %v1955, %v1981
        %v1990 = vadd.f32 %v1956, %v1982
        %v1991 = vld [vmem:[%s1958 + $0x3] sm:$0xff]
        %v1992 = vld [vmem:[%s1958 + $0xb] sm:$0xff]
        %v1993 = vld [vmem:[%s1958 + $0x23] sm:$0xff]
        %v1994 = vld [vmem:[%s1958 + $0x2b] sm:$0xff]
        %v1995 = vld [vmem:[%s1958 + $0x43] sm:$0xff]
        %v1996 = vld [vmem:[%s1958 + $0x4b] sm:$0xff]
        %v1997 = vld [vmem:[%s1958 + $0x63] sm:$0xff]
        %v1998 = vld [vmem:[%s1958 + $0x6b] sm:$0xff]
        %s1999 = scalar_lea.vmem [#allocation7], 25
        %v2000 = vld [vmem:[%s1999] sm:$0x1]
        %v2002 = vlaneseq
        %v2003 = vshrl.u32 %v2002, 7
        %v2004 = vsub.s32 0, %v2003
        %v2005 = vrot.slane %v2000, %v2004
        %v2007 = vmul.f32 %v1991, %v2005
        %v2008 = vmul.f32 %v1992, %v2005
        %v2009 = vmul.f32 %v1993, %v2005
        %v2010 = vmul.f32 %v1994, %v2005
        %v2011 = vmul.f32 %v1995, %v2005
        %v2012 = vmul.f32 %v1996, %v2005
        %v2013 = vmul.f32 %v1997, %v2005
        %v2014 = vmul.f32 %v1998, %v2005
        %v2015 = vadd.f32 %v1983, %v2007
        %v2016 = vadd.f32 %v1984, %v2008
        %v2017 = vadd.f32 %v1985, %v2009
        %v2018 = vadd.f32 %v1986, %v2010
        %v2019 = vadd.f32 %v1987, %v2011
        %v2020 = vadd.f32 %v1988, %v2012
        %v2021 = vadd.f32 %v1989, %v2013
        %v2022 = vadd.f32 %v1990, %v2014
        %v2023 = vld [vmem:[%s1958 + $0x6] sm:$0xff]
        %v2024 = vld [vmem:[%s1958 + $0xe] sm:$0xff]
        %v2025 = vld [vmem:[%s1958 + $0x26] sm:$0xff]
        %v2026 = vld [vmem:[%s1958 + $0x2e] sm:$0xff]
        %v2027 = vld [vmem:[%s1958 + $0x46] sm:$0xff]
        %v2028 = vld [vmem:[%s1958 + $0x4e] sm:$0xff]
        %v2029 = vld [vmem:[%s1958 + $0x66] sm:$0xff]
        %v2030 = vld [vmem:[%s1958 + $0x6e] sm:$0xff]
        %s2031 = scalar_lea.vmem [#allocation7], 26
        %v2032 = vld [vmem:[%s2031] sm:$0x1]
        %v2034 = vlaneseq
        %v2035 = vshrl.u32 %v2034, 7
        %v2036 = vsub.s32 0, %v2035
        %v2037 = vrot.slane %v2032, %v2036
        %v2039 = vmul.f32 %v2023, %v2037
        %v2040 = vmul.f32 %v2024, %v2037
        %v2041 = vmul.f32 %v2025, %v2037
        %v2042 = vmul.f32 %v2026, %v2037
        %v2043 = vmul.f32 %v2027, %v2037
        %v2044 = vmul.f32 %v2028, %v2037
        %v2045 = vmul.f32 %v2029, %v2037
        %v2046 = vmul.f32 %v2030, %v2037
        %v2047 = vadd.f32 %v2015, %v2039
        %v2048 = vadd.f32 %v2016, %v2040
        %v2049 = vadd.f32 %v2017, %v2041
        %v2050 = vadd.f32 %v2018, %v2042
        %v2051 = vadd.f32 %v2019, %v2043
        %v2052 = vadd.f32 %v2020, %v2044
        %v2053 = vadd.f32 %v2021, %v2045
        %v2054 = vadd.f32 %v2022, %v2046
        %s2055 = scalar_lea.vmem [#allocation9], 256
        %v2056 = vld [vmem:[%s2055] sm:$0xff]
        %v2057 = vld [vmem:[%s2055 + $0x8] sm:$0xff]
        %v2058 = vld [vmem:[%s2055 + $0x10] sm:$0xff]
        %v2059 = vld [vmem:[%s2055 + $0x18] sm:$0xff]
        %v2060 = vld [vmem:[%s2055 + $0x20] sm:$0xff]
        %v2061 = vld [vmem:[%s2055 + $0x28] sm:$0xff]
        %v2062 = vld [vmem:[%s2055 + $0x30] sm:$0xff]
        %v2063 = vld [vmem:[%s2055 + $0x38] sm:$0xff]
        %v2064 = vld [vmem:[%s2055 + $0x40] sm:$0xff]
        %v2065 = vld [vmem:[%s2055 + $0x48] sm:$0xff]
        %v2066 = vld [vmem:[%s2055 + $0x50] sm:$0xff]
        %v2067 = vld [vmem:[%s2055 + $0x58] sm:$0xff]
        %v2068 = vld [vmem:[%s2055 + $0x60] sm:$0xff]
        %v2069 = vld [vmem:[%s2055 + $0x68] sm:$0xff]
        %v2070 = vld [vmem:[%s2055 + $0x70] sm:$0xff]
        %v2071 = vld [vmem:[%s2055 + $0x78] sm:$0xff]
        %2072 = vmatprep.subr.mxu0 0.0
        %2073 = vmatpush1.msra.mxu0 %v2071
        %2074 = vmatprep.subr.mxu0 0.0
        %2075 = vmatpush1.msra.mxu0 %v2070
        %2076 = vmatprep.subr.mxu0 0.0
        %2077 = vmatpush1.msra.mxu0 %v2069
        %2078 = vmatprep.subr.mxu0 0.0
        %2079 = vmatpush1.msra.mxu0 %v2068
        %2080 = vmatprep.subr.mxu0 0.0
        %2081 = vmatpush1.msra.mxu0 %v2067
        %2082 = vmatprep.subr.mxu0 0.0
        %2083 = vmatpush1.msra.mxu0 %v2066
        %2084 = vmatprep.subr.mxu0 0.0
        %2085 = vmatpush1.msra.mxu0 %v2065
        %2086 = vmatprep.subr.mxu0 0.0
        %2087 = vmatpush1.msra.mxu0 %v2064
        %2088 = vmatprep.subr.mxu0 0.0
        %2089 = vmatpush1.msra.mxu0 %v2063
        %2090 = vmatprep.subr.mxu0 0.0
        %2091 = vmatpush1.msra.mxu0 %v2062
        %2092 = vmatprep.subr.mxu0 0.0
        %2093 = vmatpush1.msra.mxu0 %v2061
        %2094 = vmatprep.subr.mxu0 0.0
        %2095 = vmatpush1.msra.mxu0 %v2060
        %2096 = vmatprep.subr.mxu0 0.0
        %2097 = vmatpush1.msra.mxu0 %v2059
        %2098 = vmatprep.subr.mxu0 0.0
        %2099 = vmatpush1.msra.mxu0 %v2058
        %2100 = vmatprep.subr.mxu0 0.0
        %2101 = vmatpush1.msra.mxu0 %v2057
        %2102 = vmatprep.subr.mxu0 0.0
        %2103 = vmatpush1.msra.mxu0 %v2056
        %2104 = vmatprep.subr.mxu0 0.0
        %2105 = vmatpush2.msra.mxu0 0.0
        %2106 = vmatprep.subr.mxu0 0.0
        %2107 = vmatpush2.msra.mxu0 0.0
        %2108 = vmatprep.subr.mxu0 0.0
        %2109 = vmatpush2.msra.mxu0 0.0
        %2110 = vmatprep.subr.mxu0 0.0
        %2111 = vmatpush2.msra.mxu0 0.0
        %2112 = vmatprep.subr.mxu0 0.0
        %2113 = vmatpush2.msra.mxu0 0.0
        %2114 = vmatprep.subr.mxu0 0.0
        %2115 = vmatpush2.msra.mxu0 0.0
        %2116 = vmatprep.subr.mxu0 0.0
        %2117 = vmatpush2.msra.mxu0 0.0
        %2118 = vmatprep.subr.mxu0 0.0
        %2119 = vmatpush2.msra.mxu0 0.0
        %2120 = vmatprep.subr.mxu0 0.0
        %2121 = vmatpush2.msra.mxu0 0.0
        %2122 = vmatprep.subr.mxu0 0.0
        %2123 = vmatpush2.msra.mxu0 0.0
        %2124 = vmatprep.subr.mxu0 0.0
        %2125 = vmatpush2.msra.mxu0 0.0
        %2126 = vmatprep.subr.mxu0 0.0
        %2127 = vmatpush2.msra.mxu0 0.0
        %2128 = vmatprep.subr.mxu0 0.0
        %2129 = vmatpush2.msra.mxu0 0.0
        %2130 = vmatprep.subr.mxu0 0.0
        %2131 = vmatpush2.msra.mxu0 0.0
        %2132 = vmatprep.subr.mxu0 0.0
        %2133 = vmatpush2.msra.mxu0 0.0
        %2134 = vmatprep.subr.mxu0 0.0
        %2135 = vmatpush2.msra.mxu0 0.0
        %2136 = vmatprep.mubr.f32.mxu0 0.0
        %2137 = vmatmul.mubr.f32.gmra.mxu0 %v2047
        %v2138 = vpop.f32.mrf.mxu0
        %v2139 = vadd.f32 0.0, %v2138
        %v2140 = vpop.f32.mrf.mxu0
        %2141 = vmatprep.mubr.f32.mxu0 0.0
        %2142 = vmatmul.mubr.f32.gmra.mxu0 %v2048
        %v2143 = vpop.f32.mrf.mxu0
        %v2144 = vadd.f32 0.0, %v2143
        %v2145 = vpop.f32.mrf.mxu0
        %2146 = vmatprep.mubr.f32.mxu0 0.0
        %2147 = vmatmul.mubr.f32.gmra.mxu0 %v2049
        %v2148 = vpop.f32.mrf.mxu0
        %v2149 = vadd.f32 0.0, %v2148
        %v2150 = vpop.f32.mrf.mxu0
        %2151 = vmatprep.mubr.f32.mxu0 0.0
        %2152 = vmatmul.mubr.f32.gmra.mxu0 %v2050
        %v2153 = vpop.f32.mrf.mxu0
        %v2154 = vadd.f32 0.0, %v2153
        %v2155 = vpop.f32.mrf.mxu0
        %2156 = vmatprep.mubr.f32.mxu0 0.0
        %2157 = vmatmul.mubr.f32.gmra.mxu0 %v2051
        %v2158 = vpop.f32.mrf.mxu0
        %v2159 = vadd.f32 0.0, %v2158
        %v2160 = vpop.f32.mrf.mxu0
        %2161 = vmatprep.mubr.f32.mxu0 0.0
        %2162 = vmatmul.mubr.f32.gmra.mxu0 %v2052
        %v2163 = vpop.f32.mrf.mxu0
        %v2164 = vadd.f32 0.0, %v2163
        %v2165 = vpop.f32.mrf.mxu0
        %2166 = vmatprep.mubr.f32.mxu0 0.0
        %2167 = vmatmul.mubr.f32.gmra.mxu0 %v2053
        %v2168 = vpop.f32.mrf.mxu0
        %v2169 = vadd.f32 0.0, %v2168
        %v2170 = vpop.f32.mrf.mxu0
        %2171 = vmatprep.mubr.f32.mxu0 0.0
        %2172 = vmatmul.mubr.f32.gmra.mxu0 %v2054
        %v2173 = vpop.f32.mrf.mxu0
        %v2174 = vadd.f32 0.0, %v2173
        %v2175 = vpop.f32.mrf.mxu0
        %2176 = vdwg.mxu0
        %v2177 = vmax.f32 %v2139, 0.0
        %v2178 = vmax.f32 %v2144, 0.0
        %v2179 = vmax.f32 %v2149, 0.0
        %v2180 = vmax.f32 %v2154, 0.0
        %v2181 = vmax.f32 %v2159, 0.0
        %v2182 = vmax.f32 %v2164, 0.0
        %v2183 = vmax.f32 %v2169, 0.0
        %v2184 = vmax.f32 %v2174, 0.0
        %s2185 = scalar_lea.vmem [#allocation10], 384
        %v2186 = vld [vmem:[%s2185] sm:$0xff]
        %v2187 = vld [vmem:[%s2185 + $0x8] sm:$0xff]
        %v2188 = vld [vmem:[%s2185 + $0x10] sm:$0xff]
        %v2189 = vld [vmem:[%s2185 + $0x18] sm:$0xff]
        %v2190 = vld [vmem:[%s2185 + $0x20] sm:$0xff]
        %v2191 = vld [vmem:[%s2185 + $0x28] sm:$0xff]
        %v2192 = vld [vmem:[%s2185 + $0x30] sm:$0xff]
        %v2193 = vld [vmem:[%s2185 + $0x38] sm:$0xff]
        %v2194 = vld [vmem:[%s2185 + $0x40] sm:$0xff]
        %v2195 = vld [vmem:[%s2185 + $0x48] sm:$0xff]
        %v2196 = vld [vmem:[%s2185 + $0x50] sm:$0xff]
        %v2197 = vld [vmem:[%s2185 + $0x58] sm:$0xff]
        %v2198 = vld [vmem:[%s2185 + $0x60] sm:$0xff]
        %v2199 = vld [vmem:[%s2185 + $0x68] sm:$0xff]
        %v2200 = vld [vmem:[%s2185 + $0x70] sm:$0xff]
        %v2201 = vld [vmem:[%s2185 + $0x78] sm:$0xff]
        %2202 = vmatprep.subr.mxu0 0.0
        %2203 = vmatpush1.msra.mxu0 %v2201
        %2204 = vmatprep.subr.mxu0 0.0
        %2205 = vmatpush1.msra.mxu0 %v2200
        %2206 = vmatprep.subr.mxu0 0.0
        %2207 = vmatpush1.msra.mxu0 %v2199
        %2208 = vmatprep.subr.mxu0 0.0
        %2209 = vmatpush1.msra.mxu0 %v2198
        %2210 = vmatprep.subr.mxu0 0.0
        %2211 = vmatpush1.msra.mxu0 %v2197
        %2212 = vmatprep.subr.mxu0 0.0
        %2213 = vmatpush1.msra.mxu0 %v2196
        %2214 = vmatprep.subr.mxu0 0.0
        %2215 = vmatpush1.msra.mxu0 %v2195
        %2216 = vmatprep.subr.mxu0 0.0
        %2217 = vmatpush1.msra.mxu0 %v2194
        %2218 = vmatprep.subr.mxu0 0.0
        %2219 = vmatpush1.msra.mxu0 %v2193
        %2220 = vmatprep.subr.mxu0 0.0
        %2221 = vmatpush1.msra.mxu0 %v2192
        %2222 = vmatprep.subr.mxu0 0.0
        %2223 = vmatpush1.msra.mxu0 %v2191
        %2224 = vmatprep.subr.mxu0 0.0
        %2225 = vmatpush1.msra.mxu0 %v2190
        %2226 = vmatprep.subr.mxu0 0.0
        %2227 = vmatpush1.msra.mxu0 %v2189
        %2228 = vmatprep.subr.mxu0 0.0
        %2229 = vmatpush1.msra.mxu0 %v2188
        %2230 = vmatprep.subr.mxu0 0.0
        %2231 = vmatpush1.msra.mxu0 %v2187
        %2232 = vmatprep.subr.mxu0 0.0
        %2233 = vmatpush1.msra.mxu0 %v2186
        %2234 = vmatprep.subr.mxu0 0.0
        %2235 = vmatpush2.msra.mxu0 0.0
        %2236 = vmatprep.subr.mxu0 0.0
        %2237 = vmatpush2.msra.mxu0 0.0
        %2238 = vmatprep.subr.mxu0 0.0
        %2239 = vmatpush2.msra.mxu0 0.0
        %2240 = vmatprep.subr.mxu0 0.0
        %2241 = vmatpush2.msra.mxu0 0.0
        %2242 = vmatprep.subr.mxu0 0.0
        %2243 = vmatpush2.msra.mxu0 0.0
        %2244 = vmatprep.subr.mxu0 0.0
        %2245 = vmatpush2.msra.mxu0 0.0
        %2246 = vmatprep.subr.mxu0 0.0
        %2247 = vmatpush2.msra.mxu0 0.0
        %2248 = vmatprep.subr.mxu0 0.0
        %2249 = vmatpush2.msra.mxu0 0.0
        %2250 = vmatprep.subr.mxu0 0.0
        %2251 = vmatpush2.msra.mxu0 0.0
        %2252 = vmatprep.subr.mxu0 0.0
        %2253 = vmatpush2.msra.mxu0 0.0
        %2254 = vmatprep.subr.mxu0 0.0
        %2255 = vmatpush2.msra.mxu0 0.0
        %2256 = vmatprep.subr.mxu0 0.0
        %2257 = vmatpush2.msra.mxu0 0.0
        %2258 = vmatprep.subr.mxu0 0.0
        %2259 = vmatpush2.msra.mxu0 0.0
        %2260 = vmatprep.subr.mxu0 0.0
        %2261 = vmatpush2.msra.mxu0 0.0
        %2262 = vmatprep.subr.mxu0 0.0
        %2263 = vmatpush2.msra.mxu0 0.0
        %2264 = vmatprep.subr.mxu0 0.0
        %2265 = vmatpush2.msra.mxu0 0.0
        %2266 = vmatprep.mubr.f32.mxu0 0.0
        %2267 = vmatmul.mubr.f32.gmra.mxu0 %v2177
        %v2268 = vpop.f32.mrf.mxu0
        %v2269 = vadd.f32 0.0, %v2268
        %v2270 = vpop.f32.mrf.mxu0
        %2271 = vmatprep.mubr.f32.mxu0 0.0
        %2272 = vmatmul.mubr.f32.gmra.mxu0 %v2178
        %v2273 = vpop.f32.mrf.mxu0
        %v2274 = vadd.f32 0.0, %v2273
        %v2275 = vpop.f32.mrf.mxu0
        %2276 = vmatprep.mubr.f32.mxu0 0.0
        %2277 = vmatmul.mubr.f32.gmra.mxu0 %v2179
        %v2278 = vpop.f32.mrf.mxu0
        %v2279 = vadd.f32 0.0, %v2278
        %v2280 = vpop.f32.mrf.mxu0
        %2281 = vmatprep.mubr.f32.mxu0 0.0
        %2282 = vmatmul.mubr.f32.gmra.mxu0 %v2180
        %v2283 = vpop.f32.mrf.mxu0
        %v2284 = vadd.f32 0.0, %v2283
        %v2285 = vpop.f32.mrf.mxu0
        %2286 = vmatprep.mubr.f32.mxu0 0.0
        %2287 = vmatmul.mubr.f32.gmra.mxu0 %v2181
        %v2288 = vpop.f32.mrf.mxu0
        %v2289 = vadd.f32 0.0, %v2288
        %v2290 = vpop.f32.mrf.mxu0
        %2291 = vmatprep.mubr.f32.mxu0 0.0
        %2292 = vmatmul.mubr.f32.gmra.mxu0 %v2182
        %v2293 = vpop.f32.mrf.mxu0
        %v2294 = vadd.f32 0.0, %v2293
        %v2295 = vpop.f32.mrf.mxu0
        %2296 = vmatprep.mubr.f32.mxu0 0.0
        %2297 = vmatmul.mubr.f32.gmra.mxu0 %v2183
        %v2298 = vpop.f32.mrf.mxu0
        %v2299 = vadd.f32 0.0, %v2298
        %v2300 = vpop.f32.mrf.mxu0
        %2301 = vmatprep.mubr.f32.mxu0 0.0
        %2302 = vmatmul.mubr.f32.gmra.mxu0 %v2184
        %v2303 = vpop.f32.mrf.mxu0
        %v2304 = vadd.f32 0.0, %v2303
        %v2305 = vpop.f32.mrf.mxu0
        %2306 = vdwg.mxu0
        %v2307 = vadd.f32 %v1764, %v2269
        %v2308 = vadd.f32 %v1765, %v2274
        %v2309 = vadd.f32 %v1766, %v2279
        %v2310 = vadd.f32 %v1767, %v2284
        %v2311 = vadd.f32 %v1768, %v2289
        %v2312 = vadd.f32 %v1769, %v2294
        %v2313 = vadd.f32 %v1770, %v2299
        %v2314 = vadd.f32 %v1771, %v2304
        %v2315 = vld [vmem:[%s357] sm:$0x1]
        %v2317 = vlaneseq
        %v2318 = vshrl.u32 %v2317, 7
        %v2319 = vsub.s32 0, %v2318
        %v2320 = vrot.slane %v2315, %v2319
        %v2322 = vadd.f32 %v2307, %v2320
        %v2323 = vadd.f32 %v2308, %v2320
        %v2324 = vadd.f32 %v2309, %v2320
        %v2325 = vadd.f32 %v2310, %v2320
        %v2326 = vadd.f32 %v2311, %v2320
        %v2327 = vadd.f32 %v2312, %v2320
        %v2328 = vadd.f32 %v2313, %v2320
        %v2329 = vadd.f32 %v2314, %v2320
        %v2330 = vmax.f32 %v2322, 0.0
        %v2331 = vmax.f32 %v2323, 0.0
        %v2332 = vmax.f32 %v2324, 0.0
        %v2333 = vmax.f32 %v2325, 0.0
        %v2334 = vmax.f32 %v2326, 0.0
        %v2335 = vmax.f32 %v2327, 0.0
        %v2336 = vmax.f32 %v2328, 0.0
        %v2337 = vmax.f32 %v2329, 0.0
        %v2338 = vld [vmem:[%s6] sm:$0x1]
        %v2340 = vlaneseq
        %v2341 = vshrl.u32 %v2340, 7
        %v2342 = vsub.s32 0, %v2341
        %v2343 = vrot.slane %v2338, %v2342
        %v2345 = vmul.f32 %v2330, %v2343
        %v2346 = vmul.f32 %v2331, %v2343
        %v2347 = vmul.f32 %v2332, %v2343
        %v2348 = vmul.f32 %v2333, %v2343
        %v2349 = vmul.f32 %v2334, %v2343
        %v2350 = vmul.f32 %v2335, %v2343
        %v2351 = vmul.f32 %v2336, %v2343
        %v2352 = vmul.f32 %v2337, %v2343
        %v2353 = vld [vmem:[%s7] sm:$0x1]
        %v2355 = vlaneseq
        %v2356 = vshrl.u32 %v2355, 7
        %v2357 = vsub.s32 0, %v2356
        %v2358 = vrot.slane %v2353, %v2357
        %v2360 = vadd.f32 %v2345, %v2358
        %v2361 = vadd.f32 %v2346, %v2358
        %v2362 = vadd.f32 %v2347, %v2358
        %v2363 = vadd.f32 %v2348, %v2358
        %v2364 = vadd.f32 %v2349, %v2358
        %v2365 = vadd.f32 %v2350, %v2358
        %v2366 = vadd.f32 %v2351, %v2358
        %v2367 = vadd.f32 %v2352, %v2358
        %2368 = vst [vmem:[%s354] sm:$0xff] %v2360
        %2369 = vst [vmem:[%s354 + $0x8] sm:$0xff] %v2361
        %2370 = vst [vmem:[%s354 + $0x10] sm:$0xff] %v2362
        %2371 = vst [vmem:[%s354 + $0x18] sm:$0xff] %v2363
        %2372 = vst [vmem:[%s354 + $0x20] sm:$0xff] %v2364
        %2373 = vst [vmem:[%s354 + $0x28] sm:$0xff] %v2365
        %2374 = vst [vmem:[%s354 + $0x30] sm:$0xff] %v2366
        %2375 = vst [vmem:[%s354 + $0x38] sm:$0xff] %v2367
        %s2376 = sand.u32 %s212, 1
        %s2377 = scalar_lea.sflag [#allocation6], %s2376
        %s2378 = sand.u32 %s212, 1
        %s2379 = smul.addr %s2378, 64
        %s2380 = scalar_lea.vmem [#allocation12], %s2379
        // Predicated region
        $region81: #{tpu_custom_call.1} parent=47 // pred_check
          %p2381 = pneg %p222
        $region82: #{tpu_custom_call.1} parent=47 // pred_check_branch
          %2383 = sbr.rel (%p2381) target = $region84
        $region83: #{tpu_custom_call.1} parent=47 // pred_region
          %s2384 = smul.u32 %s30, 4
          %s2385 = smul.u32 %s31, 2
          %s2386 = sadd.s32 %s2384, %s2385
          %s2387 = sadd.s32 %s2386, %s32
          %s2388 = smul.u32 8, %s2387
          %s2390 = ssub.s32 1024, 1024
          %2391 = vsyncadd %s2377, %s2390
          %s2392 = smul.addr %s2388, 128
          %s2393 = scalar_lea.hbm %s8, %s2392
          %s2394 = sshll.u32 %s2380, 4
          %s2395 = int_to_ptr.vmem [resolvable:$true] %s2394
          %2400 = dma.vmem_to_hbm [thread:$0]  %s2395, 1024, %s2393, %s2377, 128, 128, 8
        $region84: #{tpu_custom_call.1} parent=47 // pred_fallthru
          _
      $region48: #{tpu_custom_call.1} parent=5 // pred_fallthru
        _
      %p2401 = scmp.le.s32.totalorder 2, %s20
      // Predicated region
      $region85: #{tpu_custom_call.1} parent=5 // pred_check
        %p2402 = pneg %p2401
      $region86: #{tpu_custom_call.1} parent=5 // pred_check_branch
        %2404 = sbr.rel (%p2402) target = $region88
      $region87: #{tpu_custom_call.1} parent=5 // pred_region
        %s2405 = ssub.s32 %s20, 2
        // Predicated region
        $region89: #{tpu_custom_call.1} parent=87 // pred_check
          %p2406 = pneg %p228
        $region90: #{tpu_custom_call.1} parent=87 // pred_check_branch
          %2408 = sbr.rel (%p2406) target = $region92
        $region91: #{tpu_custom_call.1} parent=87 // pred_region
          %s2409 = sand.u32 %s213, 1
          %s2410 = scalar_lea.sflag [#allocation6], %s2409
          %s2411 = sand.u32 %s213, 1
          %s2412 = smul.addr %s2411, 64
          %s2413 = scalar_lea.vmem [#allocation12], %s2412
          %2414 = dma.done %s2410, 1024
        $region92: #{tpu_custom_call.1} parent=87 // pred_fallthru
          _
      $region88: #{tpu_custom_call.1} parent=5 // pred_fallthru
        _
    $region6: #{tpu_custom_call.1} parent=1 // loop_footer
      %s24 = sadd.s32 1, %s20
    $region7: #{tpu_custom_call.1} parent=1 // loop_footer_branch
      %19 = sbr.rel target = $region3
    $region8: #{tpu_custom_call.1} parent=1 // loop_exit
      _
    %2415 = vsyncpa [#allocation5], 1
    %s2416 = scalar_lea.sflag [#allocation5], 1
    %2417 = vsyncpa %s2416, 1
    %2418 = vsyncpa [#allocation8], 1
    %2419 = vsyncpa [#allocation11], 1
    %2420 = vsyncpa [#allocation6], 1
    %s2421 = scalar_lea.sflag [#allocation6], 1
    %2422 = vsyncpa %s2421, 1
  %2423 = vsyncmov [#allocation3]
  %s2424 = vpop.sfrf %2423
  %p2425 = scmp.eq.s32.totalorder %s2424, 0
  %p2426 = pneg %p2425
  %2428 = shalt.err (%p2426)
  %s2429 = scalar_lea.sflag [#allocation3], 1
  %2430 = vsyncmov %s2429
  %s2431 = vpop.sfrf %2430
  %p2432 = scmp.eq.s32.totalorder %s2431, 0
  %p2433 = pneg %p2432
  %2435 = shalt.err (%p2433)

</llo_original>
